<compile_context>
chip_gen: v7x
topology: tpu7x:2x2x1
jax: 0.10.0
libtpu: 0.0.40
codegen_flags: <defaults>
</compile_context>

<pallas_src>
import functools
import math

import jax
import jax.numpy as jnp
from jax.experimental import pallas as pl
from jax.experimental.pallas import tpu as pltpu


# ----------------------------------------------------------------------------- fused kernel

def _fused_transformer_kernel(
        # inputs
        x_ref, pe_ref, emb_w_ref, oh_ref, oht_ref,
        wqkv_ref, bqkv_ref, wo_ref, bo_ref, ln1_g_ref, ln1_b_ref,
        w1_ref, b1_ref, w2_ref, b2_ref, ln2_g_ref, ln2_b_ref,
        out_w_ref, out_b_ref,
        # outputs
        out_ref, pooled_ref,
        # scratch
        h_scr,
        *, B, S, NH, eps):
    layer = pl.program_id(0)
    H = h_scr.shape[-1]

    # ---- first grid step: embedding Linear + (emb_b + positional encoding) bias
    @pl.when(layer == 0)
    def _embed():
        h_scr[...] = (jnp.dot(x_ref[...], emb_w_ref[...],
                              preferred_element_type=jnp.float32)
                      + pe_ref[...])

    def layernorm(v, g, b):
        mu = jnp.mean(v, axis=-1, keepdims=True)
        d = v - mu
        var = jnp.mean(d * d, axis=-1, keepdims=True)
        return d * jax.lax.rsqrt(var + eps) * g + b

    x = h_scr[...]                                          # [B*S, H], row = b*S + s
    xb = x.astype(jnp.bfloat16)

    # ---- fused q/k/v projection (single wide MXU pass; q already scaled by 1/sqrt(HD))
    qkv = (jnp.dot(xb, wqkv_ref[0], preferred_element_type=jnp.float32)
           + bqkv_ref[0])                                   # [B*S, 3H]
    q = qkv[:, 0:H]
    k = qkv[:, H:2 * H]
    v = qkv[:, 2 * H:3 * H]

    oh = oh_ref[...]                                        # [H, NH] block-diag one-hot
    oht = oht_ref[...]                                      # [NH, H]

    # ---- multi-head self-attention over the batch axis (length B), per (s, head) group.
    # Per-head score reduction and probability broadcast-back run on the MXU via the
    # one-hot matrices: no per-head masks, no XLU lane reductions, no reshapes/transposes.
    ab_tiles = []
    for b in range(B):
        qb = q[b * S:(b + 1) * S, :]                        # [S, H]
        sc = [jnp.dot(qb * k[c * S:(c + 1) * S, :], oh,
                      preferred_element_type=jnp.float32)   # [S, NH] per-key-batch scores
              for c in range(B)]
        m = sc[0]
        for c in range(1, B):
            m = jnp.maximum(m, sc[c])
        ex = [jnp.exp(s - m) for s in sc]
        den = ex[0]
        for c in range(1, B):
            den = den + ex[c]
        inv = 1.0 / den                                     # exact softmax denominator
        ab = None
        for c in range(B):
            wgt = jnp.dot(ex[c] * inv, oht,
                          preferred_element_type=jnp.float32)   # [S, H] broadcast per head
            contrib = wgt * v[c * S:(c + 1) * S, :]
            ab = contrib if ab is None else ab + contrib
        ab_tiles.append(ab)
    attn = jnp.concatenate(ab_tiles, axis=0)                # [B*S, H], stays in vregs

    # ---- attention output projection + residual + LayerNorm 1
    ao = (jnp.dot(attn.astype(jnp.bfloat16), wo_ref[0],
                  preferred_element_type=jnp.float32) + bo_ref[0])
    x1 = layernorm(x + ao, ln1_g_ref[0], ln1_b_ref[0])

    # ---- feed-forward (ReLU) + residual + LayerNorm 2
    ff = (jnp.dot(x1.astype(jnp.bfloat16), w1_ref[0],
                  preferred_element_type=jnp.float32) + b1_ref[0])
    ff = jnp.maximum(ff, 0.0)
    ff2 = (jnp.dot(ff.astype(jnp.bfloat16), w2_ref[0],
                   preferred_element_type=jnp.float32) + b2_ref[0])
    x2 = layernorm(x1 + ff2, ln2_g_ref[0], ln2_b_ref[0])

    h_scr[...] = x2                                         # carry to next layer

    # ---- last grid step: mean over batch + output Linear head (lane-padded)
    @pl.when(layer == pl.num_programs(0) - 1)
    def _head():
        pooled = x2[0:S, :]
        for b in range(1, B):
            pooled = pooled + x2[b * S:(b + 1) * S, :]
        pooled = pooled * (1.0 / B)
        pooled_ref[...] = pooled.astype(pooled_ref.dtype)
        out_ref[...] = (jnp.dot(pooled, out_w_ref[...],
                                preferred_element_type=jnp.float32)
                        + out_b_ref[...]).astype(out_ref.dtype)


# ----------------------------------------------------------------------------- wrapper

def transformer_forward(x, params, pe, num_heads):
    """x: [S, B, input_size] -> (output_seq [S, out], last_layers [S, hidden])."""
    S, B, IN = x.shape
    H = params["emb_w"].shape[1]
    L = params["wq"].shape[0]
    DFF = params["w1"].shape[2]
    OUT = params["out_w"].shape[1]
    HD = H // num_heads
    scale = 1.0 / math.sqrt(HD)

    # encoder layout (literal transpose(0,1) of the torch model): row = b*S + s
    x_bs = jnp.transpose(x, (1, 0, 2)).reshape(B * S, IN)
    # emb bias + positional encoding, precombined (pe[s] added to row b*S + s)
    pe_bias = jnp.tile(pe[:S, 0, :], (B, 1)) + params["emb_b"][None, :]

    # fused QKV weights (q-scale folded in), cast to bf16 along with wo / w1 / w2
    wqkv = jnp.concatenate([params["wq"] * scale, params["wk"], params["wv"]],
                           axis=2).astype(jnp.bfloat16)                     # [L, H, 3H]
    bqkv = jnp.concatenate([params["bq"] * scale, params["bk"], params["bv"]],
                           axis=1).reshape(L, 1, 3 * H)                     # [L, 1, 3H] f32
    wo = params["wo"].astype(jnp.bfloat16)
    w1 = params["w1"].astype(jnp.bfloat16)
    w2 = params["w2"].astype(jnp.bfloat16)

    # block-diagonal head one-hot: per-head reduce / broadcast done on the MXU
    head_of_lane = jnp.arange(H, dtype=jnp.int32) // HD
    onehot = (head_of_lane[:, None]
              == jnp.arange(num_heads, dtype=jnp.int32)[None, :]).astype(jnp.float32)
    onehot_t = jnp.transpose(onehot)

    # lane-dense output head: pad OUT up to a multiple of 128, slice back afterwards
    OUT_P = ((OUT + 127) // 128) * 128
    out_w_p = jnp.zeros((H, OUT_P), jnp.float32).at[:, :OUT].set(params["out_w"])
    out_b_p = jnp.zeros((1, OUT_P), jnp.float32).at[:, :OUT].set(params["out_b"][None, :])

    c2 = lambda l: (0, 0)
    c3 = lambda l: (l, 0, 0)

    def w3(shape):  # stacked per-layer weight: block over the layer axis -> prefetch pipeline
        return pl.BlockSpec((1,) + tuple(shape[1:]), c3)

    in_specs = [
        pl.BlockSpec((B * S, IN), c2),          # x
        pl.BlockSpec((B * S, H), c2),           # emb_b + pe
        pl.BlockSpec((IN, H), c2),              # emb_w
        pl.BlockSpec((H, num_heads), c2),       # onehot
        pl.BlockSpec((num_heads, H), c2),       # onehot_t
        w3((L, H, 3 * H)), w3((L, 1, 3 * H)),   # wqkv (bf16), bqkv
        w3((L, H, H)), w3((L, 1, H)),           # wo (bf16), bo
        w3((L, 1, H)), w3((L, 1, H)),           # ln1_g, ln1_b
        w3((L, H, DFF)), w3((L, 1, DFF)),       # w1 (bf16), b1
        w3((L, DFF, H)), w3((L, 1, H)),         # w2 (bf16), b2
        w3((L, 1, H)), w3((L, 1, H)),           # ln2_g, ln2_b
        pl.BlockSpec((H, OUT_P), c2),           # out_w (padded)
        pl.BlockSpec((1, OUT_P), c2),           # out_b (padded)
    ]
    out_specs = (pl.BlockSpec((S, OUT_P), c2), pl.BlockSpec((S, H), c2))

    kernel = functools.partial(_fused_transformer_kernel,
                               B=B, S=S, NH=num_heads, eps=1e-5)

    out_p, pooled = pl.pallas_call(
        kernel,
        grid_spec=pltpu.PrefetchScalarGridSpec(
            num_scalar_prefetch=0,
            grid=(L,),
            in_specs=in_specs,
            out_specs=out_specs,
            scratch_shapes=[pltpu.VMEM((B * S, H), jnp.float32)],  # carried activation
        ),
        out_shape=(jax.ShapeDtypeStruct((S, OUT_P), jnp.float32),
                   jax.ShapeDtypeStruct((S, H), jnp.float32)),
        compiler_params=pltpu.CompilerParams(
            dimension_semantics=("arbitrary",)),   # layers carry state -> sequential
    )(x_bs, pe_bias, params["emb_w"], onehot, onehot_t,
      wqkv, bqkv,
      wo, params["bo"].reshape(L, 1, H),
      params["ln1_g"].reshape(L, 1, H), params["ln1_b"].reshape(L, 1, H),
      w1, params["b1"].reshape(L, 1, DFF),
      w2, params["b2"].reshape(L, 1, H),
      params["ln2_g"].reshape(L, 1, H), params["ln2_b"].reshape(L, 1, H),
      out_w_p, out_b_p)
    return out_p[:, :OUT], pooled


# ----------------------------------------------------------------------------- model setup

def make_pe(d_model, max_len=1000):
    pos = jnp.arange(max_len, dtype=jnp.float32)[:, None]
    div = jnp.exp(jnp.arange(0, d_model, 2, dtype=jnp.float32)
                  * (-math.log(10000.0) / d_model))
    pe = jnp.zeros((max_len, d_model), jnp.float32)
    pe = pe.at[:, 0::2].set(jnp.sin(pos * div))
    pe = pe.at[:, 1::2].set(jnp.cos(pos * div))
    return pe[:, None, :]  # [max_len, 1, d_model]


def init_params(key, in_size, hidden, out_size, num_layers, dff, scale=0.05):
    def nrm(k, shape):
        return scale * jax.random.normal(k, shape, jnp.float32)

    ks = jax.random.split(key, 16)
    L = num_layers
    return {
        "emb_w": nrm(ks[0], (in_size, hidden)),
        "emb_b": nrm(ks[1], (hidden,)),
        "wq": nrm(ks[2], (L, hidden, hidden)), "bq": nrm(ks[3], (L, hidden)),
        "wk": nrm(ks[4], (L, hidden, hidden)), "bk": nrm(ks[5], (L, hidden)),
        "wv": nrm(ks[6], (L, hidden, hidden)), "bv": nrm(ks[7], (L, hidden)),
        "wo": nrm(ks[8], (L, hidden, hidden)), "bo": nrm(ks[9], (L, hidden)),
        "w1": nrm(ks[10], (L, hidden, dff)),   "b1": nrm(ks[11], (L, dff)),
        "w2": nrm(ks[12], (L, dff, hidden)),   "b2": nrm(ks[13], (L, hidden)),
        "ln1_g": jnp.ones((L, hidden), jnp.float32),
        "ln1_b": jnp.zeros((L, hidden), jnp.float32),
        "ln2_g": jnp.ones((L, hidden), jnp.float32),
        "ln2_b": jnp.zeros((L, hidden), jnp.float32),
        "out_w": nrm(ks[14], (hidden, out_size)),
        "out_b": nrm(ks[15], (out_size,)),
    }


# ----------------------------------------------------------------------------- pure-JAX reference

def _layernorm_ref(v, g, b, eps=1e-5):
    mu = jnp.mean(v, axis=-1, keepdims=True)
    var = jnp.mean((v - mu) ** 2, axis=-1, keepdims=True)
    return (v - mu) * jax.lax.rsqrt(var + eps) * g + b


def reference_forward(x, params, pe, num_heads):
    S, B, _ = x.shape
    H = params["emb_w"].shape[1]
    HD = H // num_heads
    L = params["wq"].shape[0]

    emb = x @ params["emb_w"] + params["emb_b"] + pe[:S]    # [S, B, H]
    h = jnp.transpose(emb, (1, 0, 2))                       # [B, S, H] (transpose(0,1))
    for l in range(L):
        flat = h.reshape(B * S, H)
        q = flat @ params["wq"][l] + params["bq"][l]
        k = flat @ params["wk"][l] + params["bk"][l]
        v = flat @ params["wv"][l] + params["bv"][l]

        def sh(t):
            return jnp.transpose(t.reshape(B, S, num_heads, HD), (1, 2, 0, 3)).reshape(
                S * num_heads, B, HD)

        sc = jnp.einsum("gbd,gcd->gbc", sh(q) / math.sqrt(HD), sh(k))
        p = jax.nn.softmax(sc, axis=-1)
        a = jnp.einsum("gbc,gcd->gbd", p, sh(v))
        a = jnp.transpose(a.reshape(S, num_heads, B, HD), (2, 0, 1, 3)).reshape(B * S, H)
        ao = a @ params["wo"][l] + params["bo"][l]
        x1 = _layernorm_ref(flat + ao, params["ln1_g"][l], params["ln1_b"][l])
        ff = jax.nn.relu(x1 @ params["w1"][l] + params["b1"][l])
        ff2 = ff @ params["w2"][l] + params["b2"][l]
        x2 = _layernorm_ref(x1 + ff2, params["ln2_g"][l], params["ln2_b"][l])
        h = x2.reshape(B, S, H)
    pooled = jnp.transpose(h, (1, 0, 2)).mean(axis=1)       # [S, H]
    return pooled @ params["out_w"] + params["out_b"], pooled


# ----------------------------------------------------------------------------- main

if __name__ == "__main__":
    S, B = 8, 2                      # seq_len, batch
    INPUT, HIDDEN, OUTPUT = 16, 32, 10
    NUM_HEADS, NUM_LAYERS = 4, 2
    DFF = 2048                       # nn.TransformerEncoderLayer default dim_feedforward
    # TODO(synk): dropout (p=0.1) layers are treated as identity (eval-mode semantics).

    key = jax.random.PRNGKey(0)
    kx, kp = jax.random.split(key)
    x = jax.random.normal(kx, (S, B, INPUT), jnp.float32)
    params = init_params(kp, INPUT, HIDDEN, OUTPUT, NUM_LAYERS, DFF)
    pe = make_pe(HIDDEN, max_len=1000)

    fwd = jax.jit(functools.partial(transformer_forward, num_heads=NUM_HEADS))
    out, last = fwd(x, params, pe)
    jax.block_until_ready((out, last))

    ref_out, ref_last = reference_forward(x, params, pe, NUM_HEADS)
    assert out.shape == (S, OUTPUT) and last.shape == (S, HIDDEN)
    assert jnp.allclose(out, ref_out, atol=5e-2, rtol=5e-2)
    assert jnp.allclose(last, ref_last, atol=5e-2, rtol=5e-2)
    print("KERNEL_OK")
</pallas_src>

<mosaic_0001>
module attributes {stable_mosaic.version = 11 : i64} {
  func.func @_fused_transformer_kernel(%arg0: i32, %arg1: memref<16x16xf32, #tpu.memory_space<vmem>>, %arg2: memref<16x32xf32, #tpu.memory_space<vmem>>, %arg3: memref<16x32xf32, #tpu.memory_space<vmem>>, %arg4: memref<32x4xf32, #tpu.memory_space<vmem>>, %arg5: memref<4x32xf32, #tpu.memory_space<vmem>>, %arg6: memref<1x32x96xbf16, #tpu.memory_space<vmem>>, %arg7: memref<1x1x96xf32, #tpu.memory_space<vmem>>, %arg8: memref<1x32x32xbf16, #tpu.memory_space<vmem>>, %arg9: memref<1x1x32xf32, #tpu.memory_space<vmem>>, %arg10: memref<1x1x32xf32, #tpu.memory_space<vmem>>, %arg11: memref<1x1x32xf32, #tpu.memory_space<vmem>>, %arg12: memref<1x32x2048xbf16, #tpu.memory_space<vmem>>, %arg13: memref<1x1x2048xf32, #tpu.memory_space<vmem>>, %arg14: memref<1x2048x32xbf16, #tpu.memory_space<vmem>>, %arg15: memref<1x1x32xf32, #tpu.memory_space<vmem>>, %arg16: memref<1x1x32xf32, #tpu.memory_space<vmem>>, %arg17: memref<1x1x32xf32, #tpu.memory_space<vmem>>, %arg18: memref<32x128xf32, #tpu.memory_space<vmem>>, %arg19: memref<1x128xf32, #tpu.memory_space<vmem>>, %arg20: memref<8x128xf32, #tpu.memory_space<vmem>>, %arg21: memref<8x32xf32, #tpu.memory_space<vmem>>, %arg22: memref<16x32xf32, #tpu.memory_space<vmem>>) attributes {dimension_semantics = [#tpu.dimension_semantics<arbitrary>], iteration_bounds = array<i64: 2>, scalar_prefetch = 0 : i64, scratch_operands = 1 : i64, tpu.core_type = #tpu.core_type<tc>, window_params = [{pipeline_mode = #tpu.pipeline_mode<synchronous>, transform_indices = @transform_0, window_bounds = array<i64: 16, 16>}, {pipeline_mode = #tpu.pipeline_mode<synchronous>, transform_indices = @transform_1, window_bounds = array<i64: 16, 32>}, {pipeline_mode = #tpu.pipeline_mode<synchronous>, transform_indices = @transform_2, window_bounds = array<i64: 16, 32>}, {pipeline_mode = #tpu.pipeline_mode<synchronous>, transform_indices = @transform_3, window_bounds = array<i64: 32, 4>}, {pipeline_mode = #tpu.pipeline_mode<synchronous>, transform_indices = @transform_4, window_bounds = array<i64: 4, 32>}, {transform_indices = @transform_5, window_bounds = array<i64: 1, 32, 96>}, {transform_indices = @transform_6, window_bounds = array<i64: 1, 1, 96>}, {transform_indices = @transform_7, window_bounds = array<i64: 1, 32, 32>}, {transform_indices = @transform_8, window_bounds = array<i64: 1, 1, 32>}, {transform_indices = @transform_9, window_bounds = array<i64: 1, 1, 32>}, {transform_indices = @transform_10, window_bounds = array<i64: 1, 1, 32>}, {transform_indices = @transform_11, window_bounds = array<i64: 1, 32, 2048>}, {transform_indices = @transform_12, window_bounds = array<i64: 1, 1, 2048>}, {transform_indices = @transform_13, window_bounds = array<i64: 1, 2048, 32>}, {transform_indices = @transform_14, window_bounds = array<i64: 1, 1, 32>}, {transform_indices = @transform_15, window_bounds = array<i64: 1, 1, 32>}, {transform_indices = @transform_16, window_bounds = array<i64: 1, 1, 32>}, {pipeline_mode = #tpu.pipeline_mode<synchronous>, transform_indices = @transform_17, window_bounds = array<i64: 32, 128>}, {pipeline_mode = #tpu.pipeline_mode<synchronous>, transform_indices = @transform_18, window_bounds = array<i64: 1, 128>}, {pipeline_mode = #tpu.pipeline_mode<synchronous>, transform_indices = @transform_19, window_bounds = array<i64: 8, 128>}, {pipeline_mode = #tpu.pipeline_mode<synchronous>, transform_indices = @transform_20, window_bounds = array<i64: 8, 32>}]} {
    %c0_i32 = arith.constant 0 : i32
    %0 = arith.cmpi eq, %arg0, %c0_i32 : i32
    %1 = arith.extui %0 : i1 to i32
    %c0_i32_0 = arith.constant 0 : i32
    %2 = arith.cmpi ne, %1, %c0_i32_0 : i32
    scf.if %2 {
      %c0_69 = arith.constant 0 : index
      %c0_70 = arith.constant 0 : index
      %146 = vector.load %arg1[%c0_69, %c0_70] : memref<16x16xf32, #tpu.memory_space<vmem>>, vector<16x16xf32>
      %c0_71 = arith.constant 0 : index
      %c0_72 = arith.constant 0 : index
      %147 = vector.load %arg3[%c0_71, %c0_72] : memref<16x32xf32, #tpu.memory_space<vmem>>, vector<16x32xf32>
      %cst_73 = arith.constant dense<0.000000e+00> : vector<16x32xf32>
      %148 = tpu.matmul %146, %147, %cst_73 {dimension_numbers = #tpu.dot_dimension_numbers<[1], [0], [0], [1], [0, 0, 1, 1], [], []>} : vector<16x16xf32>, vector<16x32xf32>, vector<16x32xf32> -> vector<16x32xf32>
      %c0_74 = arith.constant 0 : index
      %c0_75 = arith.constant 0 : index
      %149 = vector.load %arg2[%c0_74, %c0_75] : memref<16x32xf32, #tpu.memory_space<vmem>>, vector<16x32xf32>
      %150 = arith.addf %148, %149 : vector<16x32xf32>
      %c0_76 = arith.constant 0 : index
      %c0_77 = arith.constant 0 : index
      %151 = vector.load %arg22[%c0_76, %c0_77] : memref<16x32xf32, #tpu.memory_space<vmem>>, vector<16x32xf32>
      tpu.vector_store %arg22[%c0_76, %c0_77], %150 {strides = array<i32>} : memref<16x32xf32, #tpu.memory_space<vmem>>, vector<16x32xf32>,
    } else {
    }
    %c0 = arith.constant 0 : index
    %c0_1 = arith.constant 0 : index
    %3 = vector.load %arg22[%c0, %c0_1] : memref<16x32xf32, #tpu.memory_space<vmem>>, vector<16x32xf32>
    %4 = arith.truncf %3 : vector<16x32xf32> to vector<16x32xbf16>
    %c0_2 = arith.constant 0 : index
    %c0_3 = arith.constant 0 : index
    %c0_4 = arith.constant 0 : index
    %5 = vector.load %arg6[%c0_2, %c0_3, %c0_4] : memref<1x32x96xbf16, #tpu.memory_space<vmem>>, vector<1x32x96xbf16>
    %6 = vector.shape_cast %5 : vector<1x32x96xbf16> to vector<32x96xbf16>
    %cst = arith.constant dense<0.000000e+00> : vector<16x96xf32>
    %7 = tpu.matmul %4, %6, %cst {dimension_numbers = #tpu.dot_dimension_numbers<[1], [0], [0], [1], [0, 0, 1, 1], [], []>} : vector<16x32xbf16>, vector<32x96xbf16>, vector<16x96xf32> -> vector<16x96xf32>
    %c0_5 = arith.constant 0 : index
    %c0_6 = arith.constant 0 : index
    %c0_7 = arith.constant 0 : index
    %8 = vector.load %arg7[%c0_5, %c0_6, %c0_7] : memref<1x1x96xf32, #tpu.memory_space<vmem>>, vector<1x1x96xf32>
    %9 = vector.shape_cast %8 : vector<1x1x96xf32> to vector<1x96xf32>
    %10 = vector.broadcast %9 : vector<1x96xf32> to vector<16x96xf32>
    %11 = arith.addf %7, %10 : vector<16x96xf32>
    %12 = vector.extract_strided_slice %11 {offsets = [0, 0], sizes = [16, 32], strides = [1, 1]} : vector<16x96xf32> to vector<16x32xf32>
    %13 = vector.extract_strided_slice %11 {offsets = [0, 32], sizes = [16, 32], strides = [1, 1]} : vector<16x96xf32> to vector<16x32xf32>
    %14 = vector.extract_strided_slice %11 {offsets = [0, 64], sizes = [16, 32], strides = [1, 1]} : vector<16x96xf32> to vector<16x32xf32>
    %c0_8 = arith.constant 0 : index
    %c0_9 = arith.constant 0 : index
    %15 = vector.load %arg4[%c0_8, %c0_9] : memref<32x4xf32, #tpu.memory_space<vmem>>, vector<32x4xf32>
    %c0_10 = arith.constant 0 : index
    %c0_11 = arith.constant 0 : index
    %16 = vector.load %arg5[%c0_10, %c0_11] : memref<4x32xf32, #tpu.memory_space<vmem>>, vector<4x32xf32>
    %17 = vector.extract_strided_slice %12 {offsets = [0, 0], sizes = [8, 32], strides = [1, 1]} : vector<16x32xf32> to vector<8x32xf32>
    %18 = vector.extract_strided_slice %13 {offsets = [0, 0], sizes = [8, 32], strides = [1, 1]} : vector<16x32xf32> to vector<8x32xf32>
    %19 = arith.mulf %17, %18 : vector<8x32xf32>
    %cst_12 = arith.constant dense<0.000000e+00> : vector<8x4xf32>
    %20 = tpu.matmul %19, %15, %cst_12 {dimension_numbers = #tpu.dot_dimension_numbers<[1], [0], [0], [1], [0, 0, 1, 1], [], []>} : vector<8x32xf32>, vector<32x4xf32>, vector<8x4xf32> -> vector<8x4xf32>
    %21 = vector.extract_strided_slice %13 {offsets = [8, 0], sizes = [8, 32], strides = [1, 1]} : vector<16x32xf32> to vector<8x32xf32>
    %22 = arith.mulf %17, %21 : vector<8x32xf32>
    %cst_13 = arith.constant dense<0.000000e+00> : vector<8x4xf32>
    %23 = tpu.matmul %22, %15, %cst_13 {dimension_numbers = #tpu.dot_dimension_numbers<[1], [0], [0], [1], [0, 0, 1, 1], [], []>} : vector<8x32xf32>, vector<32x4xf32>, vector<8x4xf32> -> vector<8x4xf32>
    %24 = arith.maximumf %20, %23 : vector<8x4xf32>
    %25 = arith.subf %20, %24 : vector<8x4xf32>
    %26 = math.exp %25 : vector<8x4xf32>
    %27 = arith.subf %23, %24 : vector<8x4xf32>
    %28 = math.exp %27 : vector<8x4xf32>
    %29 = arith.addf %26, %28 : vector<8x4xf32>
    %cst_14 = arith.constant 1.000000e+00 : f32
    %30 = vector.broadcast %cst_14 : f32 to vector<8x4xf32>
    %31 = arith.divf %30, %29 : vector<8x4xf32>
    %32 = arith.mulf %26, %31 : vector<8x4xf32>
    %cst_15 = arith.constant dense<0.000000e+00> : vector<8x32xf32>
    %33 = tpu.matmul %32, %16, %cst_15 {dimension_numbers = #tpu.dot_dimension_numbers<[1], [0], [0], [1], [0, 0, 1, 1], [], []>} : vector<8x4xf32>, vector<4x32xf32>, vector<8x32xf32> -> vector<8x32xf32>
    %34 = vector.extract_strided_slice %14 {offsets = [0, 0], sizes = [8, 32], strides = [1, 1]} : vector<16x32xf32> to vector<8x32xf32>
    %35 = arith.mulf %33, %34 : vector<8x32xf32>
    %36 = arith.mulf %28, %31 : vector<8x4xf32>
    %cst_16 = arith.constant dense<0.000000e+00> : vector<8x32xf32>
    %37 = tpu.matmul %36, %16, %cst_16 {dimension_numbers = #tpu.dot_dimension_numbers<[1], [0], [0], [1], [0, 0, 1, 1], [], []>} : vector<8x4xf32>, vector<4x32xf32>, vector<8x32xf32> -> vector<8x32xf32>
    %38 = vector.extract_strided_slice %14 {offsets = [8, 0], sizes = [8, 32], strides = [1, 1]} : vector<16x32xf32> to vector<8x32xf32>
    %39 = arith.mulf %37, %38 : vector<8x32xf32>
    %40 = arith.addf %35, %39 : vector<8x32xf32>
    %41 = vector.extract_strided_slice %12 {offsets = [8, 0], sizes = [8, 32], strides = [1, 1]} : vector<16x32xf32> to vector<8x32xf32>
    %42 = vector.extract_strided_slice %13 {offsets = [0, 0], sizes = [8, 32], strides = [1, 1]} : vector<16x32xf32> to vector<8x32xf32>
    %43 = arith.mulf %41, %42 : vector<8x32xf32>
    %cst_17 = arith.constant dense<0.000000e+00> : vector<8x4xf32>
    %44 = tpu.matmul %43, %15, %cst_17 {dimension_numbers = #tpu.dot_dimension_numbers<[1], [0], [0], [1], [0, 0, 1, 1], [], []>} : vector<8x32xf32>, vector<32x4xf32>, vector<8x4xf32> -> vector<8x4xf32>
    %45 = vector.extract_strided_slice %13 {offsets = [8, 0], sizes = [8, 32], strides = [1, 1]} : vector<16x32xf32> to vector<8x32xf32>
    %46 = arith.mulf %41, %45 : vector<8x32xf32>
    %cst_18 = arith.constant dense<0.000000e+00> : vector<8x4xf32>
    %47 = tpu.matmul %46, %15, %cst_18 {dimension_numbers = #tpu.dot_dimension_numbers<[1], [0], [0], [1], [0, 0, 1, 1], [], []>} : vector<8x32xf32>, vector<32x4xf32>, vector<8x4xf32> -> vector<8x4xf32>
    %48 = arith.maximumf %44, %47 : vector<8x4xf32>
    %49 = arith.subf %44, %48 : vector<8x4xf32>
    %50 = math.exp %49 : vector<8x4xf32>
    %51 = arith.subf %47, %48 : vector<8x4xf32>
    %52 = math.exp %51 : vector<8x4xf32>
    %53 = arith.addf %50, %52 : vector<8x4xf32>
    %cst_19 = arith.constant 1.000000e+00 : f32
    %54 = vector.broadcast %cst_19 : f32 to vector<8x4xf32>
    %55 = arith.divf %54, %53 : vector<8x4xf32>
    %56 = arith.mulf %50, %55 : vector<8x4xf32>
    %cst_20 = arith.constant dense<0.000000e+00> : vector<8x32xf32>
    %57 = tpu.matmul %56, %16, %cst_20 {dimension_numbers = #tpu.dot_dimension_numbers<[1], [0], [0], [1], [0, 0, 1, 1], [], []>} : vector<8x4xf32>, vector<4x32xf32>, vector<8x32xf32> -> vector<8x32xf32>
    %58 = vector.extract_strided_slice %14 {offsets = [0, 0], sizes = [8, 32], strides = [1, 1]} : vector<16x32xf32> to vector<8x32xf32>
    %59 = arith.mulf %57, %58 : vector<8x32xf32>
    %60 = arith.mulf %52, %55 : vector<8x4xf32>
    %cst_21 = arith.constant dense<0.000000e+00> : vector<8x32xf32>
    %61 = tpu.matmul %60, %16, %cst_21 {dimension_numbers = #tpu.dot_dimension_numbers<[1], [0], [0], [1], [0, 0, 1, 1], [], []>} : vector<8x4xf32>, vector<4x32xf32>, vector<8x32xf32> -> vector<8x32xf32>
    %62 = vector.extract_strided_slice %14 {offsets = [8, 0], sizes = [8, 32], strides = [1, 1]} : vector<16x32xf32> to vector<8x32xf32>
    %63 = arith.mulf %61, %62 : vector<8x32xf32>
    %64 = arith.addf %59, %63 : vector<8x32xf32>
    %65 = tpu.concatenate %40, %64 in 0 : vector<8x32xf32>, vector<8x32xf32> -> vector<16x32xf32>
    %66 = arith.truncf %65 : vector<16x32xf32> to vector<16x32xbf16>
    %c0_22 = arith.constant 0 : index
    %c0_23 = arith.constant 0 : index
    %c0_24 = arith.constant 0 : index
    %67 = vector.load %arg8[%c0_22, %c0_23, %c0_24] : memref<1x32x32xbf16, #tpu.memory_space<vmem>>, vector<1x32x32xbf16>
    %68 = vector.shape_cast %67 : vector<1x32x32xbf16> to vector<32x32xbf16>
    %cst_25 = arith.constant dense<0.000000e+00> : vector<16x32xf32>
    %69 = tpu.matmul %66, %68, %cst_25 {dimension_numbers = #tpu.dot_dimension_numbers<[1], [0], [0], [1], [0, 0, 1, 1], [], []>} : vector<16x32xbf16>, vector<32x32xbf16>, vector<16x32xf32> -> vector<16x32xf32>
    %c0_26 = arith.constant 0 : index
    %c0_27 = arith.constant 0 : index
    %c0_28 = arith.constant 0 : index
    %70 = vector.load %arg9[%c0_26, %c0_27, %c0_28] : memref<1x1x32xf32, #tpu.memory_space<vmem>>, vector<1x1x32xf32>
    %71 = vector.shape_cast %70 : vector<1x1x32xf32> to vector<1x32xf32>
    %72 = vector.broadcast %71 : vector<1x32xf32> to vector<16x32xf32>
    %73 = arith.addf %69, %72 : vector<16x32xf32>
    %74 = arith.addf %3, %73 : vector<16x32xf32>
    %c0_29 = arith.constant 0 : index
    %c0_30 = arith.constant 0 : index
    %c0_31 = arith.constant 0 : index
    %75 = vector.load %arg10[%c0_29, %c0_30, %c0_31] : memref<1x1x32xf32, #tpu.memory_space<vmem>>, vector<1x1x32xf32>
    %76 = vector.shape_cast %75 : vector<1x1x32xf32> to vector<1x32xf32>
    %c0_32 = arith.constant 0 : index
    %c0_33 = arith.constant 0 : index
    %c0_34 = arith.constant 0 : index
    %77 = vector.load %arg11[%c0_32, %c0_33, %c0_34] : memref<1x1x32xf32, #tpu.memory_space<vmem>>, vector<1x1x32xf32>
    %78 = vector.shape_cast %77 : vector<1x1x32xf32> to vector<1x32xf32>
    %cst_35 = arith.constant dense<0.000000e+00> : vector<16xf32>
    %79 = vector.multi_reduction <add>, %74, %cst_35 [1] : vector<16x32xf32> to vector<16xf32>
    %80 = vector.shape_cast %79 : vector<16xf32> to vector<16x1xf32>
    %cst_36 = arith.constant 3.200000e+01 : f32
    %81 = vector.broadcast %cst_36 : f32 to vector<16x1xf32>
    %82 = arith.divf %80, %81 : vector<16x1xf32>
    %83 = vector.broadcast %82 : vector<16x1xf32> to vector<16x32xf32>
    %84 = arith.subf %74, %83 : vector<16x32xf32>
    %85 = arith.mulf %84, %84 : vector<16x32xf32>
    %cst_37 = arith.constant dense<0.000000e+00> : vector<16xf32>
    %86 = vector.multi_reduction <add>, %85, %cst_37 [1] : vector<16x32xf32> to vector<16xf32>
    %87 = vector.shape_cast %86 : vector<16xf32> to vector<16x1xf32>
    %cst_38 = arith.constant 3.200000e+01 : f32
    %88 = vector.broadcast %cst_38 : f32 to vector<16x1xf32>
    %89 = arith.divf %87, %88 : vector<16x1xf32>
    %cst_39 = arith.constant 9.99999974E-6 : f32
    %90 = vector.broadcast %cst_39 : f32 to vector<16x1xf32>
    %91 = arith.addf %89, %90 : vector<16x1xf32>
    %92 = math.rsqrt %91 : vector<16x1xf32>
    %93 = vector.broadcast %92 : vector<16x1xf32> to vector<16x32xf32>
    %94 = arith.mulf %84, %93 : vector<16x32xf32>
    %95 = vector.broadcast %76 : vector<1x32xf32> to vector<16x32xf32>
    %96 = arith.mulf %94, %95 : vector<16x32xf32>
    %97 = vector.broadcast %78 : vector<1x32xf32> to vector<16x32xf32>
    %98 = arith.addf %96, %97 : vector<16x32xf32>
    %99 = arith.truncf %98 : vector<16x32xf32> to vector<16x32xbf16>
    %c0_40 = arith.constant 0 : index
    %c0_41 = arith.constant 0 : index
    %c0_42 = arith.constant 0 : index
    %100 = vector.load %arg12[%c0_40, %c0_41, %c0_42] : memref<1x32x2048xbf16, #tpu.memory_space<vmem>>, vector<1x32x2048xbf16>
    %101 = vector.shape_cast %100 : vector<1x32x2048xbf16> to vector<32x2048xbf16>
    %cst_43 = arith.constant dense<0.000000e+00> : vector<16x2048xf32>
    %102 = tpu.matmul %99, %101, %cst_43 {dimension_numbers = #tpu.dot_dimension_numbers<[1], [0], [0], [1], [0, 0, 1, 1], [], []>} : vector<16x32xbf16>, vector<32x2048xbf16>, vector<16x2048xf32> -> vector<16x2048xf32>
    %c0_44 = arith.constant 0 : index
    %c0_45 = arith.constant 0 : index
    %c0_46 = arith.constant 0 : index
    %103 = vector.load %arg13[%c0_44, %c0_45, %c0_46] : memref<1x1x2048xf32, #tpu.memory_space<vmem>>, vector<1x1x2048xf32>
    %104 = vector.shape_cast %103 : vector<1x1x2048xf32> to vector<1x2048xf32>
    %105 = vector.broadcast %104 : vector<1x2048xf32> to vector<16x2048xf32>
    %106 = arith.addf %102, %105 : vector<16x2048xf32>
    %cst_47 = arith.constant 0.000000e+00 : f32
    %107 = vector.broadcast %cst_47 : f32 to vector<16x2048xf32>
    %108 = arith.maximumf %106, %107 : vector<16x2048xf32>
    %109 = arith.truncf %108 : vector<16x2048xf32> to vector<16x2048xbf16>
    %c0_48 = arith.constant 0 : index
    %c0_49 = arith.constant 0 : index
    %c0_50 = arith.constant 0 : index
    %110 = vector.load %arg14[%c0_48, %c0_49, %c0_50] : memref<1x2048x32xbf16, #tpu.memory_space<vmem>>, vector<1x2048x32xbf16>
    %111 = vector.shape_cast %110 : vector<1x2048x32xbf16> to vector<2048x32xbf16>
    %cst_51 = arith.constant dense<0.000000e+00> : vector<16x32xf32>
    %112 = tpu.matmul %109, %111, %cst_51 {dimension_numbers = #tpu.dot_dimension_numbers<[1], [0], [0], [1], [0, 0, 1, 1], [], []>} : vector<16x2048xbf16>, vector<2048x32xbf16>, vector<16x32xf32> -> vector<16x32xf32>
    %c0_52 = arith.constant 0 : index
    %c0_53 = arith.constant 0 : index
    %c0_54 = arith.constant 0 : index
    %113 = vector.load %arg15[%c0_52, %c0_53, %c0_54] : memref<1x1x32xf32, #tpu.memory_space<vmem>>, vector<1x1x32xf32>
    %114 = vector.shape_cast %113 : vector<1x1x32xf32> to vector<1x32xf32>
    %115 = vector.broadcast %114 : vector<1x32xf32> to vector<16x32xf32>
    %116 = arith.addf %112, %115 : vector<16x32xf32>
    %117 = arith.addf %98, %116 : vector<16x32xf32>
    %c0_55 = arith.constant 0 : index
    %c0_56 = arith.constant 0 : index
    %c0_57 = arith.constant 0 : index
    %118 = vector.load %arg16[%c0_55, %c0_56, %c0_57] : memref<1x1x32xf32, #tpu.memory_space<vmem>>, vector<1x1x32xf32>
    %119 = vector.shape_cast %118 : vector<1x1x32xf32> to vector<1x32xf32>
    %c0_58 = arith.constant 0 : index
    %c0_59 = arith.constant 0 : index
    %c0_60 = arith.constant 0 : index
    %120 = vector.load %arg17[%c0_58, %c0_59, %c0_60] : memref<1x1x32xf32, #tpu.memory_space<vmem>>, vector<1x1x32xf32>
    %121 = vector.shape_cast %120 : vector<1x1x32xf32> to vector<1x32xf32>
    %cst_61 = arith.constant dense<0.000000e+00> : vector<16xf32>
    %122 = vector.multi_reduction <add>, %117, %cst_61 [1] : vector<16x32xf32> to vector<16xf32>
    %123 = vector.shape_cast %122 : vector<16xf32> to vector<16x1xf32>
    %cst_62 = arith.constant 3.200000e+01 : f32
    %124 = vector.broadcast %cst_62 : f32 to vector<16x1xf32>
    %125 = arith.divf %123, %124 : vector<16x1xf32>
    %126 = vector.broadcast %125 : vector<16x1xf32> to vector<16x32xf32>
    %127 = arith.subf %117, %126 : vector<16x32xf32>
    %128 = arith.mulf %127, %127 : vector<16x32xf32>
    %cst_63 = arith.constant dense<0.000000e+00> : vector<16xf32>
    %129 = vector.multi_reduction <add>, %128, %cst_63 [1] : vector<16x32xf32> to vector<16xf32>
    %130 = vector.shape_cast %129 : vector<16xf32> to vector<16x1xf32>
    %cst_64 = arith.constant 3.200000e+01 : f32
    %131 = vector.broadcast %cst_64 : f32 to vector<16x1xf32>
    %132 = arith.divf %130, %131 : vector<16x1xf32>
    %cst_65 = arith.constant 9.99999974E-6 : f32
    %133 = vector.broadcast %cst_65 : f32 to vector<16x1xf32>
    %134 = arith.addf %132, %133 : vector<16x1xf32>
    %135 = math.rsqrt %134 : vector<16x1xf32>
    %136 = vector.broadcast %135 : vector<16x1xf32> to vector<16x32xf32>
    %137 = arith.mulf %127, %136 : vector<16x32xf32>
    %138 = vector.broadcast %119 : vector<1x32xf32> to vector<16x32xf32>
    %139 = arith.mulf %137, %138 : vector<16x32xf32>
    %140 = vector.broadcast %121 : vector<1x32xf32> to vector<16x32xf32>
    %141 = arith.addf %139, %140 : vector<16x32xf32>
    %c0_66 = arith.constant 0 : index
    %c0_67 = arith.constant 0 : index
    %142 = vector.load %arg22[%c0_66, %c0_67] : memref<16x32xf32, #tpu.memory_space<vmem>>, vector<16x32xf32>
    tpu.vector_store %arg22[%c0_66, %c0_67], %141 {strides = array<i32>} : memref<16x32xf32, #tpu.memory_space<vmem>>, vector<16x32xf32>,
    %c1_i32 = arith.constant 1 : i32
    %143 = arith.cmpi eq, %arg0, %c1_i32 : i32
    %144 = arith.extui %143 : i1 to i32
    %c0_i32_68 = arith.constant 0 : i32
    %145 = arith.cmpi ne, %144, %c0_i32_68 : i32
    scf.if %145 {
      %146 = vector.extract_strided_slice %141 {offsets = [0, 0], sizes = [8, 32], strides = [1, 1]} : vector<16x32xf32> to vector<8x32xf32>
      %147 = vector.extract_strided_slice %141 {offsets = [8, 0], sizes = [8, 32], strides = [1, 1]} : vector<16x32xf32> to vector<8x32xf32>
      %148 = arith.addf %146, %147 : vector<8x32xf32>
      %cst_69 = arith.constant 5.000000e-01 : f32
      %149 = vector.broadcast %cst_69 : f32 to vector<8x32xf32>
      %150 = arith.mulf %148, %149 : vector<8x32xf32>
      %c0_70 = arith.constant 0 : index
      %c0_71 = arith.constant 0 : index
      %151 = vector.load %arg21[%c0_70, %c0_71] : memref<8x32xf32, #tpu.memory_space<vmem>>, vector<8x32xf32>
      tpu.vector_store %arg21[%c0_70, %c0_71], %150 {strides = array<i32>} : memref<8x32xf32, #tpu.memory_space<vmem>>, vector<8x32xf32>,
      %c0_72 = arith.constant 0 : index
      %c0_73 = arith.constant 0 : index
      %152 = vector.load %arg18[%c0_72, %c0_73] : memref<32x128xf32, #tpu.memory_space<vmem>>, vector<32x128xf32>
      %cst_74 = arith.constant dense<0.000000e+00> : vector<8x128xf32>
      %153 = tpu.matmul %150, %152, %cst_74 {dimension_numbers = #tpu.dot_dimension_numbers<[1], [0], [0], [1], [0, 0, 1, 1], [], []>} : vector<8x32xf32>, vector<32x128xf32>, vector<8x128xf32> -> vector<8x128xf32>
      %c0_75 = arith.constant 0 : index
      %c0_76 = arith.constant 0 : index
      %154 = vector.load %arg19[%c0_75, %c0_76] : memref<1x128xf32, #tpu.memory_space<vmem>>, vector<1x128xf32>
      %155 = vector.broadcast %154 : vector<1x128xf32> to vector<8x128xf32>
      %156 = arith.addf %153, %155 : vector<8x128xf32>
      %c0_77 = arith.constant 0 : index
      %c0_78 = arith.constant 0 : index
      %157 = vector.load %arg20[%c0_77, %c0_78] : memref<8x128xf32, #tpu.memory_space<vmem>>, vector<8x128xf32>
      tpu.vector_store %arg20[%c0_77, %c0_78], %156 {strides = array<i32>} : memref<8x128xf32, #tpu.memory_space<vmem>>, vector<8x128xf32>,
    } else {
    }
    return
  }
  func.func @transform_0(%arg0: i32) -> (i32, i32) {
    %c0_i32 = arith.constant 0 : i32
    %c0_i32_0 = arith.constant 0 : i32
    %c0_i32_1 = arith.constant 0 : i32
    return %c0_i32, %c0_i32_0 : i32, i32
  }
  func.func @transform_1(%arg0: i32) -> (i32, i32) {
    %c0_i32 = arith.constant 0 : i32
    %c0_i32_0 = arith.constant 0 : i32
    %c0_i32_1 = arith.constant 0 : i32
    return %c0_i32, %c0_i32_0 : i32, i32
  }
  func.func @transform_2(%arg0: i32) -> (i32, i32) {
    %c0_i32 = arith.constant 0 : i32
    %c0_i32_0 = arith.constant 0 : i32
    %c0_i32_1 = arith.constant 0 : i32
    return %c0_i32, %c0_i32_0 : i32, i32
  }
  func.func @transform_3(%arg0: i32) -> (i32, i32) {
    %c0_i32 = arith.constant 0 : i32
    %c0_i32_0 = arith.constant 0 : i32
    %c0_i32_1 = arith.constant 0 : i32
    return %c0_i32, %c0_i32_0 : i32, i32
  }
  func.func @transform_4(%arg0: i32) -> (i32, i32) {
    %c0_i32 = arith.constant 0 : i32
    %c0_i32_0 = arith.constant 0 : i32
    %c0_i32_1 = arith.constant 0 : i32
    return %c0_i32, %c0_i32_0 : i32, i32
  }
  func.func @transform_5(%arg0: i32) -> (i32, i32, i32) {
    %c0_i32 = arith.constant 0 : i32
    %c0_i32_0 = arith.constant 0 : i32
    %c0_i32_1 = arith.constant 0 : i32
    return %arg0, %c0_i32, %c0_i32_0 : i32, i32, i32
  }
  func.func @transform_6(%arg0: i32) -> (i32, i32, i32) {
    %c0_i32 = arith.constant 0 : i32
    %c0_i32_0 = arith.constant 0 : i32
    %c0_i32_1 = arith.constant 0 : i32
    return %arg0, %c0_i32, %c0_i32_0 : i32, i32, i32
  }
  func.func @transform_7(%arg0: i32) -> (i32, i32, i32) {
    %c0_i32 = arith.constant 0 : i32
    %c0_i32_0 = arith.constant 0 : i32
    %c0_i32_1 = arith.constant 0 : i32
    return %arg0, %c0_i32, %c0_i32_0 : i32, i32, i32
  }
  func.func @transform_8(%arg0: i32) -> (i32, i32, i32) {
    %c0_i32 = arith.constant 0 : i32
    %c0_i32_0 = arith.constant 0 : i32
    %c0_i32_1 = arith.constant 0 : i32
    return %arg0, %c0_i32, %c0_i32_0 : i32, i32, i32
  }
  func.func @transform_9(%arg0: i32) -> (i32, i32, i32) {
    %c0_i32 = arith.constant 0 : i32
    %c0_i32_0 = arith.constant 0 : i32
    %c0_i32_1 = arith.constant 0 : i32
    return %arg0, %c0_i32, %c0_i32_0 : i32, i32, i32
  }
  func.func @transform_10(%arg0: i32) -> (i32, i32, i32) {
    %c0_i32 = arith.constant 0 : i32
    %c0_i32_0 = arith.constant 0 : i32
    %c0_i32_1 = arith.constant 0 : i32
    return %arg0, %c0_i32, %c0_i32_0 : i32, i32, i32
  }
  func.func @transform_11(%arg0: i32) -> (i32, i32, i32) {
    %c0_i32 = arith.constant 0 : i32
    %c0_i32_0 = arith.constant 0 : i32
    %c0_i32_1 = arith.constant 0 : i32
    return %arg0, %c0_i32, %c0_i32_0 : i32, i32, i32
  }
  func.func @transform_12(%arg0: i32) -> (i32, i32, i32) {
    %c0_i32 = arith.constant 0 : i32
    %c0_i32_0 = arith.constant 0 : i32
    %c0_i32_1 = arith.constant 0 : i32
    return %arg0, %c0_i32, %c0_i32_0 : i32, i32, i32
  }
  func.func @transform_13(%arg0: i32) -> (i32, i32, i32) {
    %c0_i32 = arith.constant 0 : i32
    %c0_i32_0 = arith.constant 0 : i32
    %c0_i32_1 = arith.constant 0 : i32
    return %arg0, %c0_i32, %c0_i32_0 : i32, i32, i32
  }
  func.func @transform_14(%arg0: i32) -> (i32, i32, i32) {
    %c0_i32 = arith.constant 0 : i32
    %c0_i32_0 = arith.constant 0 : i32
    %c0_i32_1 = arith.constant 0 : i32
    return %arg0, %c0_i32, %c0_i32_0 : i32, i32, i32
  }
  func.func @transform_15(%arg0: i32) -> (i32, i32, i32) {
    %c0_i32 = arith.constant 0 : i32
    %c0_i32_0 = arith.constant 0 : i32
    %c0_i32_1 = arith.constant 0 : i32
    return %arg0, %c0_i32, %c0_i32_0 : i32, i32, i32
  }
  func.func @transform_16(%arg0: i32) -> (i32, i32, i32) {
    %c0_i32 = arith.constant 0 : i32
    %c0_i32_0 = arith.constant 0 : i32
    %c0_i32_1 = arith.constant 0 : i32
    return %arg0, %c0_i32, %c0_i32_0 : i32, i32, i32
  }
  func.func @transform_17(%arg0: i32) -> (i32, i32) {
    %c0_i32 = arith.constant 0 : i32
    %c0_i32_0 = arith.constant 0 : i32
    %c0_i32_1 = arith.constant 0 : i32
    return %c0_i32, %c0_i32_0 : i32, i32
  }
  func.func @transform_18(%arg0: i32) -> (i32, i32) {
    %c0_i32 = arith.constant 0 : i32
    %c0_i32_0 = arith.constant 0 : i32
    %c0_i32_1 = arith.constant 0 : i32
    return %c0_i32, %c0_i32_0 : i32, i32
  }
  func.func @transform_19(%arg0: i32) -> (i32, i32) {
    %c0_i32 = arith.constant 0 : i32
    %c0_i32_0 = arith.constant 0 : i32
    %c0_i32_1 = arith.constant 0 : i32
    return %c0_i32, %c0_i32_0 : i32, i32
  }
  func.func @transform_20(%arg0: i32) -> (i32, i32) {
    %c0_i32 = arith.constant 0 : i32
    %c0_i32_0 = arith.constant 0 : i32
    %c0_i32_1 = arith.constant 0 : i32
    return %c0_i32, %c0_i32_0 : i32, i32
  }
}

</mosaic_0001>

<llo_original>
// kernel: transformer_forward.1
$region0: #{transformer_forward.1}
  #allocation0 [shape = 'u32[]', space=smem, size = 0x4, offset = 0x4, fixed_abs, tag = 'smem constant byte address 0x4 - core index']
  #allocation1 [shape = 'u32[144,128]{1,0:T(1,128)}', space=vmem, size = 0x12000, scoped, tag = 'internal scratch']
  #allocation2 [shape = 'f32[16,32]{1,0:T(8,128)}', space=vmem, size = 0x2000, scoped, tag = 'scratch operand']
  %s0 = inlined_call_operand.vmem [shape: f32[16,16], index: 0, kind: input, shape index: {}]
  %s1 = inlined_call_operand.vmem [shape: f32[16,32], index: 1, kind: input, shape index: {}]
  %s2 = inlined_call_operand.vmem [shape: f32[16,32], index: 2, kind: input, shape index: {}]
  %s3 = inlined_call_operand.vmem [shape: f32[32,4], index: 3, kind: input, shape index: {}]
  %s4 = inlined_call_operand.vmem [shape: f32[4,32], index: 4, kind: input, shape index: {}]
  %s5 = inlined_call_operand.vmem [shape: bf16[2,32,96], index: 5, kind: input, shape index: {}]
  %s6 = inlined_call_operand.vmem [shape: f32[2,1,96], index: 6, kind: input, shape index: {}]
  %s7 = inlined_call_operand.vmem [shape: bf16[2,32,32], index: 7, kind: input, shape index: {}]
  %s8 = inlined_call_operand.vmem [shape: f32[2,1,32], index: 8, kind: input, shape index: {}]
  %s9 = inlined_call_operand.vmem [shape: f32[2,1,32], index: 9, kind: input, shape index: {}]
  %s10 = inlined_call_operand.vmem [shape: f32[2,1,32], index: 10, kind: input, shape index: {}]
  %s11 = inlined_call_operand.vmem [shape: bf16[2,32,2048], index: 11, kind: input, shape index: {}]
  %s12 = inlined_call_operand.vmem [shape: f32[2,1,2048], index: 12, kind: input, shape index: {}]
  %s13 = inlined_call_operand.vmem [shape: bf16[2,2048,32], index: 13, kind: input, shape index: {}]
  %s14 = inlined_call_operand.vmem [shape: f32[2,1,32], index: 14, kind: input, shape index: {}]
  %s15 = inlined_call_operand.vmem [shape: f32[2,1,32], index: 15, kind: input, shape index: {}]
  %s16 = inlined_call_operand.vmem [shape: f32[2,1,32], index: 16, kind: input, shape index: {}]
  %s17 = inlined_call_operand.vmem [shape: f32[32,128], index: 17, kind: input, shape index: {}]
  %s18 = inlined_call_operand.vmem [shape: f32[1,128], index: 18, kind: input, shape index: {}]
  %s19 = inlined_call_operand.hbm [shape: f32[8,128], index: 19, kind: output, shape index: {0}]
  %s20 = inlined_call_operand.hbm [shape: f32[8,32], index: 20, kind: output, shape index: {1}]
  %21 = xla_tuple %s19, %s20
  %s22 = sld [smem:[#allocation0]]
  $region125: #{transformer_forward.1} parent=0
    _
  %s24 = ssub.s32 1, %s22
  %s25 = scalar_select 0, %s24, %s22
  $region1: #{transformer_forward.1} parent=0
    #allocation3 [shape = 'u8[4096]{0}', space=vmem, size = 0x1000, scoped, tag = 'output window, operand 0, single buffered']
    #allocation4 [shape = 's32[2]{0}', space=sflag, size = 0x8, scoped, tag = 'scoped memory for transformer_forward.1']
    #allocation5 [shape = 'u8[4096]{0}', space=vmem, size = 0x1000, scoped, tag = 'output window, operand 1, single buffered']
    #allocation6 [shape = 's32[1]{0}', space=sflag, size = 0x4, scoped, tag = 'scoped memory for transformer_forward.1']
    %26 = vsyncpa [#allocation4], 0
    %27 = vsyncpa [#allocation6], 0
    loop: start=0, step=1, limit=4
    $region2: #{transformer_forward.1} parent=1 // loop_pre_header
      _
    $region3: #{transformer_forward.1} parent=1 // loop_header
      %s29 = sphi 0, %s33
      %p30 = scmp.ge.s32.totalorder %s29, 4
      %s37 = sphi 0, %s37
      %s39 = sphi 0, %s37
      %s40 = sphi 0, %s39
      %s54 = sphi 0, %s40
      %s58 = sphi 0, %s58
      %s60 = sphi 0, %s58
      %s61 = sphi 0, %s60
      %s75 = sphi 0, %s61
      %s79 = sphi 0, %s79
      %s81 = sphi 0, %s79
      %s82 = sphi 0, %s81
      %s96 = sphi 0, %s82
      %s100 = sphi 0, %s100
      %s102 = sphi 0, %s100
      %s103 = sphi 0, %s102
      %s117 = sphi 0, %s103
      %s121 = sphi 0, %s121
      %s123 = sphi 0, %s121
      %s124 = sphi 0, %s123
      %s138 = sphi 0, %s124
      %s144 = sphi 0, %s146
      %s147 = sphi 0, %s144
      %s148 = sphi 0, %s147
      %s164 = sphi 0, %s148
      %s170 = sphi 0, %s172
      %s173 = sphi 0, %s170
      %s174 = sphi 0, %s173
      %s190 = sphi 0, %s174
      %s196 = sphi 0, %s198
      %s199 = sphi 0, %s196
      %s200 = sphi 0, %s199
      %s216 = sphi 0, %s200
      %s222 = sphi 0, %s224
      %s225 = sphi 0, %s222
      %s226 = sphi 0, %s225
      %s242 = sphi 0, %s226
      %s248 = sphi 0, %s250
      %s251 = sphi 0, %s248
      %s252 = sphi 0, %s251
      %s268 = sphi 0, %s252
      %s274 = sphi 0, %s276
      %s277 = sphi 0, %s274
      %s278 = sphi 0, %s277
      %s294 = sphi 0, %s278
      %s300 = sphi 0, %s302
      %s303 = sphi 0, %s300
      %s304 = sphi 0, %s303
      %s320 = sphi 0, %s304
      %s326 = sphi 0, %s328
      %s329 = sphi 0, %s326
      %s330 = sphi 0, %s329
      %s346 = sphi 0, %s330
      %s352 = sphi 0, %s354
      %s355 = sphi 0, %s352
      %s356 = sphi 0, %s355
      %s372 = sphi 0, %s356
      %s378 = sphi 0, %s380
      %s381 = sphi 0, %s378
      %s382 = sphi 0, %s381
      %s398 = sphi 0, %s382
      %s404 = sphi 0, %s406
      %s407 = sphi 0, %s404
      %s408 = sphi 0, %s407
      %s424 = sphi 0, %s408
      %s430 = sphi 0, %s432
      %s433 = sphi 0, %s430
      %s434 = sphi 0, %s433
      %s450 = sphi 0, %s434
      %s454 = sphi 0, %s454
      %s456 = sphi 0, %s454
      %s457 = sphi 0, %s456
      %s471 = sphi 0, %s457
      %s475 = sphi 0, %s475
      %s477 = sphi 0, %s475
      %s478 = sphi 0, %s477
      %s492 = sphi 0, %s478
      %s496 = sphi 0, %s496
      %s498 = sphi 0, %s496
      %s499 = sphi 0, %s498
      %s513 = sphi 0, %s499
      %s517 = sphi 0, %s517
      %s519 = sphi 0, %s517
      %s520 = sphi 0, %s519
      %s534 = sphi 0, %s520
    $region4: #{transformer_forward.1} parent=1 // loop_header_branch
      %32 = sbr.rel (%p30) target = $region8
    $region5: #{transformer_forward.1} parent=1 // loop_body
      %s34 = ssub.s32 %s29, 1
      %s35 = ssub.s32 %s29, 2
      %s36 = sadd.s32 %s29, 1
      %s38 = sadd.s32 %s37, 1
      %p41 = scmp.eq.s32.totalorder %s29, 1
      %p42 = scmp.ne.s32.totalorder %s37, %s39
      %p43 = scmp.eq.s32.totalorder %s29, 0
      %p44 = por %p42, %p43
      %p45 = scmp.ne.s32.totalorder %s37, %s39
      %p46 = scmp.eq.s32.totalorder %s34, 1
      %p47 = por %p45, %p46
      %p48 = scmp.ne.s32.totalorder %s39, %s40
      %p49 = scmp.eq.s32.totalorder %s34, 0
      %p50 = por %p48, %p49
      %p51 = scmp.ne.s32.totalorder %s39, %s40
      %p52 = scmp.eq.s32.totalorder %s35, 1
      %p53 = por %p51, %p52
      %p55 = scmp.ne.s32.totalorder %s40, %s54
      %p56 = scmp.eq.s32.totalorder %s35, 0
      %p57 = por %p55, %p56
      %s59 = sadd.s32 %s58, 1
      %p62 = scmp.eq.s32.totalorder %s29, 1
      %p63 = scmp.ne.s32.totalorder %s58, %s60
      %p64 = scmp.eq.s32.totalorder %s29, 0
      %p65 = por %p63, %p64
      %p66 = scmp.ne.s32.totalorder %s58, %s60
      %p67 = scmp.eq.s32.totalorder %s34, 1
      %p68 = por %p66, %p67
      %p69 = scmp.ne.s32.totalorder %s60, %s61
      %p70 = scmp.eq.s32.totalorder %s34, 0
      %p71 = por %p69, %p70
      %p72 = scmp.ne.s32.totalorder %s60, %s61
      %p73 = scmp.eq.s32.totalorder %s35, 1
      %p74 = por %p72, %p73
      %p76 = scmp.ne.s32.totalorder %s61, %s75
      %p77 = scmp.eq.s32.totalorder %s35, 0
      %p78 = por %p76, %p77
      %s80 = sadd.s32 %s79, 1
      %p83 = scmp.eq.s32.totalorder %s29, 1
      %p84 = scmp.ne.s32.totalorder %s79, %s81
      %p85 = scmp.eq.s32.totalorder %s29, 0
      %p86 = por %p84, %p85
      %p87 = scmp.ne.s32.totalorder %s79, %s81
      %p88 = scmp.eq.s32.totalorder %s34, 1
      %p89 = por %p87, %p88
      %p90 = scmp.ne.s32.totalorder %s81, %s82
      %p91 = scmp.eq.s32.totalorder %s34, 0
      %p92 = por %p90, %p91
      %p93 = scmp.ne.s32.totalorder %s81, %s82
      %p94 = scmp.eq.s32.totalorder %s35, 1
      %p95 = por %p93, %p94
      %p97 = scmp.ne.s32.totalorder %s82, %s96
      %p98 = scmp.eq.s32.totalorder %s35, 0
      %p99 = por %p97, %p98
      %s101 = sadd.s32 %s100, 1
      %p104 = scmp.eq.s32.totalorder %s29, 1
      %p105 = scmp.ne.s32.totalorder %s100, %s102
      %p106 = scmp.eq.s32.totalorder %s29, 0
      %p107 = por %p105, %p106
      %p108 = scmp.ne.s32.totalorder %s100, %s102
      %p109 = scmp.eq.s32.totalorder %s34, 1
      %p110 = por %p108, %p109
      %p111 = scmp.ne.s32.totalorder %s102, %s103
      %p112 = scmp.eq.s32.totalorder %s34, 0
      %p113 = por %p111, %p112
      %p114 = scmp.ne.s32.totalorder %s102, %s103
      %p115 = scmp.eq.s32.totalorder %s35, 1
      %p116 = por %p114, %p115
      %p118 = scmp.ne.s32.totalorder %s103, %s117
      %p119 = scmp.eq.s32.totalorder %s35, 0
      %p120 = por %p118, %p119
      %s122 = sadd.s32 %s121, 1
      %p125 = scmp.eq.s32.totalorder %s29, 1
      %p126 = scmp.ne.s32.totalorder %s121, %s123
      %p127 = scmp.eq.s32.totalorder %s29, 0
      %p128 = por %p126, %p127
      %p129 = scmp.ne.s32.totalorder %s121, %s123
      %p130 = scmp.eq.s32.totalorder %s34, 1
      %p131 = por %p129, %p130
      %p132 = scmp.ne.s32.totalorder %s123, %s124
      %p133 = scmp.eq.s32.totalorder %s34, 0
      %p134 = por %p132, %p133
      %p135 = scmp.ne.s32.totalorder %s123, %s124
      %p136 = scmp.eq.s32.totalorder %s35, 1
      %p137 = por %p135, %p136
      %p139 = scmp.ne.s32.totalorder %s124, %s138
      %p140 = scmp.eq.s32.totalorder %s35, 0
      %p141 = por %p139, %p140
      %s142 = ssub.s32 %s29, %s36
      %p143 = scmp.eq.s32.totalorder %s142, 0
      %s145 = sadd.s32 %s144, 1
      %s146 = scalar_select %p143, %s144, %s145
      %p149 = pneg %p143
      %p150 = scmp.eq.s32.totalorder %s29, 1
      %p151 = por %p149, %p150
      %p152 = scmp.ne.s32.totalorder %s144, %s147
      %p153 = scmp.eq.s32.totalorder %s29, 0
      %p154 = por %p152, %p153
      %p155 = scmp.ne.s32.totalorder %s144, %s147
      %p156 = scmp.eq.s32.totalorder %s34, 1
      %p157 = por %p155, %p156
      %p158 = scmp.ne.s32.totalorder %s147, %s148
      %p159 = scmp.eq.s32.totalorder %s34, 0
      %p160 = por %p158, %p159
      %p161 = scmp.ne.s32.totalorder %s147, %s148
      %p162 = scmp.eq.s32.totalorder %s35, 1
      %p163 = por %p161, %p162
      %p165 = scmp.ne.s32.totalorder %s148, %s164
      %p166 = scmp.eq.s32.totalorder %s35, 0
      %p167 = por %p165, %p166
      %s168 = ssub.s32 %s29, %s36
      %p169 = scmp.eq.s32.totalorder %s168, 0
      %s171 = sadd.s32 %s170, 1
      %s172 = scalar_select %p169, %s170, %s171
      %p175 = pneg %p169
      %p176 = scmp.eq.s32.totalorder %s29, 1
      %p177 = por %p175, %p176
      %p178 = scmp.ne.s32.totalorder %s170, %s173
      %p179 = scmp.eq.s32.totalorder %s29, 0
      %p180 = por %p178, %p179
      %p181 = scmp.ne.s32.totalorder %s170, %s173
      %p182 = scmp.eq.s32.totalorder %s34, 1
      %p183 = por %p181, %p182
      %p184 = scmp.ne.s32.totalorder %s173, %s174
      %p185 = scmp.eq.s32.totalorder %s34, 0
      %p186 = por %p184, %p185
      %p187 = scmp.ne.s32.totalorder %s173, %s174
      %p188 = scmp.eq.s32.totalorder %s35, 1
      %p189 = por %p187, %p188
      %p191 = scmp.ne.s32.totalorder %s174, %s190
      %p192 = scmp.eq.s32.totalorder %s35, 0
      %p193 = por %p191, %p192
      %s194 = ssub.s32 %s29, %s36
      %p195 = scmp.eq.s32.totalorder %s194, 0
      %s197 = sadd.s32 %s196, 1
      %s198 = scalar_select %p195, %s196, %s197
      %p201 = pneg %p195
      %p202 = scmp.eq.s32.totalorder %s29, 1
      %p203 = por %p201, %p202
      %p204 = scmp.ne.s32.totalorder %s196, %s199
      %p205 = scmp.eq.s32.totalorder %s29, 0
      %p206 = por %p204, %p205
      %p207 = scmp.ne.s32.totalorder %s196, %s199
      %p208 = scmp.eq.s32.totalorder %s34, 1
      %p209 = por %p207, %p208
      %p210 = scmp.ne.s32.totalorder %s199, %s200
      %p211 = scmp.eq.s32.totalorder %s34, 0
      %p212 = por %p210, %p211
      %p213 = scmp.ne.s32.totalorder %s199, %s200
      %p214 = scmp.eq.s32.totalorder %s35, 1
      %p215 = por %p213, %p214
      %p217 = scmp.ne.s32.totalorder %s200, %s216
      %p218 = scmp.eq.s32.totalorder %s35, 0
      %p219 = por %p217, %p218
      %s220 = ssub.s32 %s29, %s36
      %p221 = scmp.eq.s32.totalorder %s220, 0
      %s223 = sadd.s32 %s222, 1
      %s224 = scalar_select %p221, %s222, %s223
      %p227 = pneg %p221
      %p228 = scmp.eq.s32.totalorder %s29, 1
      %p229 = por %p227, %p228
      %p230 = scmp.ne.s32.totalorder %s222, %s225
      %p231 = scmp.eq.s32.totalorder %s29, 0
      %p232 = por %p230, %p231
      %p233 = scmp.ne.s32.totalorder %s222, %s225
      %p234 = scmp.eq.s32.totalorder %s34, 1
      %p235 = por %p233, %p234
      %p236 = scmp.ne.s32.totalorder %s225, %s226
      %p237 = scmp.eq.s32.totalorder %s34, 0
      %p238 = por %p236, %p237
      %p239 = scmp.ne.s32.totalorder %s225, %s226
      %p240 = scmp.eq.s32.totalorder %s35, 1
      %p241 = por %p239, %p240
      %p243 = scmp.ne.s32.totalorder %s226, %s242
      %p244 = scmp.eq.s32.totalorder %s35, 0
      %p245 = por %p243, %p244
      %s246 = ssub.s32 %s29, %s36
      %p247 = scmp.eq.s32.totalorder %s246, 0
      %s249 = sadd.s32 %s248, 1
      %s250 = scalar_select %p247, %s248, %s249
      %p253 = pneg %p247
      %p254 = scmp.eq.s32.totalorder %s29, 1
      %p255 = por %p253, %p254
      %p256 = scmp.ne.s32.totalorder %s248, %s251
      %p257 = scmp.eq.s32.totalorder %s29, 0
      %p258 = por %p256, %p257
      %p259 = scmp.ne.s32.totalorder %s248, %s251
      %p260 = scmp.eq.s32.totalorder %s34, 1
      %p261 = por %p259, %p260
      %p262 = scmp.ne.s32.totalorder %s251, %s252
      %p263 = scmp.eq.s32.totalorder %s34, 0
      %p264 = por %p262, %p263
      %p265 = scmp.ne.s32.totalorder %s251, %s252
      %p266 = scmp.eq.s32.totalorder %s35, 1
      %p267 = por %p265, %p266
      %p269 = scmp.ne.s32.totalorder %s252, %s268
      %p270 = scmp.eq.s32.totalorder %s35, 0
      %p271 = por %p269, %p270
      %s272 = ssub.s32 %s29, %s36
      %p273 = scmp.eq.s32.totalorder %s272, 0
      %s275 = sadd.s32 %s274, 1
      %s276 = scalar_select %p273, %s274, %s275
      %p279 = pneg %p273
      %p280 = scmp.eq.s32.totalorder %s29, 1
      %p281 = por %p279, %p280
      %p282 = scmp.ne.s32.totalorder %s274, %s277
      %p283 = scmp.eq.s32.totalorder %s29, 0
      %p284 = por %p282, %p283
      %p285 = scmp.ne.s32.totalorder %s274, %s277
      %p286 = scmp.eq.s32.totalorder %s34, 1
      %p287 = por %p285, %p286
      %p288 = scmp.ne.s32.totalorder %s277, %s278
      %p289 = scmp.eq.s32.totalorder %s34, 0
      %p290 = por %p288, %p289
      %p291 = scmp.ne.s32.totalorder %s277, %s278
      %p292 = scmp.eq.s32.totalorder %s35, 1
      %p293 = por %p291, %p292
      %p295 = scmp.ne.s32.totalorder %s278, %s294
      %p296 = scmp.eq.s32.totalorder %s35, 0
      %p297 = por %p295, %p296
      %s298 = ssub.s32 %s29, %s36
      %p299 = scmp.eq.s32.totalorder %s298, 0
      %s301 = sadd.s32 %s300, 1
      %s302 = scalar_select %p299, %s300, %s301
      %p305 = pneg %p299
      %p306 = scmp.eq.s32.totalorder %s29, 1
      %p307 = por %p305, %p306
      %p308 = scmp.ne.s32.totalorder %s300, %s303
      %p309 = scmp.eq.s32.totalorder %s29, 0
      %p310 = por %p308, %p309
      %p311 = scmp.ne.s32.totalorder %s300, %s303
      %p312 = scmp.eq.s32.totalorder %s34, 1
      %p313 = por %p311, %p312
      %p314 = scmp.ne.s32.totalorder %s303, %s304
      %p315 = scmp.eq.s32.totalorder %s34, 0
      %p316 = por %p314, %p315
      %p317 = scmp.ne.s32.totalorder %s303, %s304
      %p318 = scmp.eq.s32.totalorder %s35, 1
      %p319 = por %p317, %p318
      %p321 = scmp.ne.s32.totalorder %s304, %s320
      %p322 = scmp.eq.s32.totalorder %s35, 0
      %p323 = por %p321, %p322
      %s324 = ssub.s32 %s29, %s36
      %p325 = scmp.eq.s32.totalorder %s324, 0
      %s327 = sadd.s32 %s326, 1
      %s328 = scalar_select %p325, %s326, %s327
      %p331 = pneg %p325
      %p332 = scmp.eq.s32.totalorder %s29, 1
      %p333 = por %p331, %p332
      %p334 = scmp.ne.s32.totalorder %s326, %s329
      %p335 = scmp.eq.s32.totalorder %s29, 0
      %p336 = por %p334, %p335
      %p337 = scmp.ne.s32.totalorder %s326, %s329
      %p338 = scmp.eq.s32.totalorder %s34, 1
      %p339 = por %p337, %p338
      %p340 = scmp.ne.s32.totalorder %s329, %s330
      %p341 = scmp.eq.s32.totalorder %s34, 0
      %p342 = por %p340, %p341
      %p343 = scmp.ne.s32.totalorder %s329, %s330
      %p344 = scmp.eq.s32.totalorder %s35, 1
      %p345 = por %p343, %p344
      %p347 = scmp.ne.s32.totalorder %s330, %s346
      %p348 = scmp.eq.s32.totalorder %s35, 0
      %p349 = por %p347, %p348
      %s350 = ssub.s32 %s29, %s36
      %p351 = scmp.eq.s32.totalorder %s350, 0
      %s353 = sadd.s32 %s352, 1
      %s354 = scalar_select %p351, %s352, %s353
      %p357 = pneg %p351
      %p358 = scmp.eq.s32.totalorder %s29, 1
      %p359 = por %p357, %p358
      %p360 = scmp.ne.s32.totalorder %s352, %s355
      %p361 = scmp.eq.s32.totalorder %s29, 0
      %p362 = por %p360, %p361
      %p363 = scmp.ne.s32.totalorder %s352, %s355
      %p364 = scmp.eq.s32.totalorder %s34, 1
      %p365 = por %p363, %p364
      %p366 = scmp.ne.s32.totalorder %s355, %s356
      %p367 = scmp.eq.s32.totalorder %s34, 0
      %p368 = por %p366, %p367
      %p369 = scmp.ne.s32.totalorder %s355, %s356
      %p370 = scmp.eq.s32.totalorder %s35, 1
      %p371 = por %p369, %p370
      %p373 = scmp.ne.s32.totalorder %s356, %s372
      %p374 = scmp.eq.s32.totalorder %s35, 0
      %p375 = por %p373, %p374
      %s376 = ssub.s32 %s29, %s36
      %p377 = scmp.eq.s32.totalorder %s376, 0
      %s379 = sadd.s32 %s378, 1
      %s380 = scalar_select %p377, %s378, %s379
      %p383 = pneg %p377
      %p384 = scmp.eq.s32.totalorder %s29, 1
      %p385 = por %p383, %p384
      %p386 = scmp.ne.s32.totalorder %s378, %s381
      %p387 = scmp.eq.s32.totalorder %s29, 0
      %p388 = por %p386, %p387
      %p389 = scmp.ne.s32.totalorder %s378, %s381
      %p390 = scmp.eq.s32.totalorder %s34, 1
      %p391 = por %p389, %p390
      %p392 = scmp.ne.s32.totalorder %s381, %s382
      %p393 = scmp.eq.s32.totalorder %s34, 0
      %p394 = por %p392, %p393
      %p395 = scmp.ne.s32.totalorder %s381, %s382
      %p396 = scmp.eq.s32.totalorder %s35, 1
      %p397 = por %p395, %p396
      %p399 = scmp.ne.s32.totalorder %s382, %s398
      %p400 = scmp.eq.s32.totalorder %s35, 0
      %p401 = por %p399, %p400
      %s402 = ssub.s32 %s29, %s36
      %p403 = scmp.eq.s32.totalorder %s402, 0
      %s405 = sadd.s32 %s404, 1
      %s406 = scalar_select %p403, %s404, %s405
      %p409 = pneg %p403
      %p410 = scmp.eq.s32.totalorder %s29, 1
      %p411 = por %p409, %p410
      %p412 = scmp.ne.s32.totalorder %s404, %s407
      %p413 = scmp.eq.s32.totalorder %s29, 0
      %p414 = por %p412, %p413
      %p415 = scmp.ne.s32.totalorder %s404, %s407
      %p416 = scmp.eq.s32.totalorder %s34, 1
      %p417 = por %p415, %p416
      %p418 = scmp.ne.s32.totalorder %s407, %s408
      %p419 = scmp.eq.s32.totalorder %s34, 0
      %p420 = por %p418, %p419
      %p421 = scmp.ne.s32.totalorder %s407, %s408
      %p422 = scmp.eq.s32.totalorder %s35, 1
      %p423 = por %p421, %p422
      %p425 = scmp.ne.s32.totalorder %s408, %s424
      %p426 = scmp.eq.s32.totalorder %s35, 0
      %p427 = por %p425, %p426
      %s428 = ssub.s32 %s29, %s36
      %p429 = scmp.eq.s32.totalorder %s428, 0
      %s431 = sadd.s32 %s430, 1
      %s432 = scalar_select %p429, %s430, %s431
      %p435 = pneg %p429
      %p436 = scmp.eq.s32.totalorder %s29, 1
      %p437 = por %p435, %p436
      %p438 = scmp.ne.s32.totalorder %s430, %s433
      %p439 = scmp.eq.s32.totalorder %s29, 0
      %p440 = por %p438, %p439
      %p441 = scmp.ne.s32.totalorder %s430, %s433
      %p442 = scmp.eq.s32.totalorder %s34, 1
      %p443 = por %p441, %p442
      %p444 = scmp.ne.s32.totalorder %s433, %s434
      %p445 = scmp.eq.s32.totalorder %s34, 0
      %p446 = por %p444, %p445
      %p447 = scmp.ne.s32.totalorder %s433, %s434
      %p448 = scmp.eq.s32.totalorder %s35, 1
      %p449 = por %p447, %p448
      %p451 = scmp.ne.s32.totalorder %s434, %s450
      %p452 = scmp.eq.s32.totalorder %s35, 0
      %p453 = por %p451, %p452
      %s455 = sadd.s32 %s454, 1
      %p458 = scmp.eq.s32.totalorder %s29, 1
      %p459 = scmp.ne.s32.totalorder %s454, %s456
      %p460 = scmp.eq.s32.totalorder %s29, 0
      %p461 = por %p459, %p460
      %p462 = scmp.ne.s32.totalorder %s454, %s456
      %p463 = scmp.eq.s32.totalorder %s34, 1
      %p464 = por %p462, %p463
      %p465 = scmp.ne.s32.totalorder %s456, %s457
      %p466 = scmp.eq.s32.totalorder %s34, 0
      %p467 = por %p465, %p466
      %p468 = scmp.ne.s32.totalorder %s456, %s457
      %p469 = scmp.eq.s32.totalorder %s35, 1
      %p470 = por %p468, %p469
      %p472 = scmp.ne.s32.totalorder %s457, %s471
      %p473 = scmp.eq.s32.totalorder %s35, 0
      %p474 = por %p472, %p473
      %s476 = sadd.s32 %s475, 1
      %p479 = scmp.eq.s32.totalorder %s29, 1
      %p480 = scmp.ne.s32.totalorder %s475, %s477
      %p481 = scmp.eq.s32.totalorder %s29, 0
      %p482 = por %p480, %p481
      %p483 = scmp.ne.s32.totalorder %s475, %s477
      %p484 = scmp.eq.s32.totalorder %s34, 1
      %p485 = por %p483, %p484
      %p486 = scmp.ne.s32.totalorder %s477, %s478
      %p487 = scmp.eq.s32.totalorder %s34, 0
      %p488 = por %p486, %p487
      %p489 = scmp.ne.s32.totalorder %s477, %s478
      %p490 = scmp.eq.s32.totalorder %s35, 1
      %p491 = por %p489, %p490
      %p493 = scmp.ne.s32.totalorder %s478, %s492
      %p494 = scmp.eq.s32.totalorder %s35, 0
      %p495 = por %p493, %p494
      %s497 = sadd.s32 %s496, 1
      %p500 = scmp.eq.s32.totalorder %s29, 1
      %p501 = scmp.ne.s32.totalorder %s496, %s498
      %p502 = scmp.eq.s32.totalorder %s29, 0
      %p503 = por %p501, %p502
      %p504 = scmp.ne.s32.totalorder %s496, %s498
      %p505 = scmp.eq.s32.totalorder %s34, 1
      %p506 = por %p504, %p505
      %p507 = scmp.ne.s32.totalorder %s498, %s499
      %p508 = scmp.eq.s32.totalorder %s34, 0
      %p509 = por %p507, %p508
      %p510 = scmp.ne.s32.totalorder %s498, %s499
      %p511 = scmp.eq.s32.totalorder %s35, 1
      %p512 = por %p510, %p511
      %p514 = scmp.ne.s32.totalorder %s499, %s513
      %p515 = scmp.eq.s32.totalorder %s35, 0
      %p516 = por %p514, %p515
      %s518 = sadd.s32 %s517, 1
      %p521 = scmp.eq.s32.totalorder %s29, 1
      %p522 = scmp.ne.s32.totalorder %s517, %s519
      %p523 = scmp.eq.s32.totalorder %s29, 0
      %p524 = por %p522, %p523
      %p525 = scmp.ne.s32.totalorder %s517, %s519
      %p526 = scmp.eq.s32.totalorder %s34, 1
      %p527 = por %p525, %p526
      %p528 = scmp.ne.s32.totalorder %s519, %s520
      %p529 = scmp.eq.s32.totalorder %s34, 0
      %p530 = por %p528, %p529
      %p531 = scmp.ne.s32.totalorder %s519, %s520
      %p532 = scmp.eq.s32.totalorder %s35, 1
      %p533 = por %p531, %p532
      %p535 = scmp.ne.s32.totalorder %s520, %s534
      %p536 = scmp.eq.s32.totalorder %s35, 0
      %p537 = por %p535, %p536
      %p538 = scmp.le.s32.totalorder 1, %s29
      %p539 = scmp.lt.s32.totalorder %s29, 3
      %p540 = pnand %p538, %p539
      %p541 = pneg %p540
      // Predicated region
      $region9: #{transformer_forward.1} parent=5 // pred_check
        _
      $region10: #{transformer_forward.1} parent=5 // pred_check_branch
        %543 = sbr.rel (%p540) target = $region12
      $region11: #{transformer_forward.1} parent=5 // pred_region
        %s544 = ssub.s32 %s29, 1
        // Predicated region
        $region13: #{transformer_forward.1} parent=11 // pred_check
          %p545 = pneg %p50
        $region14: #{transformer_forward.1} parent=11 // pred_check_branch
          %547 = sbr.rel (%p545) target = $region16
        $region15: #{transformer_forward.1} parent=11 // pred_region
          _
        $region16: #{transformer_forward.1} parent=11 // pred_fallthru
          _
        // Predicated region
        $region17: #{transformer_forward.1} parent=11 // pred_check
          %p548 = pneg %p71
        $region18: #{transformer_forward.1} parent=11 // pred_check_branch
          %550 = sbr.rel (%p548) target = $region20
        $region19: #{transformer_forward.1} parent=11 // pred_region
          _
        $region20: #{transformer_forward.1} parent=11 // pred_fallthru
          _
        // Predicated region
        $region21: #{transformer_forward.1} parent=11 // pred_check
          %p551 = pneg %p92
        $region22: #{transformer_forward.1} parent=11 // pred_check_branch
          %553 = sbr.rel (%p551) target = $region24
        $region23: #{transformer_forward.1} parent=11 // pred_region
          _
        $region24: #{transformer_forward.1} parent=11 // pred_fallthru
          _
        // Predicated region
        $region25: #{transformer_forward.1} parent=11 // pred_check
          %p554 = pneg %p113
        $region26: #{transformer_forward.1} parent=11 // pred_check_branch
          %556 = sbr.rel (%p554) target = $region28
        $region27: #{transformer_forward.1} parent=11 // pred_region
          _
        $region28: #{transformer_forward.1} parent=11 // pred_fallthru
          _
        // Predicated region
        $region29: #{transformer_forward.1} parent=11 // pred_check
          %p557 = pneg %p134
        $region30: #{transformer_forward.1} parent=11 // pred_check_branch
          %559 = sbr.rel (%p557) target = $region32
        $region31: #{transformer_forward.1} parent=11 // pred_region
          _
        $region32: #{transformer_forward.1} parent=11 // pred_fallthru
          _
        // Predicated region
        $region33: #{transformer_forward.1} parent=11 // pred_check
          %p560 = pneg %p467
        $region34: #{transformer_forward.1} parent=11 // pred_check_branch
          %562 = sbr.rel (%p560) target = $region36
        $region35: #{transformer_forward.1} parent=11 // pred_region
          _
        $region36: #{transformer_forward.1} parent=11 // pred_fallthru
          _
        // Predicated region
        $region37: #{transformer_forward.1} parent=11 // pred_check
          %p563 = pneg %p488
        $region38: #{transformer_forward.1} parent=11 // pred_check_branch
          %565 = sbr.rel (%p563) target = $region40
        $region39: #{transformer_forward.1} parent=11 // pred_region
          _
        $region40: #{transformer_forward.1} parent=11 // pred_fallthru
          _
      $region12: #{transformer_forward.1} parent=5 // pred_fallthru
        _
      %p566 = scmp.lt.s32.totalorder %s29, 2
      // Predicated region
      $region41: #{transformer_forward.1} parent=5 // pred_check
        %p567 = pneg %p566
      $region42: #{transformer_forward.1} parent=5 // pred_check_branch
        %569 = sbr.rel (%p567) target = $region44
      $region43: #{transformer_forward.1} parent=5 // pred_region
        // Predicated region
        $region45: #{transformer_forward.1} parent=43 // pred_check
          %p570 = pneg %p154
        $region46: #{transformer_forward.1} parent=43 // pred_check_branch
          %572 = sbr.rel (%p570) target = $region48
        $region47: #{transformer_forward.1} parent=43 // pred_region
          %p573 = scmp.lt.s32.totalorder %s29, 1
          %s574 = scalar_select %p573, %s29, 1
          %s575 = smul.addr %s574, 4
          %s576 = smul.addr %s575, 4
          %s577 = scalar_lea.vmem %s5, %s576
        $region48: #{transformer_forward.1} parent=43 // pred_fallthru
          _
        // Predicated region
        $region49: #{transformer_forward.1} parent=43 // pred_check
          %p578 = pneg %p180
        $region50: #{transformer_forward.1} parent=43 // pred_check_branch
          %580 = sbr.rel (%p578) target = $region52
        $region51: #{transformer_forward.1} parent=43 // pred_region
          %p581 = scmp.lt.s32.totalorder %s29, 1
          %s582 = scalar_select %p581, %s29, 1
          %s583 = scalar_lea.vmem %s6, %s582
        $region52: #{transformer_forward.1} parent=43 // pred_fallthru
          _
        // Predicated region
        $region53: #{transformer_forward.1} parent=43 // pred_check
          %p584 = pneg %p206
        $region54: #{transformer_forward.1} parent=43 // pred_check_branch
          %586 = sbr.rel (%p584) target = $region56
        $region55: #{transformer_forward.1} parent=43 // pred_region
          %p587 = scmp.lt.s32.totalorder %s29, 1
          %s588 = scalar_select %p587, %s29, 1
          %s589 = smul.addr %s588, 4
          %s590 = smul.addr %s589, 4
          %s591 = scalar_lea.vmem %s7, %s590
        $region56: #{transformer_forward.1} parent=43 // pred_fallthru
          _
        // Predicated region
        $region57: #{transformer_forward.1} parent=43 // pred_check
          %p592 = pneg %p232
        $region58: #{transformer_forward.1} parent=43 // pred_check_branch
          %594 = sbr.rel (%p592) target = $region60
        $region59: #{transformer_forward.1} parent=43 // pred_region
          %p595 = scmp.lt.s32.totalorder %s29, 1
          %s596 = scalar_select %p595, %s29, 1
          %s597 = scalar_lea.vmem %s8, %s596
        $region60: #{transformer_forward.1} parent=43 // pred_fallthru
          _
        // Predicated region
        $region61: #{transformer_forward.1} parent=43 // pred_check
          %p598 = pneg %p258
        $region62: #{transformer_forward.1} parent=43 // pred_check_branch
          %600 = sbr.rel (%p598) target = $region64
        $region63: #{transformer_forward.1} parent=43 // pred_region
          %p601 = scmp.lt.s32.totalorder %s29, 1
          %s602 = scalar_select %p601, %s29, 1
          %s603 = scalar_lea.vmem %s9, %s602
        $region64: #{transformer_forward.1} parent=43 // pred_fallthru
          _
        // Predicated region
        $region65: #{transformer_forward.1} parent=43 // pred_check
          %p604 = pneg %p284
        $region66: #{transformer_forward.1} parent=43 // pred_check_branch
          %606 = sbr.rel (%p604) target = $region68
        $region67: #{transformer_forward.1} parent=43 // pred_region
          %p607 = scmp.lt.s32.totalorder %s29, 1
          %s608 = scalar_select %p607, %s29, 1
          %s609 = scalar_lea.vmem %s10, %s608
        $region68: #{transformer_forward.1} parent=43 // pred_fallthru
          _
        // Predicated region
        $region69: #{transformer_forward.1} parent=43 // pred_check
          %p610 = pneg %p310
        $region70: #{transformer_forward.1} parent=43 // pred_check_branch
          %612 = sbr.rel (%p610) target = $region72
        $region71: #{transformer_forward.1} parent=43 // pred_region
          %p613 = scmp.lt.s32.totalorder %s29, 1
          %s614 = scalar_select %p613, %s29, 1
          %s615 = smul.addr %s614, 64
          %s616 = smul.addr %s615, 4
          %s617 = scalar_lea.vmem %s11, %s616
        $region72: #{transformer_forward.1} parent=43 // pred_fallthru
          _
        // Predicated region
        $region73: #{transformer_forward.1} parent=43 // pred_check
          %p618 = pneg %p336
        $region74: #{transformer_forward.1} parent=43 // pred_check_branch
          %620 = sbr.rel (%p618) target = $region76
        $region75: #{transformer_forward.1} parent=43 // pred_region
          %p621 = scmp.lt.s32.totalorder %s29, 1
          %s622 = scalar_select %p621, %s29, 1
          %s623 = smul.addr %s622, 16
          %s624 = scalar_lea.vmem %s12, %s623
        $region76: #{transformer_forward.1} parent=43 // pred_fallthru
          _
        // Predicated region
        $region77: #{transformer_forward.1} parent=43 // pred_check
          %p625 = pneg %p362
        $region78: #{transformer_forward.1} parent=43 // pred_check_branch
          %627 = sbr.rel (%p625) target = $region80
        $region79: #{transformer_forward.1} parent=43 // pred_region
          %p628 = scmp.lt.s32.totalorder %s29, 1
          %s629 = scalar_select %p628, %s29, 1
          %s630 = smul.addr %s629, 256
          %s631 = smul.addr %s630, 4
          %s632 = scalar_lea.vmem %s13, %s631
        $region80: #{transformer_forward.1} parent=43 // pred_fallthru
          _
        // Predicated region
        $region81: #{transformer_forward.1} parent=43 // pred_check
          %p633 = pneg %p388
        $region82: #{transformer_forward.1} parent=43 // pred_check_branch
          %635 = sbr.rel (%p633) target = $region84
        $region83: #{transformer_forward.1} parent=43 // pred_region
          %p636 = scmp.lt.s32.totalorder %s29, 1
          %s637 = scalar_select %p636, %s29, 1
          %s638 = scalar_lea.vmem %s14, %s637
        $region84: #{transformer_forward.1} parent=43 // pred_fallthru
          _
        // Predicated region
        $region85: #{transformer_forward.1} parent=43 // pred_check
          %p639 = pneg %p414
        $region86: #{transformer_forward.1} parent=43 // pred_check_branch
          %641 = sbr.rel (%p639) target = $region88
        $region87: #{transformer_forward.1} parent=43 // pred_region
          %p642 = scmp.lt.s32.totalorder %s29, 1
          %s643 = scalar_select %p642, %s29, 1
          %s644 = scalar_lea.vmem %s15, %s643
        $region88: #{transformer_forward.1} parent=43 // pred_fallthru
          _
        // Predicated region
        $region89: #{transformer_forward.1} parent=43 // pred_check
          %p645 = pneg %p440
        $region90: #{transformer_forward.1} parent=43 // pred_check_branch
          %647 = sbr.rel (%p645) target = $region92
        $region91: #{transformer_forward.1} parent=43 // pred_region
          %p648 = scmp.lt.s32.totalorder %s29, 1
          %s649 = scalar_select %p648, %s29, 1
          %s650 = scalar_lea.vmem %s16, %s649
        $region92: #{transformer_forward.1} parent=43 // pred_fallthru
          _
      $region44: #{transformer_forward.1} parent=5 // pred_fallthru
        _
      %p651 = scmp.le.s32.totalorder 1, %s29
      %p652 = scmp.lt.s32.totalorder %s29, 3
      %p653 = pnand %p651, %p652
      %p654 = pneg %p653
      // Predicated region
      $region93: #{transformer_forward.1} parent=5 // pred_check
        _
      $region94: #{transformer_forward.1} parent=5 // pred_check_branch
        %656 = sbr.rel (%p653) target = $region96
      $region95: #{transformer_forward.1} parent=5 // pred_region
        %s657 = ssub.s32 %s29, 1
        %p658 = pneg %p50
        %p659 = pneg %p47
        %p660 = pneg %p71
        %p661 = pneg %p68
        %p662 = pneg %p92
        %p663 = pneg %p89
        %p664 = pneg %p113
        %p665 = pneg %p110
        %p666 = pneg %p134
        %p667 = pneg %p131
        %p668 = scmp.lt.s32.totalorder %s34, 1
        %s669 = scalar_select %p668, %s34, 1
        %s670 = smul.addr %s669, 4
        %s671 = smul.addr %s670, 4
        %s672 = scalar_lea.vmem %s5, %s671
        %p673 = pneg %p160
        %p674 = pneg %p157
        %p675 = scmp.lt.s32.totalorder %s34, 1
        %s676 = scalar_select %p675, %s34, 1
        %s677 = scalar_lea.vmem %s6, %s676
        %p678 = pneg %p186
        %p679 = pneg %p183
        %p680 = scmp.lt.s32.totalorder %s34, 1
        %s681 = scalar_select %p680, %s34, 1
        %s682 = smul.addr %s681, 4
        %s683 = smul.addr %s682, 4
        %s684 = scalar_lea.vmem %s7, %s683
        %p685 = pneg %p212
        %p686 = pneg %p209
        %p687 = scmp.lt.s32.totalorder %s34, 1
        %s688 = scalar_select %p687, %s34, 1
        %s689 = scalar_lea.vmem %s8, %s688
        %p690 = pneg %p238
        %p691 = pneg %p235
        %p692 = scmp.lt.s32.totalorder %s34, 1
        %s693 = scalar_select %p692, %s34, 1
        %s694 = scalar_lea.vmem %s9, %s693
        %p695 = pneg %p264
        %p696 = pneg %p261
        %p697 = scmp.lt.s32.totalorder %s34, 1
        %s698 = scalar_select %p697, %s34, 1
        %s699 = scalar_lea.vmem %s10, %s698
        %p700 = pneg %p290
        %p701 = pneg %p287
        %p702 = scmp.lt.s32.totalorder %s34, 1
        %s703 = scalar_select %p702, %s34, 1
        %s704 = smul.addr %s703, 64
        %s705 = smul.addr %s704, 4
        %s706 = scalar_lea.vmem %s11, %s705
        %p707 = pneg %p316
        %p708 = pneg %p313
        %p709 = scmp.lt.s32.totalorder %s34, 1
        %s710 = scalar_select %p709, %s34, 1
        %s711 = smul.addr %s710, 16
        %s712 = scalar_lea.vmem %s12, %s711
        %p713 = pneg %p342
        %p714 = pneg %p339
        %p715 = scmp.lt.s32.totalorder %s34, 1
        %s716 = scalar_select %p715, %s34, 1
        %s717 = smul.addr %s716, 256
        %s718 = smul.addr %s717, 4
        %s719 = scalar_lea.vmem %s13, %s718
        %p720 = pneg %p368
        %p721 = pneg %p365
        %p722 = scmp.lt.s32.totalorder %s34, 1
        %s723 = scalar_select %p722, %s34, 1
        %s724 = scalar_lea.vmem %s14, %s723
        %p725 = pneg %p394
        %p726 = pneg %p391
        %p727 = scmp.lt.s32.totalorder %s34, 1
        %s728 = scalar_select %p727, %s34, 1
        %s729 = scalar_lea.vmem %s15, %s728
        %p730 = pneg %p420
        %p731 = pneg %p417
        %p732 = scmp.lt.s32.totalorder %s34, 1
        %s733 = scalar_select %p732, %s34, 1
        %s734 = scalar_lea.vmem %s16, %s733
        %p735 = pneg %p446
        %p736 = pneg %p443
        %p737 = pneg %p467
        %p738 = pneg %p464
        %p739 = pneg %p488
        %p740 = pneg %p485
        %p741 = pneg %p509
        %p742 = pneg %p506
        %p743 = pneg %p530
        %p744 = pneg %p527
        %p745 = scmp.lt.s32.totalorder %s34, 1
        %s746 = scalar_select %p745, %s34, 1
        %s747 = smul.addr %s746, 4
        %s748 = smul.addr %s747, 4
        %s749 = scalar_lea.vmem %s5, %s748
        %p750 = scmp.lt.s32.totalorder %s34, 1
        %s751 = scalar_select %p750, %s34, 1
        %s752 = scalar_lea.vmem %s6, %s751
        %p753 = scmp.lt.s32.totalorder %s34, 1
        %s754 = scalar_select %p753, %s34, 1
        %s755 = smul.addr %s754, 4
        %s756 = smul.addr %s755, 4
        %s757 = scalar_lea.vmem %s7, %s756
        %p758 = scmp.lt.s32.totalorder %s34, 1
        %s759 = scalar_select %p758, %s34, 1
        %s760 = scalar_lea.vmem %s8, %s759
        %p761 = scmp.lt.s32.totalorder %s34, 1
        %s762 = scalar_select %p761, %s34, 1
        %s763 = scalar_lea.vmem %s9, %s762
        %p764 = scmp.lt.s32.totalorder %s34, 1
        %s765 = scalar_select %p764, %s34, 1
        %s766 = scalar_lea.vmem %s10, %s765
        %p767 = scmp.lt.s32.totalorder %s34, 1
        %s768 = scalar_select %p767, %s34, 1
        %s769 = smul.addr %s768, 64
        %s770 = smul.addr %s769, 4
        %s771 = scalar_lea.vmem %s11, %s770
        %p772 = scmp.lt.s32.totalorder %s34, 1
        %s773 = scalar_select %p772, %s34, 1
        %s774 = smul.addr %s773, 16
        %s775 = scalar_lea.vmem %s12, %s774
        %p776 = scmp.lt.s32.totalorder %s34, 1
        %s777 = scalar_select %p776, %s34, 1
        %s778 = smul.addr %s777, 256
        %s779 = smul.addr %s778, 4
        %s780 = scalar_lea.vmem %s13, %s779
        %p781 = scmp.lt.s32.totalorder %s34, 1
        %s782 = scalar_select %p781, %s34, 1
        %s783 = scalar_lea.vmem %s14, %s782
        %p784 = scmp.lt.s32.totalorder %s34, 1
        %s785 = scalar_select %p784, %s34, 1
        %s786 = scalar_lea.vmem %s15, %s785
        %p787 = scmp.lt.s32.totalorder %s34, 1
        %s788 = scalar_select %p787, %s34, 1
        %s789 = scalar_lea.vmem %s16, %s788
        %p791 = scmp.eq.s32.totalorder %s34, 0
        // Predicated region
        $region97: #{transformer_forward.1} parent=95 // pred_check
          %p792 = pneg %p791
        $region98: #{transformer_forward.1} parent=95 // pred_check_branch
          %794 = sbr.rel (%p792) target = $region100
        $region99: #{transformer_forward.1} parent=95 // pred_region
          %v795 = vld [vmem:[%s0] sm:$0xff]
          %v796 = vld [vmem:[%s0 + $0x8] sm:$0xff]
          %v797 = vld [vmem:[%s2] sm:$0xff]
          %v798 = vld [vmem:[%s2 + $0x8] sm:$0xff]
          %v799 = vld [vmem:[%s1] sm:$0xff]
          %v800 = vld [vmem:[%s1 + $0x8] sm:$0xff]
          %vm801 = vcmask 130048
          %v803 = vsel %vm801, %v795, 0
          %v806 = vsel %vm801, %v796, 0
          %808 = vmatprep.subr.mxu0 0.0
          %809 = vmatpush1.msra.mxu0 %v797
          %810 = vmatprep.subr.mxu0 0.0
          %811 = vmatpush1.msra.mxu0 %v798
          %812 = vmatprep.subr.mxu0 0.0
          %813 = vmatpush1.msra.mxu0 0.0
          %814 = vmatprep.subr.mxu0 0.0
          %815 = vmatpush1.msra.mxu0 0.0
          %816 = vmatprep.subr.mxu0 0.0
          %817 = vmatpush1.msra.mxu0 0.0
          %818 = vmatprep.subr.mxu0 0.0
          %819 = vmatpush1.msra.mxu0 0.0
          %820 = vmatprep.subr.mxu0 0.0
          %821 = vmatpush1.msra.mxu0 0.0
          %822 = vmatprep.subr.mxu0 0.0
          %823 = vmatpush1.msra.mxu0 0.0
          %824 = vmatprep.subr.mxu0 0.0
          %825 = vmatpush1.msra.mxu0 0.0
          %826 = vmatprep.subr.mxu0 0.0
          %827 = vmatpush1.msra.mxu0 0.0
          %828 = vmatprep.subr.mxu0 0.0
          %829 = vmatpush1.msra.mxu0 0.0
          %830 = vmatprep.subr.mxu0 0.0
          %831 = vmatpush1.msra.mxu0 0.0
          %832 = vmatprep.subr.mxu0 0.0
          %833 = vmatpush1.msra.mxu0 0.0
          %834 = vmatprep.subr.mxu0 0.0
          %835 = vmatpush1.msra.mxu0 0.0
          %836 = vmatprep.subr.mxu0 0.0
          %837 = vmatpush1.msra.mxu0 0.0
          %838 = vmatprep.subr.mxu0 0.0
          %839 = vmatpush1.msra.mxu0 0.0
          %840 = vmatprep.subr.mxu0 0.0
          %841 = vmatpush1.msra.mxu0 0.0
          %842 = vmatprep.subr.mxu0 0.0
          %843 = vmatpush1.msra.mxu0 0.0
          %844 = vmatprep.subr.mxu0 0.0
          %845 = vmatpush1.msra.mxu0 0.0
          %846 = vmatprep.subr.mxu0 0.0
          %847 = vmatpush1.msra.mxu0 0.0
          %848 = vmatprep.subr.mxu0 0.0
          %849 = vmatpush1.msra.mxu0 0.0
          %850 = vmatprep.subr.mxu0 0.0
          %851 = vmatpush1.msra.mxu0 0.0
          %852 = vmatprep.subr.mxu0 0.0
          %853 = vmatpush1.msra.mxu0 0.0
          %854 = vmatprep.subr.mxu0 0.0
          %855 = vmatpush1.msra.mxu0 0.0
          %856 = vmatprep.subr.mxu0 0.0
          %857 = vmatpush1.msra.mxu0 0.0
          %858 = vmatprep.subr.mxu0 0.0
          %859 = vmatpush1.msra.mxu0 0.0
          %860 = vmatprep.subr.mxu0 0.0
          %861 = vmatpush1.msra.mxu0 0.0
          %862 = vmatprep.subr.mxu0 0.0
          %863 = vmatpush1.msra.mxu0 0.0
          %864 = vmatprep.subr.mxu0 0.0
          %865 = vmatpush1.msra.mxu0 0.0
          %866 = vmatprep.subr.mxu0 0.0
          %867 = vmatpush1.msra.mxu0 0.0
          %868 = vmatprep.subr.mxu0 0.0
          %869 = vmatpush1.msra.mxu0 0.0
          %870 = vmatprep.subr.mxu0 0.0
          %871 = vmatpush1.msra.mxu0 0.0
          %872 = vmatprep.mubr.f32.mxu0 0.0
          %873 = vmatmul.mubr.f32.gmra.mrb[0].mxu0 %v803
          %v874 = vpop.f32.mrb[0].mxu0
          %v875 = vadd.f32 %v799, %v874
          %v876 = vpop.f32.mrb[0].mxu0
          %877 = vmatprep.mubr.f32.mxu0 0.0
          %878 = vmatmul.mubr.f32.gmra.mrb[0].mxu0 %v806
          %v879 = vpop.f32.mrb[0].mxu0
          %v880 = vadd.f32 %v800, %v879
          %v881 = vpop.f32.mrb[0].mxu0
          %882 = vdwg.mxu0
          %vm883 = vcmask 261120
          %884 = vst.msk [vmem:[#allocation2] sm:$0xff] %vm883, %v875
          %885 = vst.msk [vmem:[#allocation2 + $0x8] sm:$0xff] %vm883, %v880
        $region100: #{transformer_forward.1} parent=95 // pred_fallthru
          _
        %v886 = vld [vmem:[#allocation2] sm:$0xff]
        %v887 = vld [vmem:[#allocation2 + $0x8] sm:$0xff]
        %v888 = vpack.c.bf16 %v887, %v886
        %v889 = vld [vmem:[%s749] sm:$0xf]
        %v890 = vld [vmem:[%s749 + $0x4] sm:$0xf]
        %v891 = vld [vmem:[%s749 + $0x8] sm:$0xf]
        %v892 = vld [vmem:[%s749 + $0xc] sm:$0xf]
        %v893 = vld [vmem:[%s752] sm:$0x1]
        %v895 = vlaneseq
        %v896 = vshrl.u32 %v895, 7
        %v897 = vsub.s32 0, %v896
        %v898 = vrot.slane %v893, %v897
        %v904 = vunpack.c.l.b16 %v889
        %v905 = vunpack.c.l.b16 %v890
        %v906 = vunpack.c.l.b16 %v891
        %v907 = vunpack.c.l.b16 %v892
        %v908 = vpack.c.b16 %v905, %v904
        %v909 = vpack.c.b16 %v907, %v906
        %vm912 = vcmask 261120
        %v914 = vsel %vm912, %v888, 0
        %916 = vmatprep.subr.bf16.mxu0 0
        %917 = vmatpush1.bf16.msra.mxu0 %v908
        %918 = vmatprep.subr.bf16.mxu0 0
        %919 = vmatpush1.bf16.msra.mxu0 %v909
        %920 = vmatprep.subr.bf16.mxu0 0
        %921 = vmatpush1.bf16.msra.mxu0 0
        %922 = vmatprep.subr.bf16.mxu0 0
        %923 = vmatpush1.bf16.msra.mxu0 0
        %924 = vmatprep.subr.bf16.mxu0 0
        %925 = vmatpush1.bf16.msra.mxu0 0
        %926 = vmatprep.subr.bf16.mxu0 0
        %927 = vmatpush1.bf16.msra.mxu0 0
        %928 = vmatprep.subr.bf16.mxu0 0
        %929 = vmatpush1.bf16.msra.mxu0 0
        %930 = vmatprep.subr.bf16.mxu0 0
        %931 = vmatpush1.bf16.msra.mxu0 0
        %932 = vmatprep.subr.bf16.mxu0 0
        %933 = vmatpush1.bf16.msra.mxu0 0
        %934 = vmatprep.subr.bf16.mxu0 0
        %935 = vmatpush1.bf16.msra.mxu0 0
        %936 = vmatprep.subr.bf16.mxu0 0
        %937 = vmatpush1.bf16.msra.mxu0 0
        %938 = vmatprep.subr.bf16.mxu0 0
        %939 = vmatpush1.bf16.msra.mxu0 0
        %940 = vmatprep.subr.bf16.mxu0 0
        %941 = vmatpush1.bf16.msra.mxu0 0
        %942 = vmatprep.subr.bf16.mxu0 0
        %943 = vmatpush1.bf16.msra.mxu0 0
        %944 = vmatprep.subr.bf16.mxu0 0
        %945 = vmatpush1.bf16.msra.mxu0 0
        %946 = vmatprep.subr.bf16.mxu0 0
        %947 = vmatpush1.bf16.msra.mxu0 0
        %948 = vmatprep.mubr.bf16.mxu0 0
        %949 = vmatmul.mubr.bf16.gmra.mrb[0].mxu0 %v914
        %v950 = vpop.f32.mrb[0].mxu0
        %v951 = vadd.f32 %v898, %v950
        %v952 = vpop.f32.mrb[0].mxu0
        %v953 = vpop.f32.mrb[0].mxu0
        %v954 = vadd.f32 %v898, %v953
        %v955 = vpop.f32.mrb[0].mxu0
        %956 = vdwg.mxu0
        %v957 = vld [vmem:[%s3] sm:$0xff]
        %v958 = vld [vmem:[%s3 + $0x8] sm:$0xff]
        %v959 = vld [vmem:[%s3 + $0x10] sm:$0xff]
        %v960 = vld [vmem:[%s3 + $0x18] sm:$0xff]
        %v961 = vld [vmem:[%s4] sm:$0xf]
        %963 = vrot.lane.b32.xlu0 %v951, 96
        %v964 = vpop.permute.xlu0 %963
        %v966 = vmul.f32 %v951, %v964
        %v968 = vsel %vm912, %v966, 0
        %970 = vmatprep.subr.mxu0 0.0
        %971 = vmatpush1.msra.mxu0 %v957
        %972 = vmatprep.subr.mxu0 0.0
        %973 = vmatpush1.msra.mxu0 %v958
        %974 = vmatprep.subr.mxu0 0.0
        %975 = vmatpush1.msra.mxu0 %v959
        %976 = vmatprep.subr.mxu0 0.0
        %977 = vmatpush1.msra.mxu0 %v960
        %978 = vmatprep.subr.mxu0 0.0
        %979 = vmatpush1.msra.mxu0 0.0
        %980 = vmatprep.subr.mxu0 0.0
        %981 = vmatpush1.msra.mxu0 0.0
        %982 = vmatprep.subr.mxu0 0.0
        %983 = vmatpush1.msra.mxu0 0.0
        %984 = vmatprep.subr.mxu0 0.0
        %985 = vmatpush1.msra.mxu0 0.0
        %986 = vmatprep.subr.mxu0 0.0
        %987 = vmatpush1.msra.mxu0 0.0
        %988 = vmatprep.subr.mxu0 0.0
        %989 = vmatpush1.msra.mxu0 0.0
        %990 = vmatprep.subr.mxu0 0.0
        %991 = vmatpush1.msra.mxu0 0.0
        %992 = vmatprep.subr.mxu0 0.0
        %993 = vmatpush1.msra.mxu0 0.0
        %994 = vmatprep.subr.mxu0 0.0
        %995 = vmatpush1.msra.mxu0 0.0
        %996 = vmatprep.subr.mxu0 0.0
        %997 = vmatpush1.msra.mxu0 0.0
        %998 = vmatprep.subr.mxu0 0.0
        %999 = vmatpush1.msra.mxu0 0.0
        %1000 = vmatprep.subr.mxu0 0.0
        %1001 = vmatpush1.msra.mxu0 0.0
        %1002 = vmatprep.subr.mxu0 0.0
        %1003 = vmatpush1.msra.mxu0 0.0
        %1004 = vmatprep.subr.mxu0 0.0
        %1005 = vmatpush1.msra.mxu0 0.0
        %1006 = vmatprep.subr.mxu0 0.0
        %1007 = vmatpush1.msra.mxu0 0.0
        %1008 = vmatprep.subr.mxu0 0.0
        %1009 = vmatpush1.msra.mxu0 0.0
        %1010 = vmatprep.subr.mxu0 0.0
        %1011 = vmatpush1.msra.mxu0 0.0
        %1012 = vmatprep.subr.mxu0 0.0
        %1013 = vmatpush1.msra.mxu0 0.0
        %1014 = vmatprep.subr.mxu0 0.0
        %1015 = vmatpush1.msra.mxu0 0.0
        %1016 = vmatprep.subr.mxu0 0.0
        %1017 = vmatpush1.msra.mxu0 0.0
        %1018 = vmatprep.subr.mxu0 0.0
        %1019 = vmatpush1.msra.mxu0 0.0
        %1020 = vmatprep.subr.mxu0 0.0
        %1021 = vmatpush1.msra.mxu0 0.0
        %1022 = vmatprep.subr.mxu0 0.0
        %1023 = vmatpush1.msra.mxu0 0.0
        %1024 = vmatprep.subr.mxu0 0.0
        %1025 = vmatpush1.msra.mxu0 0.0
        %1026 = vmatprep.subr.mxu0 0.0
        %1027 = vmatpush1.msra.mxu0 0.0
        %1028 = vmatprep.subr.mxu0 0.0
        %1029 = vmatpush1.msra.mxu0 0.0
        %1030 = vmatprep.subr.mxu0 0.0
        %1031 = vmatpush1.msra.mxu0 0.0
        %1032 = vmatprep.subr.mxu0 0.0
        %1033 = vmatpush1.msra.mxu0 0.0
        %1034 = vmatprep.mubr.f32.mxu0 0.0
        %1035 = vmatmul.mubr.f32.gmra.mrb[0].mxu0 %v968
        %v1036 = vpop.f32.mrb[0].mxu0
        %v1037 = vadd.f32 0.0, %v1036
        %v1038 = vpop.f32.mrb[0].mxu0
        %1039 = vdwg.mxu0
        %1041 = vrot.lane.b32.xlu0 %v954, 96
        %v1042 = vpop.permute.xlu0 %1041
        %v1044 = vmul.f32 %v951, %v1042
        %v1046 = vsel %vm912, %v1044, 0
        %1048 = vmatprep.subr.mxu0 0.0
        %1049 = vmatpush1.msra.mxu0 %v957
        %1050 = vmatprep.subr.mxu0 0.0
        %1051 = vmatpush1.msra.mxu0 %v958
        %1052 = vmatprep.subr.mxu0 0.0
        %1053 = vmatpush1.msra.mxu0 %v959
        %1054 = vmatprep.subr.mxu0 0.0
        %1055 = vmatpush1.msra.mxu0 %v960
        %1056 = vmatprep.subr.mxu0 0.0
        %1057 = vmatpush1.msra.mxu0 0.0
        %1058 = vmatprep.subr.mxu0 0.0
        %1059 = vmatpush1.msra.mxu0 0.0
        %1060 = vmatprep.subr.mxu0 0.0
        %1061 = vmatpush1.msra.mxu0 0.0
        %1062 = vmatprep.subr.mxu0 0.0
        %1063 = vmatpush1.msra.mxu0 0.0
        %1064 = vmatprep.subr.mxu0 0.0
        %1065 = vmatpush1.msra.mxu0 0.0
        %1066 = vmatprep.subr.mxu0 0.0
        %1067 = vmatpush1.msra.mxu0 0.0
        %1068 = vmatprep.subr.mxu0 0.0
        %1069 = vmatpush1.msra.mxu0 0.0
        %1070 = vmatprep.subr.mxu0 0.0
        %1071 = vmatpush1.msra.mxu0 0.0
        %1072 = vmatprep.subr.mxu0 0.0
        %1073 = vmatpush1.msra.mxu0 0.0
        %1074 = vmatprep.subr.mxu0 0.0
        %1075 = vmatpush1.msra.mxu0 0.0
        %1076 = vmatprep.subr.mxu0 0.0
        %1077 = vmatpush1.msra.mxu0 0.0
        %1078 = vmatprep.subr.mxu0 0.0
        %1079 = vmatpush1.msra.mxu0 0.0
        %1080 = vmatprep.subr.mxu0 0.0
        %1081 = vmatpush1.msra.mxu0 0.0
        %1082 = vmatprep.subr.mxu0 0.0
        %1083 = vmatpush1.msra.mxu0 0.0
        %1084 = vmatprep.subr.mxu0 0.0
        %1085 = vmatpush1.msra.mxu0 0.0
        %1086 = vmatprep.subr.mxu0 0.0
        %1087 = vmatpush1.msra.mxu0 0.0
        %1088 = vmatprep.subr.mxu0 0.0
        %1089 = vmatpush1.msra.mxu0 0.0
        %1090 = vmatprep.subr.mxu0 0.0
        %1091 = vmatpush1.msra.mxu0 0.0
        %1092 = vmatprep.subr.mxu0 0.0
        %1093 = vmatpush1.msra.mxu0 0.0
        %1094 = vmatprep.subr.mxu0 0.0
        %1095 = vmatpush1.msra.mxu0 0.0
        %1096 = vmatprep.subr.mxu0 0.0
        %1097 = vmatpush1.msra.mxu0 0.0
        %1098 = vmatprep.subr.mxu0 0.0
        %1099 = vmatpush1.msra.mxu0 0.0
        %1100 = vmatprep.subr.mxu0 0.0
        %1101 = vmatpush1.msra.mxu0 0.0
        %1102 = vmatprep.subr.mxu0 0.0
        %1103 = vmatpush1.msra.mxu0 0.0
        %1104 = vmatprep.subr.mxu0 0.0
        %1105 = vmatpush1.msra.mxu0 0.0
        %1106 = vmatprep.subr.mxu0 0.0
        %1107 = vmatpush1.msra.mxu0 0.0
        %1108 = vmatprep.subr.mxu0 0.0
        %1109 = vmatpush1.msra.mxu0 0.0
        %1110 = vmatprep.subr.mxu0 0.0
        %1111 = vmatpush1.msra.mxu0 0.0
        %1112 = vmatprep.mubr.f32.mxu0 0.0
        %1113 = vmatmul.mubr.f32.gmra.mrb[0].mxu0 %v1046
        %v1114 = vpop.f32.mrb[0].mxu0
        %v1115 = vadd.f32 0.0, %v1114
        %v1116 = vpop.f32.mrb[0].mxu0
        %1117 = vdwg.mxu0
        %v1118 = vmax.f32 %v1037, %v1115
        %v1119 = vsub.f32 %v1037, %v1118
        %v1120 = vmul.f32 %v1119, 1.442695
        %v1121 = vpow.pop %v1120
        %v1122 = vsub.f32 %v1115, %v1118
        %v1123 = vmul.f32 %v1122, 1.442695
        %v1124 = vpow.pop %v1123
        %v1125 = vadd.f32 %v1121, %v1124
        %v1126 = vrcp.pop %v1125
        %v1127 = vmul.f32 1.0, %v1126
        %v1128 = vmul.f32 %v1121, %v1127
        %vm1129 = vcmask 31744
        %v1131 = vsel %vm1129, %v1128, 0
        %vm1133 = vcmask 1043456
        %v1135 = vsel %vm1133, %v961, 0
        %1137 = vmatprep.subr.mxu0 0.0
        %1138 = vmatpush1.msra.mxu0 %v1135
        %1139 = vmatprep.subr.mxu0 0.0
        %1140 = vmatpush1.msra.mxu0 0.0
        %1141 = vmatprep.subr.mxu0 0.0
        %1142 = vmatpush1.msra.mxu0 0.0
        %1143 = vmatprep.subr.mxu0 0.0
        %1144 = vmatpush1.msra.mxu0 0.0
        %1145 = vmatprep.subr.mxu0 0.0
        %1146 = vmatpush1.msra.mxu0 0.0
        %1147 = vmatprep.subr.mxu0 0.0
        %1148 = vmatpush1.msra.mxu0 0.0
        %1149 = vmatprep.subr.mxu0 0.0
        %1150 = vmatpush1.msra.mxu0 0.0
        %1151 = vmatprep.subr.mxu0 0.0
        %1152 = vmatpush1.msra.mxu0 0.0
        %1153 = vmatprep.subr.mxu0 0.0
        %1154 = vmatpush1.msra.mxu0 0.0
        %1155 = vmatprep.subr.mxu0 0.0
        %1156 = vmatpush1.msra.mxu0 0.0
        %1157 = vmatprep.subr.mxu0 0.0
        %1158 = vmatpush1.msra.mxu0 0.0
        %1159 = vmatprep.subr.mxu0 0.0
        %1160 = vmatpush1.msra.mxu0 0.0
        %1161 = vmatprep.subr.mxu0 0.0
        %1162 = vmatpush1.msra.mxu0 0.0
        %1163 = vmatprep.subr.mxu0 0.0
        %1164 = vmatpush1.msra.mxu0 0.0
        %1165 = vmatprep.subr.mxu0 0.0
        %1166 = vmatpush1.msra.mxu0 0.0
        %1167 = vmatprep.subr.mxu0 0.0
        %1168 = vmatpush1.msra.mxu0 0.0
        %1169 = vmatprep.subr.mxu0 0.0
        %1170 = vmatpush1.msra.mxu0 0.0
        %1171 = vmatprep.subr.mxu0 0.0
        %1172 = vmatpush1.msra.mxu0 0.0
        %1173 = vmatprep.subr.mxu0 0.0
        %1174 = vmatpush1.msra.mxu0 0.0
        %1175 = vmatprep.subr.mxu0 0.0
        %1176 = vmatpush1.msra.mxu0 0.0
        %1177 = vmatprep.subr.mxu0 0.0
        %1178 = vmatpush1.msra.mxu0 0.0
        %1179 = vmatprep.subr.mxu0 0.0
        %1180 = vmatpush1.msra.mxu0 0.0
        %1181 = vmatprep.subr.mxu0 0.0
        %1182 = vmatpush1.msra.mxu0 0.0
        %1183 = vmatprep.subr.mxu0 0.0
        %1184 = vmatpush1.msra.mxu0 0.0
        %1185 = vmatprep.subr.mxu0 0.0
        %1186 = vmatpush1.msra.mxu0 0.0
        %1187 = vmatprep.subr.mxu0 0.0
        %1188 = vmatpush1.msra.mxu0 0.0
        %1189 = vmatprep.subr.mxu0 0.0
        %1190 = vmatpush1.msra.mxu0 0.0
        %1191 = vmatprep.subr.mxu0 0.0
        %1192 = vmatpush1.msra.mxu0 0.0
        %1193 = vmatprep.subr.mxu0 0.0
        %1194 = vmatpush1.msra.mxu0 0.0
        %1195 = vmatprep.subr.mxu0 0.0
        %1196 = vmatpush1.msra.mxu0 0.0
        %1197 = vmatprep.subr.mxu0 0.0
        %1198 = vmatpush1.msra.mxu0 0.0
        %1199 = vmatprep.subr.mxu0 0.0
        %1200 = vmatpush1.msra.mxu0 0.0
        %1201 = vmatprep.mubr.f32.mxu0 0.0
        %1202 = vmatmul.mubr.f32.gmra.mrb[0].mxu0 %v1131
        %v1203 = vpop.f32.mrb[0].mxu0
        %v1204 = vadd.f32 0.0, %v1203
        %v1205 = vpop.f32.mrb[0].mxu0
        %1206 = vdwg.mxu0
        %1207 = vrot.lane.b32.xlu0 %v951, 64
        %v1208 = vpop.permute.xlu0 %1207
        %v1210 = vmul.f32 %v1204, %v1208
        %v1211 = vmul.f32 %v1124, %v1127
        %v1213 = vsel %vm1129, %v1211, 0
        %1215 = vmatprep.subr.mxu0 0.0
        %1216 = vmatpush1.msra.mxu0 %v1135
        %1217 = vmatprep.subr.mxu0 0.0
        %1218 = vmatpush1.msra.mxu0 0.0
        %1219 = vmatprep.subr.mxu0 0.0
        %1220 = vmatpush1.msra.mxu0 0.0
        %1221 = vmatprep.subr.mxu0 0.0
        %1222 = vmatpush1.msra.mxu0 0.0
        %1223 = vmatprep.subr.mxu0 0.0
        %1224 = vmatpush1.msra.mxu0 0.0
        %1225 = vmatprep.subr.mxu0 0.0
        %1226 = vmatpush1.msra.mxu0 0.0
        %1227 = vmatprep.subr.mxu0 0.0
        %1228 = vmatpush1.msra.mxu0 0.0
        %1229 = vmatprep.subr.mxu0 0.0
        %1230 = vmatpush1.msra.mxu0 0.0
        %1231 = vmatprep.subr.mxu0 0.0
        %1232 = vmatpush1.msra.mxu0 0.0
        %1233 = vmatprep.subr.mxu0 0.0
        %1234 = vmatpush1.msra.mxu0 0.0
        %1235 = vmatprep.subr.mxu0 0.0
        %1236 = vmatpush1.msra.mxu0 0.0
        %1237 = vmatprep.subr.mxu0 0.0
        %1238 = vmatpush1.msra.mxu0 0.0
        %1239 = vmatprep.subr.mxu0 0.0
        %1240 = vmatpush1.msra.mxu0 0.0
        %1241 = vmatprep.subr.mxu0 0.0
        %1242 = vmatpush1.msra.mxu0 0.0
        %1243 = vmatprep.subr.mxu0 0.0
        %1244 = vmatpush1.msra.mxu0 0.0
        %1245 = vmatprep.subr.mxu0 0.0
        %1246 = vmatpush1.msra.mxu0 0.0
        %1247 = vmatprep.subr.mxu0 0.0
        %1248 = vmatpush1.msra.mxu0 0.0
        %1249 = vmatprep.subr.mxu0 0.0
        %1250 = vmatpush1.msra.mxu0 0.0
        %1251 = vmatprep.subr.mxu0 0.0
        %1252 = vmatpush1.msra.mxu0 0.0
        %1253 = vmatprep.subr.mxu0 0.0
        %1254 = vmatpush1.msra.mxu0 0.0
        %1255 = vmatprep.subr.mxu0 0.0
        %1256 = vmatpush1.msra.mxu0 0.0
        %1257 = vmatprep.subr.mxu0 0.0
        %1258 = vmatpush1.msra.mxu0 0.0
        %1259 = vmatprep.subr.mxu0 0.0
        %1260 = vmatpush1.msra.mxu0 0.0
        %1261 = vmatprep.subr.mxu0 0.0
        %1262 = vmatpush1.msra.mxu0 0.0
        %1263 = vmatprep.subr.mxu0 0.0
        %1264 = vmatpush1.msra.mxu0 0.0
        %1265 = vmatprep.subr.mxu0 0.0
        %1266 = vmatpush1.msra.mxu0 0.0
        %1267 = vmatprep.subr.mxu0 0.0
        %1268 = vmatpush1.msra.mxu0 0.0
        %1269 = vmatprep.subr.mxu0 0.0
        %1270 = vmatpush1.msra.mxu0 0.0
        %1271 = vmatprep.subr.mxu0 0.0
        %1272 = vmatpush1.msra.mxu0 0.0
        %1273 = vmatprep.subr.mxu0 0.0
        %1274 = vmatpush1.msra.mxu0 0.0
        %1275 = vmatprep.subr.mxu0 0.0
        %1276 = vmatpush1.msra.mxu0 0.0
        %1277 = vmatprep.subr.mxu0 0.0
        %1278 = vmatpush1.msra.mxu0 0.0
        %1279 = vmatprep.mubr.f32.mxu0 0.0
        %1280 = vmatmul.mubr.f32.gmra.mrb[0].mxu0 %v1213
        %v1281 = vpop.f32.mrb[0].mxu0
        %v1282 = vadd.f32 0.0, %v1281
        %v1283 = vpop.f32.mrb[0].mxu0
        %1284 = vdwg.mxu0
        %1285 = vrot.lane.b32.xlu0 %v954, 64
        %v1286 = vpop.permute.xlu0 %1285
        %v1288 = vmul.f32 %v1282, %v1286
        %v1289 = vadd.f32 %v1210, %v1288
        %v1290 = vmul.f32 %v954, %v964
        %v1292 = vsel %vm912, %v1290, 0
        %1294 = vmatprep.subr.mxu0 0.0
        %1295 = vmatpush1.msra.mxu0 %v957
        %1296 = vmatprep.subr.mxu0 0.0
        %1297 = vmatpush1.msra.mxu0 %v958
        %1298 = vmatprep.subr.mxu0 0.0
        %1299 = vmatpush1.msra.mxu0 %v959
        %1300 = vmatprep.subr.mxu0 0.0
        %1301 = vmatpush1.msra.mxu0 %v960
        %1302 = vmatprep.subr.mxu0 0.0
        %1303 = vmatpush1.msra.mxu0 0.0
        %1304 = vmatprep.subr.mxu0 0.0
        %1305 = vmatpush1.msra.mxu0 0.0
        %1306 = vmatprep.subr.mxu0 0.0
        %1307 = vmatpush1.msra.mxu0 0.0
        %1308 = vmatprep.subr.mxu0 0.0
        %1309 = vmatpush1.msra.mxu0 0.0
        %1310 = vmatprep.subr.mxu0 0.0
        %1311 = vmatpush1.msra.mxu0 0.0
        %1312 = vmatprep.subr.mxu0 0.0
        %1313 = vmatpush1.msra.mxu0 0.0
        %1314 = vmatprep.subr.mxu0 0.0
        %1315 = vmatpush1.msra.mxu0 0.0
        %1316 = vmatprep.subr.mxu0 0.0
        %1317 = vmatpush1.msra.mxu0 0.0
        %1318 = vmatprep.subr.mxu0 0.0
        %1319 = vmatpush1.msra.mxu0 0.0
        %1320 = vmatprep.subr.mxu0 0.0
        %1321 = vmatpush1.msra.mxu0 0.0
        %1322 = vmatprep.subr.mxu0 0.0
        %1323 = vmatpush1.msra.mxu0 0.0
        %1324 = vmatprep.subr.mxu0 0.0
        %1325 = vmatpush1.msra.mxu0 0.0
        %1326 = vmatprep.subr.mxu0 0.0
        %1327 = vmatpush1.msra.mxu0 0.0
        %1328 = vmatprep.subr.mxu0 0.0
        %1329 = vmatpush1.msra.mxu0 0.0
        %1330 = vmatprep.subr.mxu0 0.0
        %1331 = vmatpush1.msra.mxu0 0.0
        %1332 = vmatprep.subr.mxu0 0.0
        %1333 = vmatpush1.msra.mxu0 0.0
        %1334 = vmatprep.subr.mxu0 0.0
        %1335 = vmatpush1.msra.mxu0 0.0
        %1336 = vmatprep.subr.mxu0 0.0
        %1337 = vmatpush1.msra.mxu0 0.0
        %1338 = vmatprep.subr.mxu0 0.0
        %1339 = vmatpush1.msra.mxu0 0.0
        %1340 = vmatprep.subr.mxu0 0.0
        %1341 = vmatpush1.msra.mxu0 0.0
        %1342 = vmatprep.subr.mxu0 0.0
        %1343 = vmatpush1.msra.mxu0 0.0
        %1344 = vmatprep.subr.mxu0 0.0
        %1345 = vmatpush1.msra.mxu0 0.0
        %1346 = vmatprep.subr.mxu0 0.0
        %1347 = vmatpush1.msra.mxu0 0.0
        %1348 = vmatprep.subr.mxu0 0.0
        %1349 = vmatpush1.msra.mxu0 0.0
        %1350 = vmatprep.subr.mxu0 0.0
        %1351 = vmatpush1.msra.mxu0 0.0
        %1352 = vmatprep.subr.mxu0 0.0
        %1353 = vmatpush1.msra.mxu0 0.0
        %1354 = vmatprep.subr.mxu0 0.0
        %1355 = vmatpush1.msra.mxu0 0.0
        %1356 = vmatprep.subr.mxu0 0.0
        %1357 = vmatpush1.msra.mxu0 0.0
        %1358 = vmatprep.mubr.f32.mxu0 0.0
        %1359 = vmatmul.mubr.f32.gmra.mrb[0].mxu0 %v1292
        %v1360 = vpop.f32.mrb[0].mxu0
        %v1361 = vadd.f32 0.0, %v1360
        %v1362 = vpop.f32.mrb[0].mxu0
        %1363 = vdwg.mxu0
        %v1364 = vmul.f32 %v954, %v1042
        %v1366 = vsel %vm912, %v1364, 0
        %1368 = vmatprep.subr.mxu0 0.0
        %1369 = vmatpush1.msra.mxu0 %v957
        %1370 = vmatprep.subr.mxu0 0.0
        %1371 = vmatpush1.msra.mxu0 %v958
        %1372 = vmatprep.subr.mxu0 0.0
        %1373 = vmatpush1.msra.mxu0 %v959
        %1374 = vmatprep.subr.mxu0 0.0
        %1375 = vmatpush1.msra.mxu0 %v960
        %1376 = vmatprep.subr.mxu0 0.0
        %1377 = vmatpush1.msra.mxu0 0.0
        %1378 = vmatprep.subr.mxu0 0.0
        %1379 = vmatpush1.msra.mxu0 0.0
        %1380 = vmatprep.subr.mxu0 0.0
        %1381 = vmatpush1.msra.mxu0 0.0
        %1382 = vmatprep.subr.mxu0 0.0
        %1383 = vmatpush1.msra.mxu0 0.0
        %1384 = vmatprep.subr.mxu0 0.0
        %1385 = vmatpush1.msra.mxu0 0.0
        %1386 = vmatprep.subr.mxu0 0.0
        %1387 = vmatpush1.msra.mxu0 0.0
        %1388 = vmatprep.subr.mxu0 0.0
        %1389 = vmatpush1.msra.mxu0 0.0
        %1390 = vmatprep.subr.mxu0 0.0
        %1391 = vmatpush1.msra.mxu0 0.0
        %1392 = vmatprep.subr.mxu0 0.0
        %1393 = vmatpush1.msra.mxu0 0.0
        %1394 = vmatprep.subr.mxu0 0.0
        %1395 = vmatpush1.msra.mxu0 0.0
        %1396 = vmatprep.subr.mxu0 0.0
        %1397 = vmatpush1.msra.mxu0 0.0
        %1398 = vmatprep.subr.mxu0 0.0
        %1399 = vmatpush1.msra.mxu0 0.0
        %1400 = vmatprep.subr.mxu0 0.0
        %1401 = vmatpush1.msra.mxu0 0.0
        %1402 = vmatprep.subr.mxu0 0.0
        %1403 = vmatpush1.msra.mxu0 0.0
        %1404 = vmatprep.subr.mxu0 0.0
        %1405 = vmatpush1.msra.mxu0 0.0
        %1406 = vmatprep.subr.mxu0 0.0
        %1407 = vmatpush1.msra.mxu0 0.0
        %1408 = vmatprep.subr.mxu0 0.0
        %1409 = vmatpush1.msra.mxu0 0.0
        %1410 = vmatprep.subr.mxu0 0.0
        %1411 = vmatpush1.msra.mxu0 0.0
        %1412 = vmatprep.subr.mxu0 0.0
        %1413 = vmatpush1.msra.mxu0 0.0
        %1414 = vmatprep.subr.mxu0 0.0
        %1415 = vmatpush1.msra.mxu0 0.0
        %1416 = vmatprep.subr.mxu0 0.0
        %1417 = vmatpush1.msra.mxu0 0.0
        %1418 = vmatprep.subr.mxu0 0.0
        %1419 = vmatpush1.msra.mxu0 0.0
        %1420 = vmatprep.subr.mxu0 0.0
        %1421 = vmatpush1.msra.mxu0 0.0
        %1422 = vmatprep.subr.mxu0 0.0
        %1423 = vmatpush1.msra.mxu0 0.0
        %1424 = vmatprep.subr.mxu0 0.0
        %1425 = vmatpush1.msra.mxu0 0.0
        %1426 = vmatprep.subr.mxu0 0.0
        %1427 = vmatpush1.msra.mxu0 0.0
        %1428 = vmatprep.subr.mxu0 0.0
        %1429 = vmatpush1.msra.mxu0 0.0
        %1430 = vmatprep.subr.mxu0 0.0
        %1431 = vmatpush1.msra.mxu0 0.0
        %1432 = vmatprep.mubr.f32.mxu0 0.0
        %1433 = vmatmul.mubr.f32.gmra.mrb[0].mxu0 %v1366
        %v1434 = vpop.f32.mrb[0].mxu0
        %v1435 = vadd.f32 0.0, %v1434
        %v1436 = vpop.f32.mrb[0].mxu0
        %1437 = vdwg.mxu0
        %v1438 = vmax.f32 %v1361, %v1435
        %v1439 = vsub.f32 %v1361, %v1438
        %v1440 = vmul.f32 %v1439, 1.442695
        %v1441 = vpow.pop %v1440
        %v1442 = vsub.f32 %v1435, %v1438
        %v1443 = vmul.f32 %v1442, 1.442695
        %v1444 = vpow.pop %v1443
        %v1445 = vadd.f32 %v1441, %v1444
        %v1446 = vrcp.pop %v1445
        %v1447 = vmul.f32 1.0, %v1446
        %v1448 = vmul.f32 %v1441, %v1447
        %v1450 = vsel %vm1129, %v1448, 0
        %1452 = vmatprep.subr.mxu0 0.0
        %1453 = vmatpush1.msra.mxu0 %v1135
        %1454 = vmatprep.subr.mxu0 0.0
        %1455 = vmatpush1.msra.mxu0 0.0
        %1456 = vmatprep.subr.mxu0 0.0
        %1457 = vmatpush1.msra.mxu0 0.0
        %1458 = vmatprep.subr.mxu0 0.0
        %1459 = vmatpush1.msra.mxu0 0.0
        %1460 = vmatprep.subr.mxu0 0.0
        %1461 = vmatpush1.msra.mxu0 0.0
        %1462 = vmatprep.subr.mxu0 0.0
        %1463 = vmatpush1.msra.mxu0 0.0
        %1464 = vmatprep.subr.mxu0 0.0
        %1465 = vmatpush1.msra.mxu0 0.0
        %1466 = vmatprep.subr.mxu0 0.0
        %1467 = vmatpush1.msra.mxu0 0.0
        %1468 = vmatprep.subr.mxu0 0.0
        %1469 = vmatpush1.msra.mxu0 0.0
        %1470 = vmatprep.subr.mxu0 0.0
        %1471 = vmatpush1.msra.mxu0 0.0
        %1472 = vmatprep.subr.mxu0 0.0
        %1473 = vmatpush1.msra.mxu0 0.0
        %1474 = vmatprep.subr.mxu0 0.0
        %1475 = vmatpush1.msra.mxu0 0.0
        %1476 = vmatprep.subr.mxu0 0.0
        %1477 = vmatpush1.msra.mxu0 0.0
        %1478 = vmatprep.subr.mxu0 0.0
        %1479 = vmatpush1.msra.mxu0 0.0
        %1480 = vmatprep.subr.mxu0 0.0
        %1481 = vmatpush1.msra.mxu0 0.0
        %1482 = vmatprep.subr.mxu0 0.0
        %1483 = vmatpush1.msra.mxu0 0.0
        %1484 = vmatprep.subr.mxu0 0.0
        %1485 = vmatpush1.msra.mxu0 0.0
        %1486 = vmatprep.subr.mxu0 0.0
        %1487 = vmatpush1.msra.mxu0 0.0
        %1488 = vmatprep.subr.mxu0 0.0
        %1489 = vmatpush1.msra.mxu0 0.0
        %1490 = vmatprep.subr.mxu0 0.0
        %1491 = vmatpush1.msra.mxu0 0.0
        %1492 = vmatprep.subr.mxu0 0.0
        %1493 = vmatpush1.msra.mxu0 0.0
        %1494 = vmatprep.subr.mxu0 0.0
        %1495 = vmatpush1.msra.mxu0 0.0
        %1496 = vmatprep.subr.mxu0 0.0
        %1497 = vmatpush1.msra.mxu0 0.0
        %1498 = vmatprep.subr.mxu0 0.0
        %1499 = vmatpush1.msra.mxu0 0.0
        %1500 = vmatprep.subr.mxu0 0.0
        %1501 = vmatpush1.msra.mxu0 0.0
        %1502 = vmatprep.subr.mxu0 0.0
        %1503 = vmatpush1.msra.mxu0 0.0
        %1504 = vmatprep.subr.mxu0 0.0
        %1505 = vmatpush1.msra.mxu0 0.0
        %1506 = vmatprep.subr.mxu0 0.0
        %1507 = vmatpush1.msra.mxu0 0.0
        %1508 = vmatprep.subr.mxu0 0.0
        %1509 = vmatpush1.msra.mxu0 0.0
        %1510 = vmatprep.subr.mxu0 0.0
        %1511 = vmatpush1.msra.mxu0 0.0
        %1512 = vmatprep.subr.mxu0 0.0
        %1513 = vmatpush1.msra.mxu0 0.0
        %1514 = vmatprep.subr.mxu0 0.0
        %1515 = vmatpush1.msra.mxu0 0.0
        %1516 = vmatprep.mubr.f32.mxu0 0.0
        %1517 = vmatmul.mubr.f32.gmra.mrb[0].mxu0 %v1450
        %v1518 = vpop.f32.mrb[0].mxu0
        %v1519 = vadd.f32 0.0, %v1518
        %v1520 = vpop.f32.mrb[0].mxu0
        %1521 = vdwg.mxu0
        %v1522 = vmul.f32 %v1519, %v1208
        %v1523 = vmul.f32 %v1444, %v1447
        %v1525 = vsel %vm1129, %v1523, 0
        %1527 = vmatprep.subr.mxu0 0.0
        %1528 = vmatpush1.msra.mxu0 %v1135
        %1529 = vmatprep.subr.mxu0 0.0
        %1530 = vmatpush1.msra.mxu0 0.0
        %1531 = vmatprep.subr.mxu0 0.0
        %1532 = vmatpush1.msra.mxu0 0.0
        %1533 = vmatprep.subr.mxu0 0.0
        %1534 = vmatpush1.msra.mxu0 0.0
        %1535 = vmatprep.subr.mxu0 0.0
        %1536 = vmatpush1.msra.mxu0 0.0
        %1537 = vmatprep.subr.mxu0 0.0
        %1538 = vmatpush1.msra.mxu0 0.0
        %1539 = vmatprep.subr.mxu0 0.0
        %1540 = vmatpush1.msra.mxu0 0.0
        %1541 = vmatprep.subr.mxu0 0.0
        %1542 = vmatpush1.msra.mxu0 0.0
        %1543 = vmatprep.subr.mxu0 0.0
        %1544 = vmatpush1.msra.mxu0 0.0
        %1545 = vmatprep.subr.mxu0 0.0
        %1546 = vmatpush1.msra.mxu0 0.0
        %1547 = vmatprep.subr.mxu0 0.0
        %1548 = vmatpush1.msra.mxu0 0.0
        %1549 = vmatprep.subr.mxu0 0.0
        %1550 = vmatpush1.msra.mxu0 0.0
        %1551 = vmatprep.subr.mxu0 0.0
        %1552 = vmatpush1.msra.mxu0 0.0
        %1553 = vmatprep.subr.mxu0 0.0
        %1554 = vmatpush1.msra.mxu0 0.0
        %1555 = vmatprep.subr.mxu0 0.0
        %1556 = vmatpush1.msra.mxu0 0.0
        %1557 = vmatprep.subr.mxu0 0.0
        %1558 = vmatpush1.msra.mxu0 0.0
        %1559 = vmatprep.subr.mxu0 0.0
        %1560 = vmatpush1.msra.mxu0 0.0
        %1561 = vmatprep.subr.mxu0 0.0
        %1562 = vmatpush1.msra.mxu0 0.0
        %1563 = vmatprep.subr.mxu0 0.0
        %1564 = vmatpush1.msra.mxu0 0.0
        %1565 = vmatprep.subr.mxu0 0.0
        %1566 = vmatpush1.msra.mxu0 0.0
        %1567 = vmatprep.subr.mxu0 0.0
        %1568 = vmatpush1.msra.mxu0 0.0
        %1569 = vmatprep.subr.mxu0 0.0
        %1570 = vmatpush1.msra.mxu0 0.0
        %1571 = vmatprep.subr.mxu0 0.0
        %1572 = vmatpush1.msra.mxu0 0.0
        %1573 = vmatprep.subr.mxu0 0.0
        %1574 = vmatpush1.msra.mxu0 0.0
        %1575 = vmatprep.subr.mxu0 0.0
        %1576 = vmatpush1.msra.mxu0 0.0
        %1577 = vmatprep.subr.mxu0 0.0
        %1578 = vmatpush1.msra.mxu0 0.0
        %1579 = vmatprep.subr.mxu0 0.0
        %1580 = vmatpush1.msra.mxu0 0.0
        %1581 = vmatprep.subr.mxu0 0.0
        %1582 = vmatpush1.msra.mxu0 0.0
        %1583 = vmatprep.subr.mxu0 0.0
        %1584 = vmatpush1.msra.mxu0 0.0
        %1585 = vmatprep.subr.mxu0 0.0
        %1586 = vmatpush1.msra.mxu0 0.0
        %1587 = vmatprep.subr.mxu0 0.0
        %1588 = vmatpush1.msra.mxu0 0.0
        %1589 = vmatprep.subr.mxu0 0.0
        %1590 = vmatpush1.msra.mxu0 0.0
        %1591 = vmatprep.mubr.f32.mxu0 0.0
        %1592 = vmatmul.mubr.f32.gmra.mrb[0].mxu0 %v1525
        %v1593 = vpop.f32.mrb[0].mxu0
        %v1594 = vadd.f32 0.0, %v1593
        %v1595 = vpop.f32.mrb[0].mxu0
        %1596 = vdwg.mxu0
        %v1597 = vmul.f32 %v1594, %v1286
        %v1598 = vadd.f32 %v1522, %v1597
        %v1599 = vpack.c.bf16 %v1598, %v1289
        %v1600 = vld [vmem:[%s757] sm:$0xf]
        %v1601 = vld [vmem:[%s757 + $0x4] sm:$0xf]
        %v1602 = vld [vmem:[%s757 + $0x8] sm:$0xf]
        %v1603 = vld [vmem:[%s757 + $0xc] sm:$0xf]
        %v1604 = vld [vmem:[%s760] sm:$0x1]
        %v1606 = vlaneseq
        %v1607 = vshrl.u32 %v1606, 7
        %v1608 = vsub.s32 0, %v1607
        %v1609 = vrot.slane %v1604, %v1608
        %v1615 = vunpack.c.l.b16 %v1600
        %v1616 = vunpack.c.l.b16 %v1601
        %v1617 = vunpack.c.l.b16 %v1602
        %v1618 = vunpack.c.l.b16 %v1603
        %v1619 = vpack.c.b16 %v1616, %v1615
        %v1620 = vpack.c.b16 %v1618, %v1617
        %v1624 = vsel %vm912, %v1599, 0
        %1626 = vmatprep.subr.bf16.mxu0 0
        %1627 = vmatpush1.bf16.msra.mxu0 %v1619
        %1628 = vmatprep.subr.bf16.mxu0 0
        %1629 = vmatpush1.bf16.msra.mxu0 %v1620
        %1630 = vmatprep.subr.bf16.mxu0 0
        %1631 = vmatpush1.bf16.msra.mxu0 0
        %1632 = vmatprep.subr.bf16.mxu0 0
        %1633 = vmatpush1.bf16.msra.mxu0 0
        %1634 = vmatprep.subr.bf16.mxu0 0
        %1635 = vmatpush1.bf16.msra.mxu0 0
        %1636 = vmatprep.subr.bf16.mxu0 0
        %1637 = vmatpush1.bf16.msra.mxu0 0
        %1638 = vmatprep.subr.bf16.mxu0 0
        %1639 = vmatpush1.bf16.msra.mxu0 0
        %1640 = vmatprep.subr.bf16.mxu0 0
        %1641 = vmatpush1.bf16.msra.mxu0 0
        %1642 = vmatprep.subr.bf16.mxu0 0
        %1643 = vmatpush1.bf16.msra.mxu0 0
        %1644 = vmatprep.subr.bf16.mxu0 0
        %1645 = vmatpush1.bf16.msra.mxu0 0
        %1646 = vmatprep.subr.bf16.mxu0 0
        %1647 = vmatpush1.bf16.msra.mxu0 0
        %1648 = vmatprep.subr.bf16.mxu0 0
        %1649 = vmatpush1.bf16.msra.mxu0 0
        %1650 = vmatprep.subr.bf16.mxu0 0
        %1651 = vmatpush1.bf16.msra.mxu0 0
        %1652 = vmatprep.subr.bf16.mxu0 0
        %1653 = vmatpush1.bf16.msra.mxu0 0
        %1654 = vmatprep.subr.bf16.mxu0 0
        %1655 = vmatpush1.bf16.msra.mxu0 0
        %1656 = vmatprep.subr.bf16.mxu0 0
        %1657 = vmatpush1.bf16.msra.mxu0 0
        %1658 = vmatprep.mubr.bf16.mxu0 0
        %1659 = vmatmul.mubr.bf16.gmra.mrb[0].mxu0 %v1624
        %v1660 = vpop.f32.mrb[0].mxu0
        %v1661 = vadd.f32 %v1609, %v1660
        %v1662 = vpop.f32.mrb[0].mxu0
        %v1663 = vpop.f32.mrb[0].mxu0
        %v1664 = vadd.f32 %v1609, %v1663
        %v1665 = vpop.f32.mrb[0].mxu0
        %1666 = vdwg.mxu0
        %v1667 = vadd.f32 %v886, %v1661
        %v1668 = vadd.f32 %v887, %v1664
        %v1669 = vld [vmem:[%s763] sm:$0x1]
        %v1670 = vld [vmem:[%s766] sm:$0x1]
        %v1671 = vsel %vm912, %v1667, 0.0
        %1672 = vadd.xlane.f32.xlu0 %v1671
        %v1673 = vpop.xlane.xlu0 %1672
        %v1674 = vsel %vm912, %v1668, 0.0
        %1675 = vadd.xlane.f32.xlu0 %v1674
        %v1676 = vpop.xlane.xlu0 %1675
        %v1677 = vrcp.pop 32.0
        %v1678 = vmul.f32 %v1673, %v1677
        %v1679 = vmul.f32 %v1676, %v1677
        %v1680 = vsub.f32 %v1667, %v1678
        %v1681 = vsub.f32 %v1668, %v1679
        %v1682 = vmul.f32 %v1680, %v1680
        %v1683 = vmul.f32 %v1681, %v1681
        %v1684 = vsel %vm912, %v1682, 0.0
        %1685 = vadd.xlane.f32.xlu0 %v1684
        %v1686 = vpop.xlane.xlu0 %1685
        %v1687 = vsel %vm912, %v1683, 0.0
        %1688 = vadd.xlane.f32.xlu0 %v1687
        %v1689 = vpop.xlane.xlu0 %1688
        %v1690 = vmul.f32 %v1686, %v1677
        %v1691 = vmul.f32 %v1689, %v1677
        %v1692 = vadd.f32 %v1690, 1e-05
        %v1693 = vadd.f32 %v1691, 1e-05
        %v1694 = vrsqrt.pop %v1692
        %v1695 = vrsqrt.pop %v1693
        %v1696 = vmul.f32 %v1680, %v1694
        %v1697 = vmul.f32 %v1681, %v1695
        %v1699 = vlaneseq
        %v1700 = vshrl.u32 %v1699, 7
        %v1701 = vsub.s32 0, %v1700
        %v1702 = vrot.slane %v1669, %v1701
        %v1704 = vmul.f32 %v1696, %v1702
        %v1705 = vmul.f32 %v1697, %v1702
        %v1707 = vlaneseq
        %v1708 = vshrl.u32 %v1707, 7
        %v1709 = vsub.s32 0, %v1708
        %v1710 = vrot.slane %v1670, %v1709
        %v1712 = vadd.f32 %v1704, %v1710
        %v1713 = vadd.f32 %v1705, %v1710
        %v1714 = vpack.c.bf16 %v1713, %v1712
        %v1715 = vld [vmem:[%s771] sm:$0xff]
        %v1716 = vld [vmem:[%s771 + $0x8] sm:$0xff]
        %v1717 = vld [vmem:[%s771 + $0x10] sm:$0xff]
        %v1718 = vld [vmem:[%s771 + $0x18] sm:$0xff]
        %v1719 = vld [vmem:[%s771 + $0x20] sm:$0xff]
        %v1720 = vld [vmem:[%s771 + $0x28] sm:$0xff]
        %v1721 = vld [vmem:[%s771 + $0x30] sm:$0xff]
        %v1722 = vld [vmem:[%s771 + $0x38] sm:$0xff]
        %v1723 = vld [vmem:[%s771 + $0x40] sm:$0xff]
        %v1724 = vld [vmem:[%s771 + $0x48] sm:$0xff]
        %v1725 = vld [vmem:[%s771 + $0x50] sm:$0xff]
        %v1726 = vld [vmem:[%s771 + $0x58] sm:$0xff]
        %v1727 = vld [vmem:[%s771 + $0x60] sm:$0xff]
        %v1728 = vld [vmem:[%s771 + $0x68] sm:$0xff]
        %v1729 = vld [vmem:[%s771 + $0x70] sm:$0xff]
        %v1730 = vld [vmem:[%s771 + $0x78] sm:$0xff]
        %v1731 = vld [vmem:[%s771 + $0x80] sm:$0xff]
        %v1732 = vld [vmem:[%s771 + $0x88] sm:$0xff]
        %v1733 = vld [vmem:[%s771 + $0x90] sm:$0xff]
        %v1734 = vld [vmem:[%s771 + $0x98] sm:$0xff]
        %v1735 = vld [vmem:[%s771 + $0xa0] sm:$0xff]
        %v1736 = vld [vmem:[%s771 + $0xa8] sm:$0xff]
        %v1737 = vld [vmem:[%s771 + $0xb0] sm:$0xff]
        %v1738 = vld [vmem:[%s771 + $0xb8] sm:$0xff]
        %v1739 = vld [vmem:[%s771 + $0xc0] sm:$0xff]
        %v1740 = vld [vmem:[%s771 + $0xc8] sm:$0xff]
        %v1741 = vld [vmem:[%s771 + $0xd0] sm:$0xff]
        %v1742 = vld [vmem:[%s771 + $0xd8] sm:$0xff]
        %v1743 = vld [vmem:[%s771 + $0xe0] sm:$0xff]
        %v1744 = vld [vmem:[%s771 + $0xe8] sm:$0xff]
        %v1745 = vld [vmem:[%s771 + $0xf0] sm:$0xff]
        %v1746 = vld [vmem:[%s771 + $0xf8] sm:$0xff]
        %v1747 = vld [vmem:[%s775] sm:$0xff]
        %v1748 = vld [vmem:[%s775 + $0x8] sm:$0xff]
        %v1751 = vlaneseq
        %v1752 = vshrl.u32 %v1751, 7
        %v1753 = vsub.s32 0, %v1752
        %v1754 = vrot.slane %v1747, %v1753
        %v1755 = vlaneseq
        %v1756 = vshrl.u32 %v1755, 7
        %v1757 = vsub.s32 1, %v1756
        %v1758 = vrot.slane %v1747, %v1757
        %v1759 = vlaneseq
        %v1760 = vshrl.u32 %v1759, 7
        %v1761 = vsub.s32 2, %v1760
        %v1762 = vrot.slane %v1747, %v1761
        %v1763 = vlaneseq
        %v1764 = vshrl.u32 %v1763, 7
        %v1765 = vsub.s32 3, %v1764
        %v1766 = vrot.slane %v1747, %v1765
        %v1767 = vlaneseq
        %v1768 = vshrl.u32 %v1767, 7
        %v1769 = vsub.s32 4, %v1768
        %v1770 = vrot.slane %v1747, %v1769
        %v1771 = vlaneseq
        %v1772 = vshrl.u32 %v1771, 7
        %v1773 = vsub.s32 5, %v1772
        %v1774 = vrot.slane %v1747, %v1773
        %v1775 = vlaneseq
        %v1776 = vshrl.u32 %v1775, 7
        %v1777 = vsub.s32 6, %v1776
        %v1778 = vrot.slane %v1747, %v1777
        %v1779 = vlaneseq
        %v1780 = vshrl.u32 %v1779, 7
        %v1781 = vsub.s32 7, %v1780
        %v1782 = vrot.slane %v1747, %v1781
        %v1783 = vlaneseq
        %v1784 = vshrl.u32 %v1783, 7
        %v1785 = vsub.s32 0, %v1784
        %v1786 = vrot.slane %v1748, %v1785
        %v1787 = vlaneseq
        %v1788 = vshrl.u32 %v1787, 7
        %v1789 = vsub.s32 1, %v1788
        %v1790 = vrot.slane %v1748, %v1789
        %v1791 = vlaneseq
        %v1792 = vshrl.u32 %v1791, 7
        %v1793 = vsub.s32 2, %v1792
        %v1794 = vrot.slane %v1748, %v1793
        %v1795 = vlaneseq
        %v1796 = vshrl.u32 %v1795, 7
        %v1797 = vsub.s32 3, %v1796
        %v1798 = vrot.slane %v1748, %v1797
        %v1799 = vlaneseq
        %v1800 = vshrl.u32 %v1799, 7
        %v1801 = vsub.s32 4, %v1800
        %v1802 = vrot.slane %v1748, %v1801
        %v1803 = vlaneseq
        %v1804 = vshrl.u32 %v1803, 7
        %v1805 = vsub.s32 5, %v1804
        %v1806 = vrot.slane %v1748, %v1805
        %v1807 = vlaneseq
        %v1808 = vshrl.u32 %v1807, 7
        %v1809 = vsub.s32 6, %v1808
        %v1810 = vrot.slane %v1748, %v1809
        %v1811 = vlaneseq
        %v1812 = vshrl.u32 %v1811, 7
        %v1813 = vsub.s32 7, %v1812
        %v1814 = vrot.slane %v1748, %v1813
        %v1863 = vunpack.c.l.b16 %v1715
        %v1864 = vunpack.c.h.b16 %v1715
        %v1865 = vunpack.c.l.b16 %v1716
        %v1866 = vunpack.c.h.b16 %v1716
        %v1867 = vunpack.c.l.b16 %v1717
        %v1868 = vunpack.c.h.b16 %v1717
        %v1869 = vunpack.c.l.b16 %v1718
        %v1870 = vunpack.c.h.b16 %v1718
        %v1871 = vunpack.c.l.b16 %v1719
        %v1872 = vunpack.c.h.b16 %v1719
        %v1873 = vunpack.c.l.b16 %v1720
        %v1874 = vunpack.c.h.b16 %v1720
        %v1875 = vunpack.c.l.b16 %v1721
        %v1876 = vunpack.c.h.b16 %v1721
        %v1877 = vunpack.c.l.b16 %v1722
        %v1878 = vunpack.c.h.b16 %v1722
        %v1879 = vunpack.c.l.b16 %v1723
        %v1880 = vunpack.c.h.b16 %v1723
        %v1881 = vunpack.c.l.b16 %v1724
        %v1882 = vunpack.c.h.b16 %v1724
        %v1883 = vunpack.c.l.b16 %v1725
        %v1884 = vunpack.c.h.b16 %v1725
        %v1885 = vunpack.c.l.b16 %v1726
        %v1886 = vunpack.c.h.b16 %v1726
        %v1887 = vunpack.c.l.b16 %v1727
        %v1888 = vunpack.c.h.b16 %v1727
        %v1889 = vunpack.c.l.b16 %v1728
        %v1890 = vunpack.c.h.b16 %v1728
        %v1891 = vunpack.c.l.b16 %v1729
        %v1892 = vunpack.c.h.b16 %v1729
        %v1893 = vunpack.c.l.b16 %v1730
        %v1894 = vunpack.c.h.b16 %v1730
        %v1895 = vunpack.c.l.b16 %v1731
        %v1896 = vunpack.c.h.b16 %v1731
        %v1897 = vunpack.c.l.b16 %v1732
        %v1898 = vunpack.c.h.b16 %v1732
        %v1899 = vunpack.c.l.b16 %v1733
        %v1900 = vunpack.c.h.b16 %v1733
        %v1901 = vunpack.c.l.b16 %v1734
        %v1902 = vunpack.c.h.b16 %v1734
        %v1903 = vunpack.c.l.b16 %v1735
        %v1904 = vunpack.c.h.b16 %v1735
        %v1905 = vunpack.c.l.b16 %v1736
        %v1906 = vunpack.c.h.b16 %v1736
        %v1907 = vunpack.c.l.b16 %v1737
        %v1908 = vunpack.c.h.b16 %v1737
        %v1909 = vunpack.c.l.b16 %v1738
        %v1910 = vunpack.c.h.b16 %v1738
        %v1911 = vunpack.c.l.b16 %v1739
        %v1912 = vunpack.c.h.b16 %v1739
        %v1913 = vunpack.c.l.b16 %v1740
        %v1914 = vunpack.c.h.b16 %v1740
        %v1915 = vunpack.c.l.b16 %v1741
        %v1916 = vunpack.c.h.b16 %v1741
        %v1917 = vunpack.c.l.b16 %v1742
        %v1918 = vunpack.c.h.b16 %v1742
        %v1919 = vunpack.c.l.b16 %v1743
        %v1920 = vunpack.c.h.b16 %v1743
        %v1921 = vunpack.c.l.b16 %v1744
        %v1922 = vunpack.c.h.b16 %v1744
        %v1923 = vunpack.c.l.b16 %v1745
        %v1924 = vunpack.c.h.b16 %v1745
        %v1925 = vunpack.c.l.b16 %v1746
        %v1926 = vunpack.c.h.b16 %v1746
        %v1927 = vpack.c.b16 %v1879, %v1863
        %v1928 = vpack.c.b16 %v1880, %v1864
        %v1929 = vpack.c.b16 %v1881, %v1865
        %v1930 = vpack.c.b16 %v1882, %v1866
        %v1931 = vpack.c.b16 %v1883, %v1867
        %v1932 = vpack.c.b16 %v1884, %v1868
        %v1933 = vpack.c.b16 %v1885, %v1869
        %v1934 = vpack.c.b16 %v1886, %v1870
        %v1935 = vpack.c.b16 %v1887, %v1871
        %v1936 = vpack.c.b16 %v1888, %v1872
        %v1937 = vpack.c.b16 %v1889, %v1873
        %v1938 = vpack.c.b16 %v1890, %v1874
        %v1939 = vpack.c.b16 %v1891, %v1875
        %v1940 = vpack.c.b16 %v1892, %v1876
        %v1941 = vpack.c.b16 %v1893, %v1877
        %v1942 = vpack.c.b16 %v1894, %v1878
        %v1943 = vpack.c.b16 %v1911, %v1895
        %v1944 = vpack.c.b16 %v1912, %v1896
        %v1945 = vpack.c.b16 %v1913, %v1897
        %v1946 = vpack.c.b16 %v1914, %v1898
        %v1947 = vpack.c.b16 %v1915, %v1899
        %v1948 = vpack.c.b16 %v1916, %v1900
        %v1949 = vpack.c.b16 %v1917, %v1901
        %v1950 = vpack.c.b16 %v1918, %v1902
        %v1951 = vpack.c.b16 %v1919, %v1903
        %v1952 = vpack.c.b16 %v1920, %v1904
        %v1953 = vpack.c.b16 %v1921, %v1905
        %v1954 = vpack.c.b16 %v1922, %v1906
        %v1955 = vpack.c.b16 %v1923, %v1907
        %v1956 = vpack.c.b16 %v1924, %v1908
        %v1957 = vpack.c.b16 %v1925, %v1909
        %v1958 = vpack.c.b16 %v1926, %v1910
        %v1992 = vsel %vm912, %v1714, 0
        %1994 = vmatprep.subr.bf16.mxu0 %v1928
        %1995 = vmatpush1.bf16.msra.mxu0 %v1927
        %1996 = vmatprep.subr.bf16.mxu0 %v1944
        %1997 = vmatpush1.bf16.msra.mxu0 %v1943
        %1998 = vmatprep.subr.bf16.mxu0 0
        %1999 = vmatpush1.bf16.msra.mxu0 0
        %2000 = vmatprep.subr.bf16.mxu0 0
        %2001 = vmatpush1.bf16.msra.mxu0 0
        %2002 = vmatprep.subr.bf16.mxu0 0
        %2003 = vmatpush1.bf16.msra.mxu0 0
        %2004 = vmatprep.subr.bf16.mxu0 0
        %2005 = vmatpush1.bf16.msra.mxu0 0
        %2006 = vmatprep.subr.bf16.mxu0 0
        %2007 = vmatpush1.bf16.msra.mxu0 0
        %2008 = vmatprep.subr.bf16.mxu0 0
        %2009 = vmatpush1.bf16.msra.mxu0 0
        %2010 = vmatprep.subr.bf16.mxu0 0
        %2011 = vmatpush1.bf16.msra.mxu0 0
        %2012 = vmatprep.subr.bf16.mxu0 0
        %2013 = vmatpush1.bf16.msra.mxu0 0
        %2014 = vmatprep.subr.bf16.mxu0 0
        %2015 = vmatpush1.bf16.msra.mxu0 0
        %2016 = vmatprep.subr.bf16.mxu0 0
        %2017 = vmatpush1.bf16.msra.mxu0 0
        %2018 = vmatprep.subr.bf16.mxu0 0
        %2019 = vmatpush1.bf16.msra.mxu0 0
        %2020 = vmatprep.subr.bf16.mxu0 0
        %2021 = vmatpush1.bf16.msra.mxu0 0
        %2022 = vmatprep.subr.bf16.mxu0 0
        %2023 = vmatpush1.bf16.msra.mxu0 0
        %2024 = vmatprep.subr.bf16.mxu0 0
        %2025 = vmatpush1.bf16.msra.mxu0 0
        %2026 = vmatprep.mubr.bf16.mxu0 0
        %2027 = vmatmul.mubr.bf16.gmra.mrb[0].mxu0 %v1992
        %v2028 = vpop.f32.mrb[0].mxu0
        %v2029 = vadd.f32 %v1754, %v2028
        %v2030 = vpop.f32.mrb[0].mxu0
        %v2031 = vadd.f32 %v1758, %v2030
        %v2032 = vpop.f32.mrb[0].mxu0
        %v2033 = vadd.f32 %v1754, %v2032
        %v2034 = vpop.f32.mrb[0].mxu0
        %v2035 = vadd.f32 %v1758, %v2034
        %2036 = vdwg.mxu0
        %2037 = vmatprep.subr.bf16.mxu0 %v1930
        %2038 = vmatpush1.bf16.msra.mxu0 %v1929
        %2039 = vmatprep.subr.bf16.mxu0 %v1946
        %2040 = vmatpush1.bf16.msra.mxu0 %v1945
        %2041 = vmatprep.subr.bf16.mxu0 0
        %2042 = vmatpush1.bf16.msra.mxu0 0
        %2043 = vmatprep.subr.bf16.mxu0 0
        %2044 = vmatpush1.bf16.msra.mxu0 0
        %2045 = vmatprep.subr.bf16.mxu0 0
        %2046 = vmatpush1.bf16.msra.mxu0 0
        %2047 = vmatprep.subr.bf16.mxu0 0
        %2048 = vmatpush1.bf16.msra.mxu0 0
        %2049 = vmatprep.subr.bf16.mxu0 0
        %2050 = vmatpush1.bf16.msra.mxu0 0
        %2051 = vmatprep.subr.bf16.mxu0 0
        %2052 = vmatpush1.bf16.msra.mxu0 0
        %2053 = vmatprep.subr.bf16.mxu0 0
        %2054 = vmatpush1.bf16.msra.mxu0 0
        %2055 = vmatprep.subr.bf16.mxu0 0
        %2056 = vmatpush1.bf16.msra.mxu0 0
        %2057 = vmatprep.subr.bf16.mxu0 0
        %2058 = vmatpush1.bf16.msra.mxu0 0
        %2059 = vmatprep.subr.bf16.mxu0 0
        %2060 = vmatpush1.bf16.msra.mxu0 0
        %2061 = vmatprep.subr.bf16.mxu0 0
        %2062 = vmatpush1.bf16.msra.mxu0 0
        %2063 = vmatprep.subr.bf16.mxu0 0
        %2064 = vmatpush1.bf16.msra.mxu0 0
        %2065 = vmatprep.subr.bf16.mxu0 0
        %2066 = vmatpush1.bf16.msra.mxu0 0
        %2067 = vmatprep.subr.bf16.mxu0 0
        %2068 = vmatpush1.bf16.msra.mxu0 0
        %2069 = vmatprep.mubr.bf16.mxu0 0
        %2070 = vmatmul.mubr.bf16.gmra.mrb[0].mxu0 %v1992
        %v2071 = vpop.f32.mrb[0].mxu0
        %v2072 = vadd.f32 %v1762, %v2071
        %v2073 = vpop.f32.mrb[0].mxu0
        %v2074 = vadd.f32 %v1766, %v2073
        %v2075 = vpop.f32.mrb[0].mxu0
        %v2076 = vadd.f32 %v1762, %v2075
        %v2077 = vpop.f32.mrb[0].mxu0
        %v2078 = vadd.f32 %v1766, %v2077
        %2079 = vdwg.mxu0
        %2080 = vmatprep.subr.bf16.mxu0 %v1932
        %2081 = vmatpush1.bf16.msra.mxu0 %v1931
        %2082 = vmatprep.subr.bf16.mxu0 %v1948
        %2083 = vmatpush1.bf16.msra.mxu0 %v1947
        %2084 = vmatprep.subr.bf16.mxu0 0
        %2085 = vmatpush1.bf16.msra.mxu0 0
        %2086 = vmatprep.subr.bf16.mxu0 0
        %2087 = vmatpush1.bf16.msra.mxu0 0
        %2088 = vmatprep.subr.bf16.mxu0 0
        %2089 = vmatpush1.bf16.msra.mxu0 0
        %2090 = vmatprep.subr.bf16.mxu0 0
        %2091 = vmatpush1.bf16.msra.mxu0 0
        %2092 = vmatprep.subr.bf16.mxu0 0
        %2093 = vmatpush1.bf16.msra.mxu0 0
        %2094 = vmatprep.subr.bf16.mxu0 0
        %2095 = vmatpush1.bf16.msra.mxu0 0
        %2096 = vmatprep.subr.bf16.mxu0 0
        %2097 = vmatpush1.bf16.msra.mxu0 0
        %2098 = vmatprep.subr.bf16.mxu0 0
        %2099 = vmatpush1.bf16.msra.mxu0 0
        %2100 = vmatprep.subr.bf16.mxu0 0
        %2101 = vmatpush1.bf16.msra.mxu0 0
        %2102 = vmatprep.subr.bf16.mxu0 0
        %2103 = vmatpush1.bf16.msra.mxu0 0
        %2104 = vmatprep.subr.bf16.mxu0 0
        %2105 = vmatpush1.bf16.msra.mxu0 0
        %2106 = vmatprep.subr.bf16.mxu0 0
        %2107 = vmatpush1.bf16.msra.mxu0 0
        %2108 = vmatprep.subr.bf16.mxu0 0
        %2109 = vmatpush1.bf16.msra.mxu0 0
        %2110 = vmatprep.subr.bf16.mxu0 0
        %2111 = vmatpush1.bf16.msra.mxu0 0
        %2112 = vmatprep.mubr.bf16.mxu0 0
        %2113 = vmatmul.mubr.bf16.gmra.mrb[0].mxu0 %v1992
        %v2114 = vpop.f32.mrb[0].mxu0
        %v2115 = vadd.f32 %v1770, %v2114
        %v2116 = vpop.f32.mrb[0].mxu0
        %v2117 = vadd.f32 %v1774, %v2116
        %v2118 = vpop.f32.mrb[0].mxu0
        %v2119 = vadd.f32 %v1770, %v2118
        %v2120 = vpop.f32.mrb[0].mxu0
        %v2121 = vadd.f32 %v1774, %v2120
        %2122 = vdwg.mxu0
        %2123 = vmatprep.subr.bf16.mxu0 %v1934
        %2124 = vmatpush1.bf16.msra.mxu0 %v1933
        %2125 = vmatprep.subr.bf16.mxu0 %v1950
        %2126 = vmatpush1.bf16.msra.mxu0 %v1949
        %2127 = vmatprep.subr.bf16.mxu0 0
        %2128 = vmatpush1.bf16.msra.mxu0 0
        %2129 = vmatprep.subr.bf16.mxu0 0
        %2130 = vmatpush1.bf16.msra.mxu0 0
        %2131 = vmatprep.subr.bf16.mxu0 0
        %2132 = vmatpush1.bf16.msra.mxu0 0
        %2133 = vmatprep.subr.bf16.mxu0 0
        %2134 = vmatpush1.bf16.msra.mxu0 0
        %2135 = vmatprep.subr.bf16.mxu0 0
        %2136 = vmatpush1.bf16.msra.mxu0 0
        %2137 = vmatprep.subr.bf16.mxu0 0
        %2138 = vmatpush1.bf16.msra.mxu0 0
        %2139 = vmatprep.subr.bf16.mxu0 0
        %2140 = vmatpush1.bf16.msra.mxu0 0
        %2141 = vmatprep.subr.bf16.mxu0 0
        %2142 = vmatpush1.bf16.msra.mxu0 0
        %2143 = vmatprep.subr.bf16.mxu0 0
        %2144 = vmatpush1.bf16.msra.mxu0 0
        %2145 = vmatprep.subr.bf16.mxu0 0
        %2146 = vmatpush1.bf16.msra.mxu0 0
        %2147 = vmatprep.subr.bf16.mxu0 0
        %2148 = vmatpush1.bf16.msra.mxu0 0
        %2149 = vmatprep.subr.bf16.mxu0 0
        %2150 = vmatpush1.bf16.msra.mxu0 0
        %2151 = vmatprep.subr.bf16.mxu0 0
        %2152 = vmatpush1.bf16.msra.mxu0 0
        %2153 = vmatprep.subr.bf16.mxu0 0
        %2154 = vmatpush1.bf16.msra.mxu0 0
        %2155 = vmatprep.mubr.bf16.mxu0 0
        %2156 = vmatmul.mubr.bf16.gmra.mrb[0].mxu0 %v1992
        %v2157 = vpop.f32.mrb[0].mxu0
        %v2158 = vadd.f32 %v1778, %v2157
        %v2159 = vpop.f32.mrb[0].mxu0
        %v2160 = vadd.f32 %v1782, %v2159
        %v2161 = vpop.f32.mrb[0].mxu0
        %v2162 = vadd.f32 %v1778, %v2161
        %v2163 = vpop.f32.mrb[0].mxu0
        %v2164 = vadd.f32 %v1782, %v2163
        %2165 = vdwg.mxu0
        %2166 = vmatprep.subr.bf16.mxu0 %v1936
        %2167 = vmatpush1.bf16.msra.mxu0 %v1935
        %2168 = vmatprep.subr.bf16.mxu0 %v1952
        %2169 = vmatpush1.bf16.msra.mxu0 %v1951
        %2170 = vmatprep.subr.bf16.mxu0 0
        %2171 = vmatpush1.bf16.msra.mxu0 0
        %2172 = vmatprep.subr.bf16.mxu0 0
        %2173 = vmatpush1.bf16.msra.mxu0 0
        %2174 = vmatprep.subr.bf16.mxu0 0
        %2175 = vmatpush1.bf16.msra.mxu0 0
        %2176 = vmatprep.subr.bf16.mxu0 0
        %2177 = vmatpush1.bf16.msra.mxu0 0
        %2178 = vmatprep.subr.bf16.mxu0 0
        %2179 = vmatpush1.bf16.msra.mxu0 0
        %2180 = vmatprep.subr.bf16.mxu0 0
        %2181 = vmatpush1.bf16.msra.mxu0 0
        %2182 = vmatprep.subr.bf16.mxu0 0
        %2183 = vmatpush1.bf16.msra.mxu0 0
        %2184 = vmatprep.subr.bf16.mxu0 0
        %2185 = vmatpush1.bf16.msra.mxu0 0
        %2186 = vmatprep.subr.bf16.mxu0 0
        %2187 = vmatpush1.bf16.msra.mxu0 0
        %2188 = vmatprep.subr.bf16.mxu0 0
        %2189 = vmatpush1.bf16.msra.mxu0 0
        %2190 = vmatprep.subr.bf16.mxu0 0
        %2191 = vmatpush1.bf16.msra.mxu0 0
        %2192 = vmatprep.subr.bf16.mxu0 0
        %2193 = vmatpush1.bf16.msra.mxu0 0
        %2194 = vmatprep.subr.bf16.mxu0 0
        %2195 = vmatpush1.bf16.msra.mxu0 0
        %2196 = vmatprep.subr.bf16.mxu0 0
        %2197 = vmatpush1.bf16.msra.mxu0 0
        %2198 = vmatprep.mubr.bf16.mxu0 0
        %2199 = vmatmul.mubr.bf16.gmra.mrb[0].mxu0 %v1992
        %v2200 = vpop.f32.mrb[0].mxu0
        %v2201 = vadd.f32 %v1786, %v2200
        %v2202 = vpop.f32.mrb[0].mxu0
        %v2203 = vadd.f32 %v1790, %v2202
        %v2204 = vpop.f32.mrb[0].mxu0
        %v2205 = vadd.f32 %v1786, %v2204
        %v2206 = vpop.f32.mrb[0].mxu0
        %v2207 = vadd.f32 %v1790, %v2206
        %2208 = vdwg.mxu0
        %2209 = vmatprep.subr.bf16.mxu0 %v1938
        %2210 = vmatpush1.bf16.msra.mxu0 %v1937
        %2211 = vmatprep.subr.bf16.mxu0 %v1954
        %2212 = vmatpush1.bf16.msra.mxu0 %v1953
        %2213 = vmatprep.subr.bf16.mxu0 0
        %2214 = vmatpush1.bf16.msra.mxu0 0
        %2215 = vmatprep.subr.bf16.mxu0 0
        %2216 = vmatpush1.bf16.msra.mxu0 0
        %2217 = vmatprep.subr.bf16.mxu0 0
        %2218 = vmatpush1.bf16.msra.mxu0 0
        %2219 = vmatprep.subr.bf16.mxu0 0
        %2220 = vmatpush1.bf16.msra.mxu0 0
        %2221 = vmatprep.subr.bf16.mxu0 0
        %2222 = vmatpush1.bf16.msra.mxu0 0
        %2223 = vmatprep.subr.bf16.mxu0 0
        %2224 = vmatpush1.bf16.msra.mxu0 0
        %2225 = vmatprep.subr.bf16.mxu0 0
        %2226 = vmatpush1.bf16.msra.mxu0 0
        %2227 = vmatprep.subr.bf16.mxu0 0
        %2228 = vmatpush1.bf16.msra.mxu0 0
        %2229 = vmatprep.subr.bf16.mxu0 0
        %2230 = vmatpush1.bf16.msra.mxu0 0
        %2231 = vmatprep.subr.bf16.mxu0 0
        %2232 = vmatpush1.bf16.msra.mxu0 0
        %2233 = vmatprep.subr.bf16.mxu0 0
        %2234 = vmatpush1.bf16.msra.mxu0 0
        %2235 = vmatprep.subr.bf16.mxu0 0
        %2236 = vmatpush1.bf16.msra.mxu0 0
        %2237 = vmatprep.subr.bf16.mxu0 0
        %2238 = vmatpush1.bf16.msra.mxu0 0
        %2239 = vmatprep.subr.bf16.mxu0 0
        %2240 = vmatpush1.bf16.msra.mxu0 0
        %2241 = vmatprep.mubr.bf16.mxu0 0
        %2242 = vmatmul.mubr.bf16.gmra.mrb[0].mxu0 %v1992
        %v2243 = vpop.f32.mrb[0].mxu0
        %v2244 = vadd.f32 %v1794, %v2243
        %v2245 = vpop.f32.mrb[0].mxu0
        %v2246 = vadd.f32 %v1798, %v2245
        %v2247 = vpop.f32.mrb[0].mxu0
        %v2248 = vadd.f32 %v1794, %v2247
        %v2249 = vpop.f32.mrb[0].mxu0
        %v2250 = vadd.f32 %v1798, %v2249
        %2251 = vdwg.mxu0
        %2252 = vmatprep.subr.bf16.mxu0 %v1940
        %2253 = vmatpush1.bf16.msra.mxu0 %v1939
        %2254 = vmatprep.subr.bf16.mxu0 %v1956
        %2255 = vmatpush1.bf16.msra.mxu0 %v1955
        %2256 = vmatprep.subr.bf16.mxu0 0
        %2257 = vmatpush1.bf16.msra.mxu0 0
        %2258 = vmatprep.subr.bf16.mxu0 0
        %2259 = vmatpush1.bf16.msra.mxu0 0
        %2260 = vmatprep.subr.bf16.mxu0 0
        %2261 = vmatpush1.bf16.msra.mxu0 0
        %2262 = vmatprep.subr.bf16.mxu0 0
        %2263 = vmatpush1.bf16.msra.mxu0 0
        %2264 = vmatprep.subr.bf16.mxu0 0
        %2265 = vmatpush1.bf16.msra.mxu0 0
        %2266 = vmatprep.subr.bf16.mxu0 0
        %2267 = vmatpush1.bf16.msra.mxu0 0
        %2268 = vmatprep.subr.bf16.mxu0 0
        %2269 = vmatpush1.bf16.msra.mxu0 0
        %2270 = vmatprep.subr.bf16.mxu0 0
        %2271 = vmatpush1.bf16.msra.mxu0 0
        %2272 = vmatprep.subr.bf16.mxu0 0
        %2273 = vmatpush1.bf16.msra.mxu0 0
        %2274 = vmatprep.subr.bf16.mxu0 0
        %2275 = vmatpush1.bf16.msra.mxu0 0
        %2276 = vmatprep.subr.bf16.mxu0 0
        %2277 = vmatpush1.bf16.msra.mxu0 0
        %2278 = vmatprep.subr.bf16.mxu0 0
        %2279 = vmatpush1.bf16.msra.mxu0 0
        %2280 = vmatprep.subr.bf16.mxu0 0
        %2281 = vmatpush1.bf16.msra.mxu0 0
        %2282 = vmatprep.subr.bf16.mxu0 0
        %2283 = vmatpush1.bf16.msra.mxu0 0
        %2284 = vmatprep.mubr.bf16.mxu0 0
        %2285 = vmatmul.mubr.bf16.gmra.mrb[0].mxu0 %v1992
        %v2286 = vpop.f32.mrb[0].mxu0
        %v2287 = vadd.f32 %v1802, %v2286
        %v2288 = vpop.f32.mrb[0].mxu0
        %v2289 = vadd.f32 %v1806, %v2288
        %v2290 = vpop.f32.mrb[0].mxu0
        %v2291 = vadd.f32 %v1802, %v2290
        %v2292 = vpop.f32.mrb[0].mxu0
        %v2293 = vadd.f32 %v1806, %v2292
        %2294 = vdwg.mxu0
        %2295 = vmatprep.subr.bf16.mxu0 %v1942
        %2296 = vmatpush1.bf16.msra.mxu0 %v1941
        %2297 = vmatprep.subr.bf16.mxu0 %v1958
        %2298 = vmatpush1.bf16.msra.mxu0 %v1957
        %2299 = vmatprep.subr.bf16.mxu0 0
        %2300 = vmatpush1.bf16.msra.mxu0 0
        %2301 = vmatprep.subr.bf16.mxu0 0
        %2302 = vmatpush1.bf16.msra.mxu0 0
        %2303 = vmatprep.subr.bf16.mxu0 0
        %2304 = vmatpush1.bf16.msra.mxu0 0
        %2305 = vmatprep.subr.bf16.mxu0 0
        %2306 = vmatpush1.bf16.msra.mxu0 0
        %2307 = vmatprep.subr.bf16.mxu0 0
        %2308 = vmatpush1.bf16.msra.mxu0 0
        %2309 = vmatprep.subr.bf16.mxu0 0
        %2310 = vmatpush1.bf16.msra.mxu0 0
        %2311 = vmatprep.subr.bf16.mxu0 0
        %2312 = vmatpush1.bf16.msra.mxu0 0
        %2313 = vmatprep.subr.bf16.mxu0 0
        %2314 = vmatpush1.bf16.msra.mxu0 0
        %2315 = vmatprep.subr.bf16.mxu0 0
        %2316 = vmatpush1.bf16.msra.mxu0 0
        %2317 = vmatprep.subr.bf16.mxu0 0
        %2318 = vmatpush1.bf16.msra.mxu0 0
        %2319 = vmatprep.subr.bf16.mxu0 0
        %2320 = vmatpush1.bf16.msra.mxu0 0
        %2321 = vmatprep.subr.bf16.mxu0 0
        %2322 = vmatpush1.bf16.msra.mxu0 0
        %2323 = vmatprep.subr.bf16.mxu0 0
        %2324 = vmatpush1.bf16.msra.mxu0 0
        %2325 = vmatprep.subr.bf16.mxu0 0
        %2326 = vmatpush1.bf16.msra.mxu0 0
        %2327 = vmatprep.mubr.bf16.mxu0 0
        %2328 = vmatmul.mubr.bf16.gmra.mrb[0].mxu0 %v1992
        %v2329 = vpop.f32.mrb[0].mxu0
        %v2330 = vadd.f32 %v1810, %v2329
        %v2331 = vpop.f32.mrb[0].mxu0
        %v2332 = vadd.f32 %v1814, %v2331
        %v2333 = vpop.f32.mrb[0].mxu0
        %v2334 = vadd.f32 %v1810, %v2333
        %v2335 = vpop.f32.mrb[0].mxu0
        %v2336 = vadd.f32 %v1814, %v2335
        %2337 = vdwg.mxu0
        %v2338 = vmax.f32 %v2029, 0.0
        %v2339 = vmax.f32 %v2031, 0.0
        %v2340 = vmax.f32 %v2072, 0.0
        %v2341 = vmax.f32 %v2074, 0.0
        %v2342 = vmax.f32 %v2115, 0.0
        %v2343 = vmax.f32 %v2117, 0.0
        %v2344 = vmax.f32 %v2158, 0.0
        %v2345 = vmax.f32 %v2160, 0.0
        %v2346 = vmax.f32 %v2201, 0.0
        %v2347 = vmax.f32 %v2203, 0.0
        %v2348 = vmax.f32 %v2244, 0.0
        %v2349 = vmax.f32 %v2246, 0.0
        %v2350 = vmax.f32 %v2287, 0.0
        %v2351 = vmax.f32 %v2289, 0.0
        %v2352 = vmax.f32 %v2330, 0.0
        %v2353 = vmax.f32 %v2332, 0.0
        %v2354 = vmax.f32 %v2033, 0.0
        %v2355 = vmax.f32 %v2035, 0.0
        %v2356 = vmax.f32 %v2076, 0.0
        %v2357 = vmax.f32 %v2078, 0.0
        %v2358 = vmax.f32 %v2119, 0.0
        %v2359 = vmax.f32 %v2121, 0.0
        %v2360 = vmax.f32 %v2162, 0.0
        %v2361 = vmax.f32 %v2164, 0.0
        %v2362 = vmax.f32 %v2205, 0.0
        %v2363 = vmax.f32 %v2207, 0.0
        %v2364 = vmax.f32 %v2248, 0.0
        %v2365 = vmax.f32 %v2250, 0.0
        %v2366 = vmax.f32 %v2291, 0.0
        %v2367 = vmax.f32 %v2293, 0.0
        %v2368 = vmax.f32 %v2334, 0.0
        %v2369 = vmax.f32 %v2336, 0.0
        %v2370 = vpack.c.bf16 %v2354, %v2338
        %v2371 = vpack.c.bf16 %v2355, %v2339
        %v2372 = vpack.c.bf16 %v2356, %v2340
        %v2373 = vpack.c.bf16 %v2357, %v2341
        %v2374 = vpack.c.bf16 %v2358, %v2342
        %v2375 = vpack.c.bf16 %v2359, %v2343
        %v2376 = vpack.c.bf16 %v2360, %v2344
        %v2377 = vpack.c.bf16 %v2361, %v2345
        %v2378 = vpack.c.bf16 %v2362, %v2346
        %v2379 = vpack.c.bf16 %v2363, %v2347
        %v2380 = vpack.c.bf16 %v2364, %v2348
        %v2381 = vpack.c.bf16 %v2365, %v2349
        %v2382 = vpack.c.bf16 %v2366, %v2350
        %v2383 = vpack.c.bf16 %v2367, %v2351
        %v2384 = vpack.c.bf16 %v2368, %v2352
        %v2385 = vpack.c.bf16 %v2369, %v2353
        %v2386 = vld [vmem:[%s780] sm:$0xf]
        %v2387 = vld [vmem:[%s780 + $0x4] sm:$0xf]
        %v2388 = vld [vmem:[%s780 + $0x8] sm:$0xf]
        %v2389 = vld [vmem:[%s780 + $0xc] sm:$0xf]
        %v2390 = vld [vmem:[%s780 + $0x10] sm:$0xf]
        %v2391 = vld [vmem:[%s780 + $0x14] sm:$0xf]
        %v2392 = vld [vmem:[%s780 + $0x18] sm:$0xf]
        %v2393 = vld [vmem:[%s780 + $0x1c] sm:$0xf]
        %v2394 = vld [vmem:[%s780 + $0x20] sm:$0xf]
        %v2395 = vld [vmem:[%s780 + $0x24] sm:$0xf]
        %v2396 = vld [vmem:[%s780 + $0x28] sm:$0xf]
        %v2397 = vld [vmem:[%s780 + $0x2c] sm:$0xf]
        %v2398 = vld [vmem:[%s780 + $0x30] sm:$0xf]
        %v2399 = vld [vmem:[%s780 + $0x34] sm:$0xf]
        %v2400 = vld [vmem:[%s780 + $0x38] sm:$0xf]
        %v2401 = vld [vmem:[%s780 + $0x3c] sm:$0xf]
        %v2402 = vld [vmem:[%s780 + $0x40] sm:$0xf]
        %v2403 = vld [vmem:[%s780 + $0x44] sm:$0xf]
        %v2404 = vld [vmem:[%s780 + $0x48] sm:$0xf]
        %v2405 = vld [vmem:[%s780 + $0x4c] sm:$0xf]
        %v2406 = vld [vmem:[%s780 + $0x50] sm:$0xf]
        %v2407 = vld [vmem:[%s780 + $0x54] sm:$0xf]
        %v2408 = vld [vmem:[%s780 + $0x58] sm:$0xf]
        %v2409 = vld [vmem:[%s780 + $0x5c] sm:$0xf]
        %v2410 = vld [vmem:[%s780 + $0x60] sm:$0xf]
        %v2411 = vld [vmem:[%s780 + $0x64] sm:$0xf]
        %v2412 = vld [vmem:[%s780 + $0x68] sm:$0xf]
        %v2413 = vld [vmem:[%s780 + $0x6c] sm:$0xf]
        %v2414 = vld [vmem:[%s780 + $0x70] sm:$0xf]
        %v2415 = vld [vmem:[%s780 + $0x74] sm:$0xf]
        %v2416 = vld [vmem:[%s780 + $0x78] sm:$0xf]
        %v2417 = vld [vmem:[%s780 + $0x7c] sm:$0xf]
        %v2418 = vld [vmem:[%s780 + $0x80] sm:$0xf]
        %v2419 = vld [vmem:[%s780 + $0x84] sm:$0xf]
        %v2420 = vld [vmem:[%s780 + $0x88] sm:$0xf]
        %v2421 = vld [vmem:[%s780 + $0x8c] sm:$0xf]
        %v2422 = vld [vmem:[%s780 + $0x90] sm:$0xf]
        %v2423 = vld [vmem:[%s780 + $0x94] sm:$0xf]
        %v2424 = vld [vmem:[%s780 + $0x98] sm:$0xf]
        %v2425 = vld [vmem:[%s780 + $0x9c] sm:$0xf]
        %v2426 = vld [vmem:[%s780 + $0xa0] sm:$0xf]
        %v2427 = vld [vmem:[%s780 + $0xa4] sm:$0xf]
        %v2428 = vld [vmem:[%s780 + $0xa8] sm:$0xf]
        %v2429 = vld [vmem:[%s780 + $0xac] sm:$0xf]
        %v2430 = vld [vmem:[%s780 + $0xb0] sm:$0xf]
        %v2431 = vld [vmem:[%s780 + $0xb4] sm:$0xf]
        %v2432 = vld [vmem:[%s780 + $0xb8] sm:$0xf]
        %v2433 = vld [vmem:[%s780 + $0xbc] sm:$0xf]
        %v2434 = vld [vmem:[%s780 + $0xc0] sm:$0xf]
        %v2435 = vld [vmem:[%s780 + $0xc4] sm:$0xf]
        %v2436 = vld [vmem:[%s780 + $0xc8] sm:$0xf]
        %v2437 = vld [vmem:[%s780 + $0xcc] sm:$0xf]
        %v2438 = vld [vmem:[%s780 + $0xd0] sm:$0xf]
        %v2439 = vld [vmem:[%s780 + $0xd4] sm:$0xf]
        %v2440 = vld [vmem:[%s780 + $0xd8] sm:$0xf]
        %v2441 = vld [vmem:[%s780 + $0xdc] sm:$0xf]
        %v2442 = vld [vmem:[%s780 + $0xe0] sm:$0xf]
        %v2443 = vld [vmem:[%s780 + $0xe4] sm:$0xf]
        %v2444 = vld [vmem:[%s780 + $0xe8] sm:$0xf]
        %v2445 = vld [vmem:[%s780 + $0xec] sm:$0xf]
        %v2446 = vld [vmem:[%s780 + $0xf0] sm:$0xf]
        %v2447 = vld [vmem:[%s780 + $0xf4] sm:$0xf]
        %v2448 = vld [vmem:[%s780 + $0xf8] sm:$0xf]
        %v2449 = vld [vmem:[%s780 + $0xfc] sm:$0xf]
        %v2450 = vld [vmem:[%s780 + $0x100] sm:$0xf]
        %v2451 = vld [vmem:[%s780 + $0x104] sm:$0xf]
        %v2452 = vld [vmem:[%s780 + $0x108] sm:$0xf]
        %v2453 = vld [vmem:[%s780 + $0x10c] sm:$0xf]
        %v2454 = vld [vmem:[%s780 + $0x110] sm:$0xf]
        %v2455 = vld [vmem:[%s780 + $0x114] sm:$0xf]
        %v2456 = vld [vmem:[%s780 + $0x118] sm:$0xf]
        %v2457 = vld [vmem:[%s780 + $0x11c] sm:$0xf]
        %v2458 = vld [vmem:[%s780 + $0x120] sm:$0xf]
        %v2459 = vld [vmem:[%s780 + $0x124] sm:$0xf]
        %v2460 = vld [vmem:[%s780 + $0x128] sm:$0xf]
        %v2461 = vld [vmem:[%s780 + $0x12c] sm:$0xf]
        %v2462 = vld [vmem:[%s780 + $0x130] sm:$0xf]
        %v2463 = vld [vmem:[%s780 + $0x134] sm:$0xf]
        %v2464 = vld [vmem:[%s780 + $0x138] sm:$0xf]
        %v2465 = vld [vmem:[%s780 + $0x13c] sm:$0xf]
        %v2466 = vld [vmem:[%s780 + $0x140] sm:$0xf]
        %v2467 = vld [vmem:[%s780 + $0x144] sm:$0xf]
        %v2468 = vld [vmem:[%s780 + $0x148] sm:$0xf]
        %v2469 = vld [vmem:[%s780 + $0x14c] sm:$0xf]
        %v2470 = vld [vmem:[%s780 + $0x150] sm:$0xf]
        %v2471 = vld [vmem:[%s780 + $0x154] sm:$0xf]
        %v2472 = vld [vmem:[%s780 + $0x158] sm:$0xf]
        %v2473 = vld [vmem:[%s780 + $0x15c] sm:$0xf]
        %v2474 = vld [vmem:[%s780 + $0x160] sm:$0xf]
        %v2475 = vld [vmem:[%s780 + $0x164] sm:$0xf]
        %v2476 = vld [vmem:[%s780 + $0x168] sm:$0xf]
        %v2477 = vld [vmem:[%s780 + $0x16c] sm:$0xf]
        %v2478 = vld [vmem:[%s780 + $0x170] sm:$0xf]
        %v2479 = vld [vmem:[%s780 + $0x174] sm:$0xf]
        %v2480 = vld [vmem:[%s780 + $0x178] sm:$0xf]
        %v2481 = vld [vmem:[%s780 + $0x17c] sm:$0xf]
        %v2482 = vld [vmem:[%s780 + $0x180] sm:$0xf]
        %v2483 = vld [vmem:[%s780 + $0x184] sm:$0xf]
        %v2484 = vld [vmem:[%s780 + $0x188] sm:$0xf]
        %v2485 = vld [vmem:[%s780 + $0x18c] sm:$0xf]
        %v2486 = vld [vmem:[%s780 + $0x190] sm:$0xf]
        %v2487 = vld [vmem:[%s780 + $0x194] sm:$0xf]
        %v2488 = vld [vmem:[%s780 + $0x198] sm:$0xf]
        %v2489 = vld [vmem:[%s780 + $0x19c] sm:$0xf]
        %v2490 = vld [vmem:[%s780 + $0x1a0] sm:$0xf]
        %v2491 = vld [vmem:[%s780 + $0x1a4] sm:$0xf]
        %v2492 = vld [vmem:[%s780 + $0x1a8] sm:$0xf]
        %v2493 = vld [vmem:[%s780 + $0x1ac] sm:$0xf]
        %v2494 = vld [vmem:[%s780 + $0x1b0] sm:$0xf]
        %v2495 = vld [vmem:[%s780 + $0x1b4] sm:$0xf]
        %v2496 = vld [vmem:[%s780 + $0x1b8] sm:$0xf]
        %v2497 = vld [vmem:[%s780 + $0x1bc] sm:$0xf]
        %v2498 = vld [vmem:[%s780 + $0x1c0] sm:$0xf]
        %v2499 = vld [vmem:[%s780 + $0x1c4] sm:$0xf]
        %v2500 = vld [vmem:[%s780 + $0x1c8] sm:$0xf]
        %v2501 = vld [vmem:[%s780 + $0x1cc] sm:$0xf]
        %v2502 = vld [vmem:[%s780 + $0x1d0] sm:$0xf]
        %v2503 = vld [vmem:[%s780 + $0x1d4] sm:$0xf]
        %v2504 = vld [vmem:[%s780 + $0x1d8] sm:$0xf]
        %v2505 = vld [vmem:[%s780 + $0x1dc] sm:$0xf]
        %v2506 = vld [vmem:[%s780 + $0x1e0] sm:$0xf]
        %v2507 = vld [vmem:[%s780 + $0x1e4] sm:$0xf]
        %v2508 = vld [vmem:[%s780 + $0x1e8] sm:$0xf]
        %v2509 = vld [vmem:[%s780 + $0x1ec] sm:$0xf]
        %v2510 = vld [vmem:[%s780 + $0x1f0] sm:$0xf]
        %v2511 = vld [vmem:[%s780 + $0x1f4] sm:$0xf]
        %v2512 = vld [vmem:[%s780 + $0x1f8] sm:$0xf]
        %v2513 = vld [vmem:[%s780 + $0x1fc] sm:$0xf]
        %v2514 = vld [vmem:[%s780 + $0x200] sm:$0xf]
        %v2515 = vld [vmem:[%s780 + $0x204] sm:$0xf]
        %v2516 = vld [vmem:[%s780 + $0x208] sm:$0xf]
        %v2517 = vld [vmem:[%s780 + $0x20c] sm:$0xf]
        %v2518 = vld [vmem:[%s780 + $0x210] sm:$0xf]
        %v2519 = vld [vmem:[%s780 + $0x214] sm:$0xf]
        %v2520 = vld [vmem:[%s780 + $0x218] sm:$0xf]
        %v2521 = vld [vmem:[%s780 + $0x21c] sm:$0xf]
        %v2522 = vld [vmem:[%s780 + $0x220] sm:$0xf]
        %v2523 = vld [vmem:[%s780 + $0x224] sm:$0xf]
        %v2524 = vld [vmem:[%s780 + $0x228] sm:$0xf]
        %v2525 = vld [vmem:[%s780 + $0x22c] sm:$0xf]
        %v2526 = vld [vmem:[%s780 + $0x230] sm:$0xf]
        %v2527 = vld [vmem:[%s780 + $0x234] sm:$0xf]
        %v2528 = vld [vmem:[%s780 + $0x238] sm:$0xf]
        %v2529 = vld [vmem:[%s780 + $0x23c] sm:$0xf]
        %v2530 = vld [vmem:[%s780 + $0x240] sm:$0xf]
        %v2531 = vld [vmem:[%s780 + $0x244] sm:$0xf]
        %v2532 = vld [vmem:[%s780 + $0x248] sm:$0xf]
        %v2533 = vld [vmem:[%s780 + $0x24c] sm:$0xf]
        %v2534 = vld [vmem:[%s780 + $0x250] sm:$0xf]
        %v2535 = vld [vmem:[%s780 + $0x254] sm:$0xf]
        %v2536 = vld [vmem:[%s780 + $0x258] sm:$0xf]
        %v2537 = vld [vmem:[%s780 + $0x25c] sm:$0xf]
        %v2538 = vld [vmem:[%s780 + $0x260] sm:$0xf]
        %v2539 = vld [vmem:[%s780 + $0x264] sm:$0xf]
        %v2540 = vld [vmem:[%s780 + $0x268] sm:$0xf]
        %v2541 = vld [vmem:[%s780 + $0x26c] sm:$0xf]
        %v2542 = vld [vmem:[%s780 + $0x270] sm:$0xf]
        %v2543 = vld [vmem:[%s780 + $0x274] sm:$0xf]
        %v2544 = vld [vmem:[%s780 + $0x278] sm:$0xf]
        %v2545 = vld [vmem:[%s780 + $0x27c] sm:$0xf]
        %v2546 = vld [vmem:[%s780 + $0x280] sm:$0xf]
        %v2547 = vld [vmem:[%s780 + $0x284] sm:$0xf]
        %v2548 = vld [vmem:[%s780 + $0x288] sm:$0xf]
        %v2549 = vld [vmem:[%s780 + $0x28c] sm:$0xf]
        %v2550 = vld [vmem:[%s780 + $0x290] sm:$0xf]
        %v2551 = vld [vmem:[%s780 + $0x294] sm:$0xf]
        %v2552 = vld [vmem:[%s780 + $0x298] sm:$0xf]
        %v2553 = vld [vmem:[%s780 + $0x29c] sm:$0xf]
        %v2554 = vld [vmem:[%s780 + $0x2a0] sm:$0xf]
        %v2555 = vld [vmem:[%s780 + $0x2a4] sm:$0xf]
        %v2556 = vld [vmem:[%s780 + $0x2a8] sm:$0xf]
        %v2557 = vld [vmem:[%s780 + $0x2ac] sm:$0xf]
        %v2558 = vld [vmem:[%s780 + $0x2b0] sm:$0xf]
        %v2559 = vld [vmem:[%s780 + $0x2b4] sm:$0xf]
        %v2560 = vld [vmem:[%s780 + $0x2b8] sm:$0xf]
        %v2561 = vld [vmem:[%s780 + $0x2bc] sm:$0xf]
        %v2562 = vld [vmem:[%s780 + $0x2c0] sm:$0xf]
        %v2563 = vld [vmem:[%s780 + $0x2c4] sm:$0xf]
        %v2564 = vld [vmem:[%s780 + $0x2c8] sm:$0xf]
        %v2565 = vld [vmem:[%s780 + $0x2cc] sm:$0xf]
        %v2566 = vld [vmem:[%s780 + $0x2d0] sm:$0xf]
        %v2567 = vld [vmem:[%s780 + $0x2d4] sm:$0xf]
        %v2568 = vld [vmem:[%s780 + $0x2d8] sm:$0xf]
        %v2569 = vld [vmem:[%s780 + $0x2dc] sm:$0xf]
        %v2570 = vld [vmem:[%s780 + $0x2e0] sm:$0xf]
        %v2571 = vld [vmem:[%s780 + $0x2e4] sm:$0xf]
        %v2572 = vld [vmem:[%s780 + $0x2e8] sm:$0xf]
        %v2573 = vld [vmem:[%s780 + $0x2ec] sm:$0xf]
        %v2574 = vld [vmem:[%s780 + $0x2f0] sm:$0xf]
        %v2575 = vld [vmem:[%s780 + $0x2f4] sm:$0xf]
        %v2576 = vld [vmem:[%s780 + $0x2f8] sm:$0xf]
        %v2577 = vld [vmem:[%s780 + $0x2fc] sm:$0xf]
        %v2578 = vld [vmem:[%s780 + $0x300] sm:$0xf]
        %v2579 = vld [vmem:[%s780 + $0x304] sm:$0xf]
        %v2580 = vld [vmem:[%s780 + $0x308] sm:$0xf]
        %v2581 = vld [vmem:[%s780 + $0x30c] sm:$0xf]
        %v2582 = vld [vmem:[%s780 + $0x310] sm:$0xf]
        %v2583 = vld [vmem:[%s780 + $0x314] sm:$0xf]
        %v2584 = vld [vmem:[%s780 + $0x318] sm:$0xf]
        %v2585 = vld [vmem:[%s780 + $0x31c] sm:$0xf]
        %v2586 = vld [vmem:[%s780 + $0x320] sm:$0xf]
        %v2587 = vld [vmem:[%s780 + $0x324] sm:$0xf]
        %v2588 = vld [vmem:[%s780 + $0x328] sm:$0xf]
        %v2589 = vld [vmem:[%s780 + $0x32c] sm:$0xf]
        %v2590 = vld [vmem:[%s780 + $0x330] sm:$0xf]
        %v2591 = vld [vmem:[%s780 + $0x334] sm:$0xf]
        %v2592 = vld [vmem:[%s780 + $0x338] sm:$0xf]
        %v2593 = vld [vmem:[%s780 + $0x33c] sm:$0xf]
        %v2594 = vld [vmem:[%s780 + $0x340] sm:$0xf]
        %v2595 = vld [vmem:[%s780 + $0x344] sm:$0xf]
        %v2596 = vld [vmem:[%s780 + $0x348] sm:$0xf]
        %v2597 = vld [vmem:[%s780 + $0x34c] sm:$0xf]
        %v2598 = vld [vmem:[%s780 + $0x350] sm:$0xf]
        %v2599 = vld [vmem:[%s780 + $0x354] sm:$0xf]
        %v2600 = vld [vmem:[%s780 + $0x358] sm:$0xf]
        %v2601 = vld [vmem:[%s780 + $0x35c] sm:$0xf]
        %v2602 = vld [vmem:[%s780 + $0x360] sm:$0xf]
        %v2603 = vld [vmem:[%s780 + $0x364] sm:$0xf]
        %v2604 = vld [vmem:[%s780 + $0x368] sm:$0xf]
        %v2605 = vld [vmem:[%s780 + $0x36c] sm:$0xf]
        %v2606 = vld [vmem:[%s780 + $0x370] sm:$0xf]
        %v2607 = vld [vmem:[%s780 + $0x374] sm:$0xf]
        %v2608 = vld [vmem:[%s780 + $0x378] sm:$0xf]
        %v2609 = vld [vmem:[%s780 + $0x37c] sm:$0xf]
        %v2610 = vld [vmem:[%s780 + $0x380] sm:$0xf]
        %v2611 = vld [vmem:[%s780 + $0x384] sm:$0xf]
        %v2612 = vld [vmem:[%s780 + $0x388] sm:$0xf]
        %v2613 = vld [vmem:[%s780 + $0x38c] sm:$0xf]
        %v2614 = vld [vmem:[%s780 + $0x390] sm:$0xf]
        %v2615 = vld [vmem:[%s780 + $0x394] sm:$0xf]
        %v2616 = vld [vmem:[%s780 + $0x398] sm:$0xf]
        %v2617 = vld [vmem:[%s780 + $0x39c] sm:$0xf]
        %v2618 = vld [vmem:[%s780 + $0x3a0] sm:$0xf]
        %v2619 = vld [vmem:[%s780 + $0x3a4] sm:$0xf]
        %v2620 = vld [vmem:[%s780 + $0x3a8] sm:$0xf]
        %v2621 = vld [vmem:[%s780 + $0x3ac] sm:$0xf]
        %v2622 = vld [vmem:[%s780 + $0x3b0] sm:$0xf]
        %v2623 = vld [vmem:[%s780 + $0x3b4] sm:$0xf]
        %v2624 = vld [vmem:[%s780 + $0x3b8] sm:$0xf]
        %v2625 = vld [vmem:[%s780 + $0x3bc] sm:$0xf]
        %v2626 = vld [vmem:[%s780 + $0x3c0] sm:$0xf]
        %v2627 = vld [vmem:[%s780 + $0x3c4] sm:$0xf]
        %v2628 = vld [vmem:[%s780 + $0x3c8] sm:$0xf]
        %v2629 = vld [vmem:[%s780 + $0x3cc] sm:$0xf]
        %v2630 = vld [vmem:[%s780 + $0x3d0] sm:$0xf]
        %v2631 = vld [vmem:[%s780 + $0x3d4] sm:$0xf]
        %v2632 = vld [vmem:[%s780 + $0x3d8] sm:$0xf]
        %v2633 = vld [vmem:[%s780 + $0x3dc] sm:$0xf]
        %v2634 = vld [vmem:[%s780 + $0x3e0] sm:$0xf]
        %v2635 = vld [vmem:[%s780 + $0x3e4] sm:$0xf]
        %v2636 = vld [vmem:[%s780 + $0x3e8] sm:$0xf]
        %v2637 = vld [vmem:[%s780 + $0x3ec] sm:$0xf]
        %v2638 = vld [vmem:[%s780 + $0x3f0] sm:$0xf]
        %v2639 = vld [vmem:[%s780 + $0x3f4] sm:$0xf]
        %v2640 = vld [vmem:[%s780 + $0x3f8] sm:$0xf]
        %v2641 = vld [vmem:[%s780 + $0x3fc] sm:$0xf]
        %v2642 = vld [vmem:[%s783] sm:$0x1]
        %v2644 = vlaneseq
        %v2645 = vshrl.u32 %v2644, 7
        %v2646 = vsub.s32 0, %v2645
        %v2647 = vrot.slane %v2642, %v2646
        %v2905 = vunpack.c.l.b16 %v2386
        %v2906 = vunpack.c.l.b16 %v2387
        %v2907 = vunpack.c.l.b16 %v2388
        %v2908 = vunpack.c.l.b16 %v2389
        %v2909 = vunpack.c.l.b16 %v2390
        %v2910 = vunpack.c.l.b16 %v2391
        %v2911 = vunpack.c.l.b16 %v2392
        %v2912 = vunpack.c.l.b16 %v2393
        %v2913 = vunpack.c.l.b16 %v2394
        %v2914 = vunpack.c.l.b16 %v2395
        %v2915 = vunpack.c.l.b16 %v2396
        %v2916 = vunpack.c.l.b16 %v2397
        %v2917 = vunpack.c.l.b16 %v2398
        %v2918 = vunpack.c.l.b16 %v2399
        %v2919 = vunpack.c.l.b16 %v2400
        %v2920 = vunpack.c.l.b16 %v2401
        %v2921 = vunpack.c.l.b16 %v2402
        %v2922 = vunpack.c.l.b16 %v2403
        %v2923 = vunpack.c.l.b16 %v2404
        %v2924 = vunpack.c.l.b16 %v2405
        %v2925 = vunpack.c.l.b16 %v2406
        %v2926 = vunpack.c.l.b16 %v2407
        %v2927 = vunpack.c.l.b16 %v2408
        %v2928 = vunpack.c.l.b16 %v2409
        %v2929 = vunpack.c.l.b16 %v2410
        %v2930 = vunpack.c.l.b16 %v2411
        %v2931 = vunpack.c.l.b16 %v2412
        %v2932 = vunpack.c.l.b16 %v2413
        %v2933 = vunpack.c.l.b16 %v2414
        %v2934 = vunpack.c.l.b16 %v2415
        %v2935 = vunpack.c.l.b16 %v2416
        %v2936 = vunpack.c.l.b16 %v2417
        %v2937 = vunpack.c.l.b16 %v2418
        %v2938 = vunpack.c.l.b16 %v2419
        %v2939 = vunpack.c.l.b16 %v2420
        %v2940 = vunpack.c.l.b16 %v2421
        %v2941 = vunpack.c.l.b16 %v2422
        %v2942 = vunpack.c.l.b16 %v2423
        %v2943 = vunpack.c.l.b16 %v2424
        %v2944 = vunpack.c.l.b16 %v2425
        %v2945 = vunpack.c.l.b16 %v2426
        %v2946 = vunpack.c.l.b16 %v2427
        %v2947 = vunpack.c.l.b16 %v2428
        %v2948 = vunpack.c.l.b16 %v2429
        %v2949 = vunpack.c.l.b16 %v2430
        %v2950 = vunpack.c.l.b16 %v2431
        %v2951 = vunpack.c.l.b16 %v2432
        %v2952 = vunpack.c.l.b16 %v2433
        %v2953 = vunpack.c.l.b16 %v2434
        %v2954 = vunpack.c.l.b16 %v2435
        %v2955 = vunpack.c.l.b16 %v2436
        %v2956 = vunpack.c.l.b16 %v2437
        %v2957 = vunpack.c.l.b16 %v2438
        %v2958 = vunpack.c.l.b16 %v2439
        %v2959 = vunpack.c.l.b16 %v2440
        %v2960 = vunpack.c.l.b16 %v2441
        %v2961 = vunpack.c.l.b16 %v2442
        %v2962 = vunpack.c.l.b16 %v2443
        %v2963 = vunpack.c.l.b16 %v2444
        %v2964 = vunpack.c.l.b16 %v2445
        %v2965 = vunpack.c.l.b16 %v2446
        %v2966 = vunpack.c.l.b16 %v2447
        %v2967 = vunpack.c.l.b16 %v2448
        %v2968 = vunpack.c.l.b16 %v2449
        %v2969 = vunpack.c.l.b16 %v2450
        %v2970 = vunpack.c.l.b16 %v2451
        %v2971 = vunpack.c.l.b16 %v2452
        %v2972 = vunpack.c.l.b16 %v2453
        %v2973 = vunpack.c.l.b16 %v2454
        %v2974 = vunpack.c.l.b16 %v2455
        %v2975 = vunpack.c.l.b16 %v2456
        %v2976 = vunpack.c.l.b16 %v2457
        %v2977 = vunpack.c.l.b16 %v2458
        %v2978 = vunpack.c.l.b16 %v2459
        %v2979 = vunpack.c.l.b16 %v2460
        %v2980 = vunpack.c.l.b16 %v2461
        %v2981 = vunpack.c.l.b16 %v2462
        %v2982 = vunpack.c.l.b16 %v2463
        %v2983 = vunpack.c.l.b16 %v2464
        %v2984 = vunpack.c.l.b16 %v2465
        %v2985 = vunpack.c.l.b16 %v2466
        %v2986 = vunpack.c.l.b16 %v2467
        %v2987 = vunpack.c.l.b16 %v2468
        %v2988 = vunpack.c.l.b16 %v2469
        %v2989 = vunpack.c.l.b16 %v2470
        %v2990 = vunpack.c.l.b16 %v2471
        %v2991 = vunpack.c.l.b16 %v2472
        %v2992 = vunpack.c.l.b16 %v2473
        %v2993 = vunpack.c.l.b16 %v2474
        %v2994 = vunpack.c.l.b16 %v2475
        %v2995 = vunpack.c.l.b16 %v2476
        %v2996 = vunpack.c.l.b16 %v2477
        %v2997 = vunpack.c.l.b16 %v2478
        %v2998 = vunpack.c.l.b16 %v2479
        %v2999 = vunpack.c.l.b16 %v2480
        %v3000 = vunpack.c.l.b16 %v2481
        %v3001 = vunpack.c.l.b16 %v2482
        %v3002 = vunpack.c.l.b16 %v2483
        %v3003 = vunpack.c.l.b16 %v2484
        %v3004 = vunpack.c.l.b16 %v2485
        %v3005 = vunpack.c.l.b16 %v2486
        %v3006 = vunpack.c.l.b16 %v2487
        %v3007 = vunpack.c.l.b16 %v2488
        %v3008 = vunpack.c.l.b16 %v2489
        %v3009 = vunpack.c.l.b16 %v2490
        %v3010 = vunpack.c.l.b16 %v2491
        %v3011 = vunpack.c.l.b16 %v2492
        %v3012 = vunpack.c.l.b16 %v2493
        %v3013 = vunpack.c.l.b16 %v2494
        %v3014 = vunpack.c.l.b16 %v2495
        %v3015 = vunpack.c.l.b16 %v2496
        %v3016 = vunpack.c.l.b16 %v2497
        %v3017 = vunpack.c.l.b16 %v2498
        %v3018 = vunpack.c.l.b16 %v2499
        %v3019 = vunpack.c.l.b16 %v2500
        %v3020 = vunpack.c.l.b16 %v2501
        %v3021 = vunpack.c.l.b16 %v2502
        %v3022 = vunpack.c.l.b16 %v2503
        %v3023 = vunpack.c.l.b16 %v2504
        %v3024 = vunpack.c.l.b16 %v2505
        %v3025 = vunpack.c.l.b16 %v2506
        %v3026 = vunpack.c.l.b16 %v2507
        %v3027 = vunpack.c.l.b16 %v2508
        %v3028 = vunpack.c.l.b16 %v2509
        %v3029 = vunpack.c.l.b16 %v2510
        %v3030 = vunpack.c.l.b16 %v2511
        %v3031 = vunpack.c.l.b16 %v2512
        %v3032 = vunpack.c.l.b16 %v2513
        %v3033 = vunpack.c.l.b16 %v2514
        %v3034 = vunpack.c.l.b16 %v2515
        %v3035 = vunpack.c.l.b16 %v2516
        %v3036 = vunpack.c.l.b16 %v2517
        %v3037 = vunpack.c.l.b16 %v2518
        %v3038 = vunpack.c.l.b16 %v2519
        %v3039 = vunpack.c.l.b16 %v2520
        %v3040 = vunpack.c.l.b16 %v2521
        %v3041 = vunpack.c.l.b16 %v2522
        %v3042 = vunpack.c.l.b16 %v2523
        %v3043 = vunpack.c.l.b16 %v2524
        %v3044 = vunpack.c.l.b16 %v2525
        %v3045 = vunpack.c.l.b16 %v2526
        %v3046 = vunpack.c.l.b16 %v2527
        %v3047 = vunpack.c.l.b16 %v2528
        %v3048 = vunpack.c.l.b16 %v2529
        %v3049 = vunpack.c.l.b16 %v2530
        %v3050 = vunpack.c.l.b16 %v2531
        %v3051 = vunpack.c.l.b16 %v2532
        %v3052 = vunpack.c.l.b16 %v2533
        %v3053 = vunpack.c.l.b16 %v2534
        %v3054 = vunpack.c.l.b16 %v2535
        %v3055 = vunpack.c.l.b16 %v2536
        %v3056 = vunpack.c.l.b16 %v2537
        %v3057 = vunpack.c.l.b16 %v2538
        %v3058 = vunpack.c.l.b16 %v2539
        %v3059 = vunpack.c.l.b16 %v2540
        %v3060 = vunpack.c.l.b16 %v2541
        %v3061 = vunpack.c.l.b16 %v2542
        %v3062 = vunpack.c.l.b16 %v2543
        %v3063 = vunpack.c.l.b16 %v2544
        %v3064 = vunpack.c.l.b16 %v2545
        %v3065 = vunpack.c.l.b16 %v2546
        %v3066 = vunpack.c.l.b16 %v2547
        %v3067 = vunpack.c.l.b16 %v2548
        %v3068 = vunpack.c.l.b16 %v2549
        %v3069 = vunpack.c.l.b16 %v2550
        %v3070 = vunpack.c.l.b16 %v2551
        %v3071 = vunpack.c.l.b16 %v2552
        %v3072 = vunpack.c.l.b16 %v2553
        %v3073 = vunpack.c.l.b16 %v2554
        %v3074 = vunpack.c.l.b16 %v2555
        %v3075 = vunpack.c.l.b16 %v2556
        %v3076 = vunpack.c.l.b16 %v2557
        %v3077 = vunpack.c.l.b16 %v2558
        %v3078 = vunpack.c.l.b16 %v2559
        %v3079 = vunpack.c.l.b16 %v2560
        %v3080 = vunpack.c.l.b16 %v2561
        %v3081 = vunpack.c.l.b16 %v2562
        %v3082 = vunpack.c.l.b16 %v2563
        %v3083 = vunpack.c.l.b16 %v2564
        %v3084 = vunpack.c.l.b16 %v2565
        %v3085 = vunpack.c.l.b16 %v2566
        %v3086 = vunpack.c.l.b16 %v2567
        %v3087 = vunpack.c.l.b16 %v2568
        %v3088 = vunpack.c.l.b16 %v2569
        %v3089 = vunpack.c.l.b16 %v2570
        %v3090 = vunpack.c.l.b16 %v2571
        %v3091 = vunpack.c.l.b16 %v2572
        %v3092 = vunpack.c.l.b16 %v2573
        %v3093 = vunpack.c.l.b16 %v2574
        %v3094 = vunpack.c.l.b16 %v2575
        %v3095 = vunpack.c.l.b16 %v2576
        %v3096 = vunpack.c.l.b16 %v2577
        %v3097 = vunpack.c.l.b16 %v2578
        %v3098 = vunpack.c.l.b16 %v2579
        %v3099 = vunpack.c.l.b16 %v2580
        %v3100 = vunpack.c.l.b16 %v2581
        %v3101 = vunpack.c.l.b16 %v2582
        %v3102 = vunpack.c.l.b16 %v2583
        %v3103 = vunpack.c.l.b16 %v2584
        %v3104 = vunpack.c.l.b16 %v2585
        %v3105 = vunpack.c.l.b16 %v2586
        %v3106 = vunpack.c.l.b16 %v2587
        %v3107 = vunpack.c.l.b16 %v2588
        %v3108 = vunpack.c.l.b16 %v2589
        %v3109 = vunpack.c.l.b16 %v2590
        %v3110 = vunpack.c.l.b16 %v2591
        %v3111 = vunpack.c.l.b16 %v2592
        %v3112 = vunpack.c.l.b16 %v2593
        %v3113 = vunpack.c.l.b16 %v2594
        %v3114 = vunpack.c.l.b16 %v2595
        %v3115 = vunpack.c.l.b16 %v2596
        %v3116 = vunpack.c.l.b16 %v2597
        %v3117 = vunpack.c.l.b16 %v2598
        %v3118 = vunpack.c.l.b16 %v2599
        %v3119 = vunpack.c.l.b16 %v2600
        %v3120 = vunpack.c.l.b16 %v2601
        %v3121 = vunpack.c.l.b16 %v2602
        %v3122 = vunpack.c.l.b16 %v2603
        %v3123 = vunpack.c.l.b16 %v2604
        %v3124 = vunpack.c.l.b16 %v2605
        %v3125 = vunpack.c.l.b16 %v2606
        %v3126 = vunpack.c.l.b16 %v2607
        %v3127 = vunpack.c.l.b16 %v2608
        %v3128 = vunpack.c.l.b16 %v2609
        %v3129 = vunpack.c.l.b16 %v2610
        %v3130 = vunpack.c.l.b16 %v2611
        %v3131 = vunpack.c.l.b16 %v2612
        %v3132 = vunpack.c.l.b16 %v2613
        %v3133 = vunpack.c.l.b16 %v2614
        %v3134 = vunpack.c.l.b16 %v2615
        %v3135 = vunpack.c.l.b16 %v2616
        %v3136 = vunpack.c.l.b16 %v2617
        %v3137 = vunpack.c.l.b16 %v2618
        %v3138 = vunpack.c.l.b16 %v2619
        %v3139 = vunpack.c.l.b16 %v2620
        %v3140 = vunpack.c.l.b16 %v2621
        %v3141 = vunpack.c.l.b16 %v2622
        %v3142 = vunpack.c.l.b16 %v2623
        %v3143 = vunpack.c.l.b16 %v2624
        %v3144 = vunpack.c.l.b16 %v2625
        %v3145 = vunpack.c.l.b16 %v2626
        %v3146 = vunpack.c.l.b16 %v2627
        %v3147 = vunpack.c.l.b16 %v2628
        %v3148 = vunpack.c.l.b16 %v2629
        %v3149 = vunpack.c.l.b16 %v2630
        %v3150 = vunpack.c.l.b16 %v2631
        %v3151 = vunpack.c.l.b16 %v2632
        %v3152 = vunpack.c.l.b16 %v2633
        %v3153 = vunpack.c.l.b16 %v2634
        %v3154 = vunpack.c.l.b16 %v2635
        %v3155 = vunpack.c.l.b16 %v2636
        %v3156 = vunpack.c.l.b16 %v2637
        %v3157 = vunpack.c.l.b16 %v2638
        %v3158 = vunpack.c.l.b16 %v2639
        %v3159 = vunpack.c.l.b16 %v2640
        %v3160 = vunpack.c.l.b16 %v2641
        %v3161 = vpack.c.b16 %v2906, %v2905
        %v3162 = vpack.c.b16 %v2908, %v2907
        %v3163 = vpack.c.b16 %v2910, %v2909
        %v3164 = vpack.c.b16 %v2912, %v2911
        %v3165 = vpack.c.b16 %v2914, %v2913
        %v3166 = vpack.c.b16 %v2916, %v2915
        %v3167 = vpack.c.b16 %v2918, %v2917
        %v3168 = vpack.c.b16 %v2920, %v2919
        %v3169 = vpack.c.b16 %v2922, %v2921
        %v3170 = vpack.c.b16 %v2924, %v2923
        %v3171 = vpack.c.b16 %v2926, %v2925
        %v3172 = vpack.c.b16 %v2928, %v2927
        %v3173 = vpack.c.b16 %v2930, %v2929
        %v3174 = vpack.c.b16 %v2932, %v2931
        %v3175 = vpack.c.b16 %v2934, %v2933
        %v3176 = vpack.c.b16 %v2936, %v2935
        %v3177 = vpack.c.b16 %v2938, %v2937
        %v3178 = vpack.c.b16 %v2940, %v2939
        %v3179 = vpack.c.b16 %v2942, %v2941
        %v3180 = vpack.c.b16 %v2944, %v2943
        %v3181 = vpack.c.b16 %v2946, %v2945
        %v3182 = vpack.c.b16 %v2948, %v2947
        %v3183 = vpack.c.b16 %v2950, %v2949
        %v3184 = vpack.c.b16 %v2952, %v2951
        %v3185 = vpack.c.b16 %v2954, %v2953
        %v3186 = vpack.c.b16 %v2956, %v2955
        %v3187 = vpack.c.b16 %v2958, %v2957
        %v3188 = vpack.c.b16 %v2960, %v2959
        %v3189 = vpack.c.b16 %v2962, %v2961
        %v3190 = vpack.c.b16 %v2964, %v2963
        %v3191 = vpack.c.b16 %v2966, %v2965
        %v3192 = vpack.c.b16 %v2968, %v2967
        %v3193 = vpack.c.b16 %v2970, %v2969
        %v3194 = vpack.c.b16 %v2972, %v2971
        %v3195 = vpack.c.b16 %v2974, %v2973
        %v3196 = vpack.c.b16 %v2976, %v2975
        %v3197 = vpack.c.b16 %v2978, %v2977
        %v3198 = vpack.c.b16 %v2980, %v2979
        %v3199 = vpack.c.b16 %v2982, %v2981
        %v3200 = vpack.c.b16 %v2984, %v2983
        %v3201 = vpack.c.b16 %v2986, %v2985
        %v3202 = vpack.c.b16 %v2988, %v2987
        %v3203 = vpack.c.b16 %v2990, %v2989
        %v3204 = vpack.c.b16 %v2992, %v2991
        %v3205 = vpack.c.b16 %v2994, %v2993
        %v3206 = vpack.c.b16 %v2996, %v2995
        %v3207 = vpack.c.b16 %v2998, %v2997
        %v3208 = vpack.c.b16 %v3000, %v2999
        %v3209 = vpack.c.b16 %v3002, %v3001
        %v3210 = vpack.c.b16 %v3004, %v3003
        %v3211 = vpack.c.b16 %v3006, %v3005
        %v3212 = vpack.c.b16 %v3008, %v3007
        %v3213 = vpack.c.b16 %v3010, %v3009
        %v3214 = vpack.c.b16 %v3012, %v3011
        %v3215 = vpack.c.b16 %v3014, %v3013
        %v3216 = vpack.c.b16 %v3016, %v3015
        %v3217 = vpack.c.b16 %v3018, %v3017
        %v3218 = vpack.c.b16 %v3020, %v3019
        %v3219 = vpack.c.b16 %v3022, %v3021
        %v3220 = vpack.c.b16 %v3024, %v3023
        %v3221 = vpack.c.b16 %v3026, %v3025
        %v3222 = vpack.c.b16 %v3028, %v3027
        %v3223 = vpack.c.b16 %v3030, %v3029
        %v3224 = vpack.c.b16 %v3032, %v3031
        %v3225 = vpack.c.b16 %v3034, %v3033
        %v3226 = vpack.c.b16 %v3036, %v3035
        %v3227 = vpack.c.b16 %v3038, %v3037
        %v3228 = vpack.c.b16 %v3040, %v3039
        %v3229 = vpack.c.b16 %v3042, %v3041
        %v3230 = vpack.c.b16 %v3044, %v3043
        %v3231 = vpack.c.b16 %v3046, %v3045
        %v3232 = vpack.c.b16 %v3048, %v3047
        %v3233 = vpack.c.b16 %v3050, %v3049
        %v3234 = vpack.c.b16 %v3052, %v3051
        %v3235 = vpack.c.b16 %v3054, %v3053
        %v3236 = vpack.c.b16 %v3056, %v3055
        %v3237 = vpack.c.b16 %v3058, %v3057
        %v3238 = vpack.c.b16 %v3060, %v3059
        %v3239 = vpack.c.b16 %v3062, %v3061
        %v3240 = vpack.c.b16 %v3064, %v3063
        %v3241 = vpack.c.b16 %v3066, %v3065
        %v3242 = vpack.c.b16 %v3068, %v3067
        %v3243 = vpack.c.b16 %v3070, %v3069
        %v3244 = vpack.c.b16 %v3072, %v3071
        %v3245 = vpack.c.b16 %v3074, %v3073
        %v3246 = vpack.c.b16 %v3076, %v3075
        %v3247 = vpack.c.b16 %v3078, %v3077
        %v3248 = vpack.c.b16 %v3080, %v3079
        %v3249 = vpack.c.b16 %v3082, %v3081
        %v3250 = vpack.c.b16 %v3084, %v3083
        %v3251 = vpack.c.b16 %v3086, %v3085
        %v3252 = vpack.c.b16 %v3088, %v3087
        %v3253 = vpack.c.b16 %v3090, %v3089
        %v3254 = vpack.c.b16 %v3092, %v3091
        %v3255 = vpack.c.b16 %v3094, %v3093
        %v3256 = vpack.c.b16 %v3096, %v3095
        %v3257 = vpack.c.b16 %v3098, %v3097
        %v3258 = vpack.c.b16 %v3100, %v3099
        %v3259 = vpack.c.b16 %v3102, %v3101
        %v3260 = vpack.c.b16 %v3104, %v3103
        %v3261 = vpack.c.b16 %v3106, %v3105
        %v3262 = vpack.c.b16 %v3108, %v3107
        %v3263 = vpack.c.b16 %v3110, %v3109
        %v3264 = vpack.c.b16 %v3112, %v3111
        %v3265 = vpack.c.b16 %v3114, %v3113
        %v3266 = vpack.c.b16 %v3116, %v3115
        %v3267 = vpack.c.b16 %v3118, %v3117
        %v3268 = vpack.c.b16 %v3120, %v3119
        %v3269 = vpack.c.b16 %v3122, %v3121
        %v3270 = vpack.c.b16 %v3124, %v3123
        %v3271 = vpack.c.b16 %v3126, %v3125
        %v3272 = vpack.c.b16 %v3128, %v3127
        %v3273 = vpack.c.b16 %v3130, %v3129
        %v3274 = vpack.c.b16 %v3132, %v3131
        %v3275 = vpack.c.b16 %v3134, %v3133
        %v3276 = vpack.c.b16 %v3136, %v3135
        %v3277 = vpack.c.b16 %v3138, %v3137
        %v3278 = vpack.c.b16 %v3140, %v3139
        %v3279 = vpack.c.b16 %v3142, %v3141
        %v3280 = vpack.c.b16 %v3144, %v3143
        %v3281 = vpack.c.b16 %v3146, %v3145
        %v3282 = vpack.c.b16 %v3148, %v3147
        %v3283 = vpack.c.b16 %v3150, %v3149
        %v3284 = vpack.c.b16 %v3152, %v3151
        %v3285 = vpack.c.b16 %v3154, %v3153
        %v3286 = vpack.c.b16 %v3156, %v3155
        %v3287 = vpack.c.b16 %v3158, %v3157
        %v3288 = vpack.c.b16 %v3160, %v3159
        %3417 = vmatprep.subr.bf16.mxu0 0
        %3418 = vmatpush1.bf16.msra.mxu0 %v3161
        %3419 = vmatprep.subr.bf16.mxu0 0
        %3420 = vmatpush1.bf16.msra.mxu0 %v3162
        %3421 = vmatprep.subr.bf16.mxu0 0
        %3422 = vmatpush1.bf16.msra.mxu0 %v3163
        %3423 = vmatprep.subr.bf16.mxu0 0
        %3424 = vmatpush1.bf16.msra.mxu0 %v3164
        %3425 = vmatprep.subr.bf16.mxu0 0
        %3426 = vmatpush1.bf16.msra.mxu0 %v3165
        %3427 = vmatprep.subr.bf16.mxu0 0
        %3428 = vmatpush1.bf16.msra.mxu0 %v3166
        %3429 = vmatprep.subr.bf16.mxu0 0
        %3430 = vmatpush1.bf16.msra.mxu0 %v3167
        %3431 = vmatprep.subr.bf16.mxu0 0
        %3432 = vmatpush1.bf16.msra.mxu0 %v3168
        %3433 = vmatprep.subr.bf16.mxu0 0
        %3434 = vmatpush1.bf16.msra.mxu0 %v3169
        %3435 = vmatprep.subr.bf16.mxu0 0
        %3436 = vmatpush1.bf16.msra.mxu0 %v3170
        %3437 = vmatprep.subr.bf16.mxu0 0
        %3438 = vmatpush1.bf16.msra.mxu0 %v3171
        %3439 = vmatprep.subr.bf16.mxu0 0
        %3440 = vmatpush1.bf16.msra.mxu0 %v3172
        %3441 = vmatprep.subr.bf16.mxu0 0
        %3442 = vmatpush1.bf16.msra.mxu0 %v3173
        %3443 = vmatprep.subr.bf16.mxu0 0
        %3444 = vmatpush1.bf16.msra.mxu0 %v3174
        %3445 = vmatprep.subr.bf16.mxu0 0
        %3446 = vmatpush1.bf16.msra.mxu0 %v3175
        %3447 = vmatprep.subr.bf16.mxu0 0
        %3448 = vmatpush1.bf16.msra.mxu0 %v3176
        %3449 = vmatprep.mubr.bf16.mxu0 %v2371
        %3450 = vmatmul.mubr.bf16.gmra.mrb[0].mxu0 %v2370
        %v3451 = vpop.f32.mrb[0].mxu0
        %v3452 = vadd.f32 %v2647, %v3451
        %v3453 = vpop.f32.mrb[0].mxu0
        %v3454 = vpop.f32.mrb[0].mxu0
        %v3455 = vadd.f32 %v2647, %v3454
        %v3456 = vpop.f32.mrb[0].mxu0
        %3457 = vdwg.mxu0
        %3458 = vmatprep.subr.bf16.mxu0 0
        %3459 = vmatpush1.bf16.msra.mxu0 %v3177
        %3460 = vmatprep.subr.bf16.mxu0 0
        %3461 = vmatpush1.bf16.msra.mxu0 %v3178
        %3462 = vmatprep.subr.bf16.mxu0 0
        %3463 = vmatpush1.bf16.msra.mxu0 %v3179
        %3464 = vmatprep.subr.bf16.mxu0 0
        %3465 = vmatpush1.bf16.msra.mxu0 %v3180
        %3466 = vmatprep.subr.bf16.mxu0 0
        %3467 = vmatpush1.bf16.msra.mxu0 %v3181
        %3468 = vmatprep.subr.bf16.mxu0 0
        %3469 = vmatpush1.bf16.msra.mxu0 %v3182
        %3470 = vmatprep.subr.bf16.mxu0 0
        %3471 = vmatpush1.bf16.msra.mxu0 %v3183
        %3472 = vmatprep.subr.bf16.mxu0 0
        %3473 = vmatpush1.bf16.msra.mxu0 %v3184
        %3474 = vmatprep.subr.bf16.mxu0 0
        %3475 = vmatpush1.bf16.msra.mxu0 %v3185
        %3476 = vmatprep.subr.bf16.mxu0 0
        %3477 = vmatpush1.bf16.msra.mxu0 %v3186
        %3478 = vmatprep.subr.bf16.mxu0 0
        %3479 = vmatpush1.bf16.msra.mxu0 %v3187
        %3480 = vmatprep.subr.bf16.mxu0 0
        %3481 = vmatpush1.bf16.msra.mxu0 %v3188
        %3482 = vmatprep.subr.bf16.mxu0 0
        %3483 = vmatpush1.bf16.msra.mxu0 %v3189
        %3484 = vmatprep.subr.bf16.mxu0 0
        %3485 = vmatpush1.bf16.msra.mxu0 %v3190
        %3486 = vmatprep.subr.bf16.mxu0 0
        %3487 = vmatpush1.bf16.msra.mxu0 %v3191
        %3488 = vmatprep.subr.bf16.mxu0 0
        %3489 = vmatpush1.bf16.msra.mxu0 %v3192
        %3490 = vmatprep.mubr.bf16.mxu0 %v2373
        %3491 = vmatmul.mubr.bf16.gmra.mrb[0].mxu0 %v2372
        %v3492 = vpop.f32.mrb[0].mxu0
        %v3493 = vadd.f32 %v3452, %v3492
        %v3494 = vpop.f32.mrb[0].mxu0
        %v3495 = vpop.f32.mrb[0].mxu0
        %v3496 = vadd.f32 %v3455, %v3495
        %v3497 = vpop.f32.mrb[0].mxu0
        %3498 = vdwg.mxu0
        %3499 = vmatprep.subr.bf16.mxu0 0
        %3500 = vmatpush1.bf16.msra.mxu0 %v3193
        %3501 = vmatprep.subr.bf16.mxu0 0
        %3502 = vmatpush1.bf16.msra.mxu0 %v3194
        %3503 = vmatprep.subr.bf16.mxu0 0
        %3504 = vmatpush1.bf16.msra.mxu0 %v3195
        %3505 = vmatprep.subr.bf16.mxu0 0
        %3506 = vmatpush1.bf16.msra.mxu0 %v3196
        %3507 = vmatprep.subr.bf16.mxu0 0
        %3508 = vmatpush1.bf16.msra.mxu0 %v3197
        %3509 = vmatprep.subr.bf16.mxu0 0
        %3510 = vmatpush1.bf16.msra.mxu0 %v3198
        %3511 = vmatprep.subr.bf16.mxu0 0
        %3512 = vmatpush1.bf16.msra.mxu0 %v3199
        %3513 = vmatprep.subr.bf16.mxu0 0
        %3514 = vmatpush1.bf16.msra.mxu0 %v3200
        %3515 = vmatprep.subr.bf16.mxu0 0
        %3516 = vmatpush1.bf16.msra.mxu0 %v3201
        %3517 = vmatprep.subr.bf16.mxu0 0
        %3518 = vmatpush1.bf16.msra.mxu0 %v3202
        %3519 = vmatprep.subr.bf16.mxu0 0
        %3520 = vmatpush1.bf16.msra.mxu0 %v3203
        %3521 = vmatprep.subr.bf16.mxu0 0
        %3522 = vmatpush1.bf16.msra.mxu0 %v3204
        %3523 = vmatprep.subr.bf16.mxu0 0
        %3524 = vmatpush1.bf16.msra.mxu0 %v3205
        %3525 = vmatprep.subr.bf16.mxu0 0
        %3526 = vmatpush1.bf16.msra.mxu0 %v3206
        %3527 = vmatprep.subr.bf16.mxu0 0
        %3528 = vmatpush1.bf16.msra.mxu0 %v3207
        %3529 = vmatprep.subr.bf16.mxu0 0
        %3530 = vmatpush1.bf16.msra.mxu0 %v3208
        %3531 = vmatprep.mubr.bf16.mxu0 %v2375
        %3532 = vmatmul.mubr.bf16.gmra.mrb[0].mxu0 %v2374
        %v3533 = vpop.f32.mrb[0].mxu0
        %v3534 = vadd.f32 %v3493, %v3533
        %v3535 = vpop.f32.mrb[0].mxu0
        %v3536 = vpop.f32.mrb[0].mxu0
        %v3537 = vadd.f32 %v3496, %v3536
        %v3538 = vpop.f32.mrb[0].mxu0
        %3539 = vdwg.mxu0
        %3540 = vmatprep.subr.bf16.mxu0 0
        %3541 = vmatpush1.bf16.msra.mxu0 %v3209
        %3542 = vmatprep.subr.bf16.mxu0 0
        %3543 = vmatpush1.bf16.msra.mxu0 %v3210
        %3544 = vmatprep.subr.bf16.mxu0 0
        %3545 = vmatpush1.bf16.msra.mxu0 %v3211
        %3546 = vmatprep.subr.bf16.mxu0 0
        %3547 = vmatpush1.bf16.msra.mxu0 %v3212
        %3548 = vmatprep.subr.bf16.mxu0 0
        %3549 = vmatpush1.bf16.msra.mxu0 %v3213
        %3550 = vmatprep.subr.bf16.mxu0 0
        %3551 = vmatpush1.bf16.msra.mxu0 %v3214
        %3552 = vmatprep.subr.bf16.mxu0 0
        %3553 = vmatpush1.bf16.msra.mxu0 %v3215
        %3554 = vmatprep.subr.bf16.mxu0 0
        %3555 = vmatpush1.bf16.msra.mxu0 %v3216
        %3556 = vmatprep.subr.bf16.mxu0 0
        %3557 = vmatpush1.bf16.msra.mxu0 %v3217
        %3558 = vmatprep.subr.bf16.mxu0 0
        %3559 = vmatpush1.bf16.msra.mxu0 %v3218
        %3560 = vmatprep.subr.bf16.mxu0 0
        %3561 = vmatpush1.bf16.msra.mxu0 %v3219
        %3562 = vmatprep.subr.bf16.mxu0 0
        %3563 = vmatpush1.bf16.msra.mxu0 %v3220
        %3564 = vmatprep.subr.bf16.mxu0 0
        %3565 = vmatpush1.bf16.msra.mxu0 %v3221
        %3566 = vmatprep.subr.bf16.mxu0 0
        %3567 = vmatpush1.bf16.msra.mxu0 %v3222
        %3568 = vmatprep.subr.bf16.mxu0 0
        %3569 = vmatpush1.bf16.msra.mxu0 %v3223
        %3570 = vmatprep.subr.bf16.mxu0 0
        %3571 = vmatpush1.bf16.msra.mxu0 %v3224
        %3572 = vmatprep.mubr.bf16.mxu0 %v2377
        %3573 = vmatmul.mubr.bf16.gmra.mrb[0].mxu0 %v2376
        %v3574 = vpop.f32.mrb[0].mxu0
        %v3575 = vadd.f32 %v3534, %v3574
        %v3576 = vpop.f32.mrb[0].mxu0
        %v3577 = vpop.f32.mrb[0].mxu0
        %v3578 = vadd.f32 %v3537, %v3577
        %v3579 = vpop.f32.mrb[0].mxu0
        %3580 = vdwg.mxu0
        %3581 = vmatprep.subr.bf16.mxu0 0
        %3582 = vmatpush1.bf16.msra.mxu0 %v3225
        %3583 = vmatprep.subr.bf16.mxu0 0
        %3584 = vmatpush1.bf16.msra.mxu0 %v3226
        %3585 = vmatprep.subr.bf16.mxu0 0
        %3586 = vmatpush1.bf16.msra.mxu0 %v3227
        %3587 = vmatprep.subr.bf16.mxu0 0
        %3588 = vmatpush1.bf16.msra.mxu0 %v3228
        %3589 = vmatprep.subr.bf16.mxu0 0
        %3590 = vmatpush1.bf16.msra.mxu0 %v3229
        %3591 = vmatprep.subr.bf16.mxu0 0
        %3592 = vmatpush1.bf16.msra.mxu0 %v3230
        %3593 = vmatprep.subr.bf16.mxu0 0
        %3594 = vmatpush1.bf16.msra.mxu0 %v3231
        %3595 = vmatprep.subr.bf16.mxu0 0
        %3596 = vmatpush1.bf16.msra.mxu0 %v3232
        %3597 = vmatprep.subr.bf16.mxu0 0
        %3598 = vmatpush1.bf16.msra.mxu0 %v3233
        %3599 = vmatprep.subr.bf16.mxu0 0
        %3600 = vmatpush1.bf16.msra.mxu0 %v3234
        %3601 = vmatprep.subr.bf16.mxu0 0
        %3602 = vmatpush1.bf16.msra.mxu0 %v3235
        %3603 = vmatprep.subr.bf16.mxu0 0
        %3604 = vmatpush1.bf16.msra.mxu0 %v3236
        %3605 = vmatprep.subr.bf16.mxu0 0
        %3606 = vmatpush1.bf16.msra.mxu0 %v3237
        %3607 = vmatprep.subr.bf16.mxu0 0
        %3608 = vmatpush1.bf16.msra.mxu0 %v3238
        %3609 = vmatprep.subr.bf16.mxu0 0
        %3610 = vmatpush1.bf16.msra.mxu0 %v3239
        %3611 = vmatprep.subr.bf16.mxu0 0
        %3612 = vmatpush1.bf16.msra.mxu0 %v3240
        %3613 = vmatprep.mubr.bf16.mxu0 %v2379
        %3614 = vmatmul.mubr.bf16.gmra.mrb[0].mxu0 %v2378
        %v3615 = vpop.f32.mrb[0].mxu0
        %v3616 = vadd.f32 %v3575, %v3615
        %v3617 = vpop.f32.mrb[0].mxu0
        %v3618 = vpop.f32.mrb[0].mxu0
        %v3619 = vadd.f32 %v3578, %v3618
        %v3620 = vpop.f32.mrb[0].mxu0
        %3621 = vdwg.mxu0
        %3622 = vmatprep.subr.bf16.mxu0 0
        %3623 = vmatpush1.bf16.msra.mxu0 %v3241
        %3624 = vmatprep.subr.bf16.mxu0 0
        %3625 = vmatpush1.bf16.msra.mxu0 %v3242
        %3626 = vmatprep.subr.bf16.mxu0 0
        %3627 = vmatpush1.bf16.msra.mxu0 %v3243
        %3628 = vmatprep.subr.bf16.mxu0 0
        %3629 = vmatpush1.bf16.msra.mxu0 %v3244
        %3630 = vmatprep.subr.bf16.mxu0 0
        %3631 = vmatpush1.bf16.msra.mxu0 %v3245
        %3632 = vmatprep.subr.bf16.mxu0 0
        %3633 = vmatpush1.bf16.msra.mxu0 %v3246
        %3634 = vmatprep.subr.bf16.mxu0 0
        %3635 = vmatpush1.bf16.msra.mxu0 %v3247
        %3636 = vmatprep.subr.bf16.mxu0 0
        %3637 = vmatpush1.bf16.msra.mxu0 %v3248
        %3638 = vmatprep.subr.bf16.mxu0 0
        %3639 = vmatpush1.bf16.msra.mxu0 %v3249
        %3640 = vmatprep.subr.bf16.mxu0 0
        %3641 = vmatpush1.bf16.msra.mxu0 %v3250
        %3642 = vmatprep.subr.bf16.mxu0 0
        %3643 = vmatpush1.bf16.msra.mxu0 %v3251
        %3644 = vmatprep.subr.bf16.mxu0 0
        %3645 = vmatpush1.bf16.msra.mxu0 %v3252
        %3646 = vmatprep.subr.bf16.mxu0 0
        %3647 = vmatpush1.bf16.msra.mxu0 %v3253
        %3648 = vmatprep.subr.bf16.mxu0 0
        %3649 = vmatpush1.bf16.msra.mxu0 %v3254
        %3650 = vmatprep.subr.bf16.mxu0 0
        %3651 = vmatpush1.bf16.msra.mxu0 %v3255
        %3652 = vmatprep.subr.bf16.mxu0 0
        %3653 = vmatpush1.bf16.msra.mxu0 %v3256
        %3654 = vmatprep.mubr.bf16.mxu0 %v2381
        %3655 = vmatmul.mubr.bf16.gmra.mrb[0].mxu0 %v2380
        %v3656 = vpop.f32.mrb[0].mxu0
        %v3657 = vadd.f32 %v3616, %v3656
        %v3658 = vpop.f32.mrb[0].mxu0
        %v3659 = vpop.f32.mrb[0].mxu0
        %v3660 = vadd.f32 %v3619, %v3659
        %v3661 = vpop.f32.mrb[0].mxu0
        %3662 = vdwg.mxu0
        %3663 = vmatprep.subr.bf16.mxu0 0
        %3664 = vmatpush1.bf16.msra.mxu0 %v3257
        %3665 = vmatprep.subr.bf16.mxu0 0
        %3666 = vmatpush1.bf16.msra.mxu0 %v3258
        %3667 = vmatprep.subr.bf16.mxu0 0
        %3668 = vmatpush1.bf16.msra.mxu0 %v3259
        %3669 = vmatprep.subr.bf16.mxu0 0
        %3670 = vmatpush1.bf16.msra.mxu0 %v3260
        %3671 = vmatprep.subr.bf16.mxu0 0
        %3672 = vmatpush1.bf16.msra.mxu0 %v3261
        %3673 = vmatprep.subr.bf16.mxu0 0
        %3674 = vmatpush1.bf16.msra.mxu0 %v3262
        %3675 = vmatprep.subr.bf16.mxu0 0
        %3676 = vmatpush1.bf16.msra.mxu0 %v3263
        %3677 = vmatprep.subr.bf16.mxu0 0
        %3678 = vmatpush1.bf16.msra.mxu0 %v3264
        %3679 = vmatprep.subr.bf16.mxu0 0
        %3680 = vmatpush1.bf16.msra.mxu0 %v3265
        %3681 = vmatprep.subr.bf16.mxu0 0
        %3682 = vmatpush1.bf16.msra.mxu0 %v3266
        %3683 = vmatprep.subr.bf16.mxu0 0
        %3684 = vmatpush1.bf16.msra.mxu0 %v3267
        %3685 = vmatprep.subr.bf16.mxu0 0
        %3686 = vmatpush1.bf16.msra.mxu0 %v3268
        %3687 = vmatprep.subr.bf16.mxu0 0
        %3688 = vmatpush1.bf16.msra.mxu0 %v3269
        %3689 = vmatprep.subr.bf16.mxu0 0
        %3690 = vmatpush1.bf16.msra.mxu0 %v3270
        %3691 = vmatprep.subr.bf16.mxu0 0
        %3692 = vmatpush1.bf16.msra.mxu0 %v3271
        %3693 = vmatprep.subr.bf16.mxu0 0
        %3694 = vmatpush1.bf16.msra.mxu0 %v3272
        %3695 = vmatprep.mubr.bf16.mxu0 %v2383
        %3696 = vmatmul.mubr.bf16.gmra.mrb[0].mxu0 %v2382
        %v3697 = vpop.f32.mrb[0].mxu0
        %v3698 = vadd.f32 %v3657, %v3697
        %v3699 = vpop.f32.mrb[0].mxu0
        %v3700 = vpop.f32.mrb[0].mxu0
        %v3701 = vadd.f32 %v3660, %v3700
        %v3702 = vpop.f32.mrb[0].mxu0
        %3703 = vdwg.mxu0
        %3704 = vmatprep.subr.bf16.mxu0 0
        %3705 = vmatpush1.bf16.msra.mxu0 %v3273
        %3706 = vmatprep.subr.bf16.mxu0 0
        %3707 = vmatpush1.bf16.msra.mxu0 %v3274
        %3708 = vmatprep.subr.bf16.mxu0 0
        %3709 = vmatpush1.bf16.msra.mxu0 %v3275
        %3710 = vmatprep.subr.bf16.mxu0 0
        %3711 = vmatpush1.bf16.msra.mxu0 %v3276
        %3712 = vmatprep.subr.bf16.mxu0 0
        %3713 = vmatpush1.bf16.msra.mxu0 %v3277
        %3714 = vmatprep.subr.bf16.mxu0 0
        %3715 = vmatpush1.bf16.msra.mxu0 %v3278
        %3716 = vmatprep.subr.bf16.mxu0 0
        %3717 = vmatpush1.bf16.msra.mxu0 %v3279
        %3718 = vmatprep.subr.bf16.mxu0 0
        %3719 = vmatpush1.bf16.msra.mxu0 %v3280
        %3720 = vmatprep.subr.bf16.mxu0 0
        %3721 = vmatpush1.bf16.msra.mxu0 %v3281
        %3722 = vmatprep.subr.bf16.mxu0 0
        %3723 = vmatpush1.bf16.msra.mxu0 %v3282
        %3724 = vmatprep.subr.bf16.mxu0 0
        %3725 = vmatpush1.bf16.msra.mxu0 %v3283
        %3726 = vmatprep.subr.bf16.mxu0 0
        %3727 = vmatpush1.bf16.msra.mxu0 %v3284
        %3728 = vmatprep.subr.bf16.mxu0 0
        %3729 = vmatpush1.bf16.msra.mxu0 %v3285
        %3730 = vmatprep.subr.bf16.mxu0 0
        %3731 = vmatpush1.bf16.msra.mxu0 %v3286
        %3732 = vmatprep.subr.bf16.mxu0 0
        %3733 = vmatpush1.bf16.msra.mxu0 %v3287
        %3734 = vmatprep.subr.bf16.mxu0 0
        %3735 = vmatpush1.bf16.msra.mxu0 %v3288
        %3736 = vmatprep.mubr.bf16.mxu0 %v2385
        %3737 = vmatmul.mubr.bf16.gmra.mrb[0].mxu0 %v2384
        %v3738 = vpop.f32.mrb[0].mxu0
        %v3739 = vadd.f32 %v3698, %v3738
        %v3740 = vpop.f32.mrb[0].mxu0
        %v3741 = vpop.f32.mrb[0].mxu0
        %v3742 = vadd.f32 %v3701, %v3741
        %v3743 = vpop.f32.mrb[0].mxu0
        %3744 = vdwg.mxu0
        %v3745 = vadd.f32 %v1712, %v3739
        %v3746 = vadd.f32 %v1713, %v3742
        %v3747 = vld [vmem:[%s786] sm:$0x1]
        %v3748 = vld [vmem:[%s789] sm:$0x1]
        %v3749 = vsel %vm912, %v3745, 0.0
        %3750 = vadd.xlane.f32.xlu0 %v3749
        %v3751 = vpop.xlane.xlu0 %3750
        %v3752 = vsel %vm912, %v3746, 0.0
        %3753 = vadd.xlane.f32.xlu0 %v3752
        %v3754 = vpop.xlane.xlu0 %3753
        %v3755 = vmul.f32 %v3751, %v1677
        %v3756 = vmul.f32 %v3754, %v1677
        %v3757 = vsub.f32 %v3745, %v3755
        %v3758 = vsub.f32 %v3746, %v3756
        %v3759 = vmul.f32 %v3757, %v3757
        %v3760 = vmul.f32 %v3758, %v3758
        %v3761 = vsel %vm912, %v3759, 0.0
        %3762 = vadd.xlane.f32.xlu0 %v3761
        %v3763 = vpop.xlane.xlu0 %3762
        %v3764 = vsel %vm912, %v3760, 0.0
        %3765 = vadd.xlane.f32.xlu0 %v3764
        %v3766 = vpop.xlane.xlu0 %3765
        %v3767 = vmul.f32 %v3763, %v1677
        %v3768 = vmul.f32 %v3766, %v1677
        %v3769 = vadd.f32 %v3767, 1e-05
        %v3770 = vadd.f32 %v3768, 1e-05
        %v3771 = vrsqrt.pop %v3769
        %v3772 = vrsqrt.pop %v3770
        %v3773 = vmul.f32 %v3757, %v3771
        %v3774 = vmul.f32 %v3758, %v3772
        %v3776 = vlaneseq
        %v3777 = vshrl.u32 %v3776, 7
        %v3778 = vsub.s32 0, %v3777
        %v3779 = vrot.slane %v3747, %v3778
        %v3781 = vmul.f32 %v3773, %v3779
        %v3782 = vmul.f32 %v3774, %v3779
        %v3784 = vlaneseq
        %v3785 = vshrl.u32 %v3784, 7
        %v3786 = vsub.s32 0, %v3785
        %v3787 = vrot.slane %v3748, %v3786
        %v3789 = vadd.f32 %v3781, %v3787
        %v3790 = vadd.f32 %v3782, %v3787
        %3791 = vst.msk [vmem:[#allocation2] sm:$0xff] %vm912, %v3789
        %3792 = vst.msk [vmem:[#allocation2 + $0x8] sm:$0xff] %vm912, %v3790
        %p3793 = scmp.eq.s32.totalorder %s34, 1
        // Predicated region
        $region101: #{transformer_forward.1} parent=95 // pred_check
          %p3794 = pneg %p3793
        $region102: #{transformer_forward.1} parent=95 // pred_check_branch
          %3796 = sbr.rel (%p3794) target = $region104
        $region103: #{transformer_forward.1} parent=95 // pred_region
          %v3797 = vadd.f32 %v3789, %v3790
          %v3798 = vmul.f32 %v3797, 0.5
          %3799 = vst.msk [vmem:[#allocation5] sm:$0xff] %vm912, %v3798
          %v3800 = vld [vmem:[%s17] sm:$0xff]
          %v3801 = vld [vmem:[%s17 + $0x8] sm:$0xff]
          %v3802 = vld [vmem:[%s17 + $0x10] sm:$0xff]
          %v3803 = vld [vmem:[%s17 + $0x18] sm:$0xff]
          %v3804 = vld [vmem:[%s18] sm:$0x1]
          %v3806 = vlaneseq
          %v3807 = vshrl.u32 %v3806, 7
          %v3808 = vsub.s32 0, %v3807
          %v3809 = vrot.slane %v3804, %v3808
          %v3812 = vsel %vm912, %v3798, 0
          %3814 = vmatprep.subr.mxu0 0.0
          %3815 = vmatpush1.msra.mxu0 %v3800
          %3816 = vmatprep.subr.mxu0 0.0
          %3817 = vmatpush1.msra.mxu0 %v3801
          %3818 = vmatprep.subr.mxu0 0.0
          %3819 = vmatpush1.msra.mxu0 %v3802
          %3820 = vmatprep.subr.mxu0 0.0
          %3821 = vmatpush1.msra.mxu0 %v3803
          %3822 = vmatprep.subr.mxu0 0.0
          %3823 = vmatpush1.msra.mxu0 0.0
          %3824 = vmatprep.subr.mxu0 0.0
          %3825 = vmatpush1.msra.mxu0 0.0
          %3826 = vmatprep.subr.mxu0 0.0
          %3827 = vmatpush1.msra.mxu0 0.0
          %3828 = vmatprep.subr.mxu0 0.0
          %3829 = vmatpush1.msra.mxu0 0.0
          %3830 = vmatprep.subr.mxu0 0.0
          %3831 = vmatpush1.msra.mxu0 0.0
          %3832 = vmatprep.subr.mxu0 0.0
          %3833 = vmatpush1.msra.mxu0 0.0
          %3834 = vmatprep.subr.mxu0 0.0
          %3835 = vmatpush1.msra.mxu0 0.0
          %3836 = vmatprep.subr.mxu0 0.0
          %3837 = vmatpush1.msra.mxu0 0.0
          %3838 = vmatprep.subr.mxu0 0.0
          %3839 = vmatpush1.msra.mxu0 0.0
          %3840 = vmatprep.subr.mxu0 0.0
          %3841 = vmatpush1.msra.mxu0 0.0
          %3842 = vmatprep.subr.mxu0 0.0
          %3843 = vmatpush1.msra.mxu0 0.0
          %3844 = vmatprep.subr.mxu0 0.0
          %3845 = vmatpush1.msra.mxu0 0.0
          %3846 = vmatprep.subr.mxu0 0.0
          %3847 = vmatpush1.msra.mxu0 0.0
          %3848 = vmatprep.subr.mxu0 0.0
          %3849 = vmatpush1.msra.mxu0 0.0
          %3850 = vmatprep.subr.mxu0 0.0
          %3851 = vmatpush1.msra.mxu0 0.0
          %3852 = vmatprep.subr.mxu0 0.0
          %3853 = vmatpush1.msra.mxu0 0.0
          %3854 = vmatprep.subr.mxu0 0.0
          %3855 = vmatpush1.msra.mxu0 0.0
          %3856 = vmatprep.subr.mxu0 0.0
          %3857 = vmatpush1.msra.mxu0 0.0
          %3858 = vmatprep.subr.mxu0 0.0
          %3859 = vmatpush1.msra.mxu0 0.0
          %3860 = vmatprep.subr.mxu0 0.0
          %3861 = vmatpush1.msra.mxu0 0.0
          %3862 = vmatprep.subr.mxu0 0.0
          %3863 = vmatpush1.msra.mxu0 0.0
          %3864 = vmatprep.subr.mxu0 0.0
          %3865 = vmatpush1.msra.mxu0 0.0
          %3866 = vmatprep.subr.mxu0 0.0
          %3867 = vmatpush1.msra.mxu0 0.0
          %3868 = vmatprep.subr.mxu0 0.0
          %3869 = vmatpush1.msra.mxu0 0.0
          %3870 = vmatprep.subr.mxu0 0.0
          %3871 = vmatpush1.msra.mxu0 0.0
          %3872 = vmatprep.subr.mxu0 0.0
          %3873 = vmatpush1.msra.mxu0 0.0
          %3874 = vmatprep.subr.mxu0 0.0
          %3875 = vmatpush1.msra.mxu0 0.0
          %3876 = vmatprep.subr.mxu0 0.0
          %3877 = vmatpush1.msra.mxu0 0.0
          %3878 = vmatprep.mubr.f32.mxu0 0.0
          %3879 = vmatmul.mubr.f32.gmra.mrb[0].mxu0 %v3812
          %v3880 = vpop.f32.mrb[0].mxu0
          %v3881 = vadd.f32 %v3809, %v3880
          %v3882 = vpop.f32.mrb[0].mxu0
          %3883 = vdwg.mxu0
          %3884 = vst [vmem:[#allocation3] sm:$0xff] %v3881
        $region104: #{transformer_forward.1} parent=95 // pred_fallthru
          _
        // Predicated region
        $region105: #{transformer_forward.1} parent=95 // pred_check
          %p3885 = pneg %p506
        $region106: #{transformer_forward.1} parent=95 // pred_check_branch
          %3887 = sbr.rel (%p3885) target = $region108
        $region107: #{transformer_forward.1} parent=95 // pred_region
          %s3889 = ssub.s32 128, 128
          %3890 = vsyncadd [#allocation4], %s3889
          %s3892 = sshll.u32 [#allocation3], 4
          %s3893 = int_to_ptr.vmem [resolvable:$true] %s3892
          %3895 = dma.vmem_to_hbm [thread:$0]  %s3893, 128, %s19, [#allocation4]
        $region108: #{transformer_forward.1} parent=95 // pred_fallthru
          _
        // Predicated region
        $region109: #{transformer_forward.1} parent=95 // pred_check
          %p3896 = pneg %p527
        $region110: #{transformer_forward.1} parent=95 // pred_check_branch
          %3898 = sbr.rel (%p3896) target = $region112
        $region111: #{transformer_forward.1} parent=95 // pred_region
          %s3900 = ssub.s32 128, 128
          %3901 = vsyncadd [#allocation6], %s3900
          %s3903 = sshll.u32 [#allocation5], 4
          %s3904 = int_to_ptr.vmem [resolvable:$true] %s3903
          %3906 = dma.vmem_to_hbm [thread:$0]  %s3904, 128, %s20, [#allocation6]
        $region112: #{transformer_forward.1} parent=95 // pred_fallthru
          _
        // Predicated region
        $region113: #{transformer_forward.1} parent=95 // pred_check
          %p3907 = pneg %p506
        $region114: #{transformer_forward.1} parent=95 // pred_check_branch
          %3909 = sbr.rel (%p3907) target = $region116
        $region115: #{transformer_forward.1} parent=95 // pred_region
          %3910 = dma.done [#allocation4], 128
        $region116: #{transformer_forward.1} parent=95 // pred_fallthru
          _
        // Predicated region
        $region117: #{transformer_forward.1} parent=95 // pred_check
          %p3911 = pneg %p527
        $region118: #{transformer_forward.1} parent=95 // pred_check_branch
          %3913 = sbr.rel (%p3911) target = $region120
        $region119: #{transformer_forward.1} parent=95 // pred_region
          %3914 = dma.done [#allocation6], 128
        $region120: #{transformer_forward.1} parent=95 // pred_fallthru
          _
      $region96: #{transformer_forward.1} parent=5 // pred_fallthru
        _
      %p3915 = scmp.le.s32.totalorder 2, %s29
      // Predicated region
      $region121: #{transformer_forward.1} parent=5 // pred_check
        %p3916 = pneg %p3915
      $region122: #{transformer_forward.1} parent=5 // pred_check_branch
        %3918 = sbr.rel (%p3916) target = $region124
      $region123: #{transformer_forward.1} parent=5 // pred_region
        %s3919 = ssub.s32 %s29, 2
      $region124: #{transformer_forward.1} parent=5 // pred_fallthru
        _
    $region6: #{transformer_forward.1} parent=1 // loop_footer
      %s33 = sadd.s32 1, %s29
    $region7: #{transformer_forward.1} parent=1 // loop_footer_branch
      %28 = sbr.rel target = $region3
    $region8: #{transformer_forward.1} parent=1 // loop_exit
      _
    %3920 = vsyncpa [#allocation4], 1
    %s3921 = scalar_lea.sflag [#allocation4], 1
    %3922 = vsyncpa %s3921, 1
    %3923 = vsyncpa [#allocation6], 1

</llo_original>
